<compile_context>
chip_gen: v7x
topology: tpu7x:2x2x1
jax: 0.10.0
libtpu: 0.0.40
codegen_flags: <defaults>
</compile_context>

<pallas_src>
import jax
import jax.numpy as jnp
from jax import lax
from jax.experimental import pallas as pl
from jax.experimental.pallas import tpu as pltpu

NEG_INF = -1e30

# Operand dtype fed to the MXU. float32 keeps exact parity with the PyTorch
# module; set to jnp.bfloat16 on v6e/v7x for ~2x MXU throughput (accumulation
# stays float32 via preferred_element_type).
MXU_DTYPE = jnp.float32

_CONTRACT_LAST = (((1,), (1,)), ((), ()))    # A @ B^T
_CONTRACT_FIRST = (((0,), (0,)), ((), ()))   # A^T @ B


def _round_up(x, m):
    return (x + m - 1) // m * m


def _parallel(n=1):
    return pltpu.CompilerParams(dimension_semantics=("parallel",) * n)


def _dot(a, b):
    return jnp.dot(a.astype(MXU_DTYPE), b.astype(MXU_DTYPE),
                   preferred_element_type=jnp.float32)


def _dot_dims(a, b, dims):
    return lax.dot_general(a.astype(MXU_DTYPE), b.astype(MXU_DTYPE), dims,
                           preferred_element_type=jnp.float32)


# ----------------------------------------------------------------------------
# Generic row-tiled matmul (used for the hoisted LSTM input projections)
# ----------------------------------------------------------------------------
def _matmul_kernel(x_ref, w_ref, o_ref):
    o_ref[...] = _dot(x_ref[...], w_ref[...])


def row_matmul(x2d, w, *, tile=256):
    """(N, D) @ (D, K) -> (N, K), row-tiled with double-buffered pipelining."""
    N, D = x2d.shape
    K = w.shape[1]
    t = min(tile, _round_up(N, 8))
    Np = _round_up(N, t)
    if Np != N:
        x2d = jnp.pad(x2d, ((0, Np - N), (0, 0)))
    out = pl.pallas_call(
        _matmul_kernel,
        out_shape=jax.ShapeDtypeStruct((Np, K), jnp.float32),
        grid=(Np // t,),
        in_specs=[pl.BlockSpec((t, D), lambda i: (i, 0)),
                  pl.BlockSpec((D, K), lambda i: (0, 0))],
        out_specs=pl.BlockSpec((t, K), lambda i: (i, 0)),
        compiler_params=_parallel(1),
    )(x2d, w)
    return out[:N] if Np != N else out


# ----------------------------------------------------------------------------
# Embedding projection + Highway encoder (2 layers), row-tiled grid
# ----------------------------------------------------------------------------
def emb_hwy_kernel(emb_ref, wproj_ref,
                   wt1_ref, bt1_ref, wg1_ref, bg1_ref,
                   wt2_ref, bt2_ref, wg2_ref, bg2_ref,
                   out_ref):
    # emb_ref: (tile, Dw)   out_ref: (tile, H)
    x = _dot(emb_ref[...], wproj_ref[...])
    for wt_ref, bt_ref, wg_ref, bg_ref in (
            (wt1_ref, bt1_ref, wg1_ref, bg1_ref),
            (wt2_ref, bt2_ref, wg2_ref, bg2_ref)):
        g = jax.nn.sigmoid(_dot(x, wg_ref[...]) + bg_ref[...])
        t = jax.nn.relu(_dot(x, wt_ref[...]) + bt_ref[...])
        x = g * t + (1.0 - g) * x
    out_ref[...] = x


def emb_project_highway(emb2d, p, *, tile=256):
    N, Dw = emb2d.shape
    H = p['w_proj'].shape[1]
    t = min(tile, _round_up(N, 8))
    Np = _round_up(N, t)
    if Np != N:
        emb2d = jnp.pad(emb2d, ((0, Np - N), (0, 0)))
    args = (emb2d, p['w_proj'],
            p['w_t1'], p['b_t1'], p['w_g1'], p['b_g1'],
            p['w_t2'], p['b_t2'], p['w_g2'], p['b_g2'])
    in_specs = [pl.BlockSpec((t, Dw), lambda i: (i, 0))]
    for a in args[1:]:
        in_specs.append(pl.BlockSpec(a.shape, lambda i: (0, 0)))
    out = pl.pallas_call(
        emb_hwy_kernel,
        out_shape=jax.ShapeDtypeStruct((Np, H), jnp.float32),
        grid=(Np // t,),
        in_specs=in_specs,
        out_specs=pl.BlockSpec((t, H), lambda i: (i, 0)),
        compiler_params=_parallel(1),
    )(*args)
    return out[:N] if Np != N else out


# ----------------------------------------------------------------------------
# Bidirectional, mask-gated LSTM (recurrence only; input projection hoisted)
# ----------------------------------------------------------------------------
def bilstm_rec_kernel(gx_ref, m_ref,
                      whh_f_ref, b_f_ref, whh_b_ref, b_b_ref,
                      out_ref):
    # gx_ref: (T, BB, 8H) precomputed x @ [W_ih_f | W_ih_b]
    # m_ref:  (T, BB, 1)   out_ref: (T, BB, 2H)  [fwd in :H, bwd in H:]
    T, BB, _ = gx_ref.shape
    H = whh_f_ref.shape[0]

    whh_f = whh_f_ref[...]
    b_f = b_f_ref[...]
    whh_b = whh_b_ref[...]
    b_b = b_b_ref[...]

    def cell(gx_t, m_t, h, c, whh, b):
        gates = gx_t + _dot(h, whh) + b
        i = jax.nn.sigmoid(gates[:, 0:H])            # PyTorch gate order i,f,g,o
        f = jax.nn.sigmoid(gates[:, H:2 * H])
        g = jnp.tanh(gates[:, 2 * H:3 * H])
        o = jax.nn.sigmoid(gates[:, 3 * H:4 * H])
        c_new = f * c + i * g
        h_new = o * jnp.tanh(c_new)
        keep = m_t != 0
        # mask gating == packed sequence: frozen state / zero output on padding
        h = jnp.where(keep, h_new, h)
        c = jnp.where(keep, c_new, c)
        out = jnp.where(keep, h_new, 0.0)
        return h, c, out

    zeros = jnp.zeros((BB, H), jnp.float32)

    def step(t, carry):
        hf, cf, hb, cb = carry
        tr = T - 1 - t
        gx_f = gx_ref[t]                             # (BB, 8H)
        gx_b = gx_ref[tr]
        hf, cf, of = cell(gx_f[:, 0:4 * H], m_ref[t], hf, cf, whh_f, b_f)
        hb, cb, ob = cell(gx_b[:, 4 * H:8 * H], m_ref[tr], hb, cb, whh_b, b_b)
        out_ref[t, :, 0:H] = of
        out_ref[tr, :, H:2 * H] = ob
        return (hf, cf, hb, cb)

    lax.fori_loop(0, T, step, (zeros, zeros, zeros, zeros))


def bilstm(x_tm, mask_tm3, p):
    # x_tm: (T, B, D) time-major, mask_tm3: (T, B, 1)  ->  (T, B, 2H) time-major
    T, B, D = x_tm.shape
    H = p['whh_f'].shape[0]

    # Hoisted input projection: one big row-tiled MXU matmul for both directions
    wih = jnp.concatenate([p['wih_f'], p['wih_b']], axis=1)       # (D, 8H)
    gx = row_matmul(x_tm.reshape(T * B, D), wih).reshape(T, B, 8 * H)

    bb = 8 if B % 8 == 0 else B                                   # batch tile
    out = pl.pallas_call(
        bilstm_rec_kernel,
        out_shape=jax.ShapeDtypeStruct((T, B, 2 * H), jnp.float32),
        grid=(B // bb,),
        in_specs=[
            pl.BlockSpec((T, bb, 8 * H), lambda b: (0, b, 0)),
            pl.BlockSpec((T, bb, 1), lambda b: (0, b, 0)),
            pl.BlockSpec((H, 4 * H), lambda b: (0, 0)),
            pl.BlockSpec((1, 4 * H), lambda b: (0, 0)),
            pl.BlockSpec((H, 4 * H), lambda b: (0, 0)),
            pl.BlockSpec((1, 4 * H), lambda b: (0, 0)),
        ],
        out_specs=pl.BlockSpec((T, bb, 2 * H), lambda b: (0, b, 0)),
        compiler_params=_parallel(1),
    )(gx, mask_tm3, p['whh_f'], p['b_f'], p['whh_b'], p['b_b'])
    return out


# ----------------------------------------------------------------------------
# BiDAF attention (per-batch grid, reassociated q2c path)
# ----------------------------------------------------------------------------
def bidaf_att_kernel(c_ref, q_ref, cmask_ref, qmask_ref,
                     cw_ref, qw_ref, cqw_ref, bias_ref, out_ref):
    c = c_ref[0]           # (Lc, 2H)
    q = q_ref[0]           # (Lq, 2H)
    cm = cmask_ref[0]      # (Lc, 1)
    qm = qmask_ref[0]      # (1, Lq)
    bias = bias_ref[0, 0]  # scalar (SMEM)

    cw = cw_ref[...]
    qw = qw_ref[...]
    cqw = cqw_ref[...]

    # similarity matrix s: (Lc, Lq)
    s0 = _dot_dims(c, cw, _CONTRACT_LAST)            # (Lc, 1)
    s1 = _dot_dims(qw, q, _CONTRACT_LAST)            # (1, Lq)
    s2 = _dot_dims(c * cqw, q, _CONTRACT_LAST)       # (Lc, Lq)
    s = s0 + s1 + s2 + bias

    def masked_softmax(logits, mask, axis):
        ml = jnp.where(mask != 0, logits, NEG_INF)
        m = jnp.max(ml, axis=axis, keepdims=True)
        e = jnp.exp(ml - m)
        denom = jnp.sum(e, axis=axis, keepdims=True)
        return e * pl.reciprocal(denom, approx=True)

    s1p = masked_softmax(s, qm, axis=1)              # softmax over q
    s2p = masked_softmax(s, cm, axis=0)              # softmax over c

    a = _dot(s1p, q)                                 # (Lc, 2H)  c2q
    qc = _dot_dims(s2p, c, _CONTRACT_FIRST)          # (Lq, 2H)
    b = _dot(s1p, qc)                                # (Lc, 2H)  q2c, no (Lc,Lc)

    out_ref[0] = jnp.concatenate([c, a, c * a, c * b], axis=-1)   # (Lc, 8H)


def bidaf_attention(c, q, c_mask, q_mask, p):
    # c: (B, Lc, 2H), q: (B, Lq, 2H), masks: (B, Lc) / (B, Lq)
    B, Lc, D2 = c.shape
    Lq = q.shape[1]
    cm = c_mask[:, :, None]      # (B, Lc, 1)
    qm = q_mask[:, None, :]      # (B, 1, Lq)
    return pl.pallas_call(
        bidaf_att_kernel,
        out_shape=jax.ShapeDtypeStruct((B, Lc, 4 * D2), jnp.float32),
        grid=(B,),
        in_specs=[
            pl.BlockSpec((1, Lc, D2), lambda b: (b, 0, 0)),
            pl.BlockSpec((1, Lq, D2), lambda b: (b, 0, 0)),
            pl.BlockSpec((1, Lc, 1), lambda b: (b, 0, 0)),
            pl.BlockSpec((1, 1, Lq), lambda b: (b, 0, 0)),
            pl.BlockSpec((1, D2), lambda b: (0, 0)),
            pl.BlockSpec((1, D2), lambda b: (0, 0)),
            pl.BlockSpec((1, D2), lambda b: (0, 0)),
            pl.BlockSpec(memory_space=pltpu.MemorySpace.SMEM),
        ],
        out_specs=pl.BlockSpec((1, Lc, 4 * D2), lambda b: (b, 0, 0)),
        compiler_params=_parallel(1),
    )(c, q, cm, qm, p['cw'], p['qw'], p['cqw'], p['bias'])


# ----------------------------------------------------------------------------
# BiDAF output layer (start/end log-probabilities), per-batch grid
# ----------------------------------------------------------------------------
def output_kernel(att_ref, mod_ref, mod2_ref, cmask_ref,
                  wa1_ref, wm1_ref, wa2_ref, wm2_ref, b_ref,
                  logp1_ref, logp2_ref):
    att = att_ref[0]       # (Lc, 8H)
    mod = mod_ref[0]       # (Lc, 2H)
    mod2 = mod2_ref[0]     # (Lc, 2H)
    cm = cmask_ref[0]      # (1, Lc)

    def row_lin(w_ref, x):  # (1, D), (Lc, D) -> (1, Lc)
        return _dot_dims(w_ref[...], x, _CONTRACT_LAST)

    l1 = row_lin(wa1_ref, att) + row_lin(wm1_ref, mod) + (b_ref[0] + b_ref[1])
    l2 = row_lin(wa2_ref, att) + row_lin(wm2_ref, mod2) + (b_ref[2] + b_ref[3])

    def masked_log_softmax(logits):
        ml = jnp.where(cm != 0, logits, NEG_INF)
        m = jnp.max(ml, axis=-1, keepdims=True)
        z = ml - m
        return z - jnp.log(jnp.sum(jnp.exp(z), axis=-1, keepdims=True))

    logp1_ref[0] = masked_log_softmax(l1)
    logp2_ref[0] = masked_log_softmax(l2)


def bidaf_output(att, mod, mod2, c_mask, p):
    B, Lc, D8 = att.shape
    D2 = mod.shape[2]
    cm_row = c_mask[:, None, :]                     # (B, 1, Lc)
    b_all = jnp.concatenate([p['ba1'].reshape(-1), p['bm1'].reshape(-1),
                             p['ba2'].reshape(-1), p['bm2'].reshape(-1)])  # (4,)
    logp1, logp2 = pl.pallas_call(
        output_kernel,
        out_shape=(jax.ShapeDtypeStruct((B, 1, Lc), jnp.float32),
                   jax.ShapeDtypeStruct((B, 1, Lc), jnp.float32)),
        grid=(B,),
        in_specs=[
            pl.BlockSpec((1, Lc, D8), lambda b: (b, 0, 0)),
            pl.BlockSpec((1, Lc, D2), lambda b: (b, 0, 0)),
            pl.BlockSpec((1, Lc, D2), lambda b: (b, 0, 0)),
            pl.BlockSpec((1, 1, Lc), lambda b: (b, 0, 0)),
            pl.BlockSpec((1, D8), lambda b: (0, 0)),
            pl.BlockSpec((1, D2), lambda b: (0, 0)),
            pl.BlockSpec((1, D8), lambda b: (0, 0)),
            pl.BlockSpec((1, D2), lambda b: (0, 0)),
            pl.BlockSpec(memory_space=pltpu.MemorySpace.SMEM),
        ],
        out_specs=(pl.BlockSpec((1, 1, Lc), lambda b: (b, 0, 0)),
                   pl.BlockSpec((1, 1, Lc), lambda b: (b, 0, 0))),
        compiler_params=_parallel(1),
    )(att, mod, mod2, cm_row, p['wa1'], p['wm1'], p['wa2'], p['wm2'], b_all)
    return logp1[:, 0, :], logp2[:, 0, :]


# ----------------------------------------------------------------------------
# Full BiDAF forward pass
# ----------------------------------------------------------------------------
def bidaf_forward(params, cw_idxs, qw_idxs, cc_idxs=None, qc_idxs=None):
    # cc_idxs / qc_idxs accepted for signature parity; unused (use_char_embed=False)
    del cc_idxs, qc_idxs
    B, Lc = cw_idxs.shape
    Lq = qw_idxs.shape[1]
    H = params['enc']['whh_f'].shape[0]

    c_mask = (cw_idxs != 0).astype(jnp.float32)      # (B, Lc)
    q_mask = (qw_idxs != 0).astype(jnp.float32)      # (B, Lq)

    # Time-major views for the recurrent kernels
    c_mask_tm = c_mask.T[:, :, None]                 # (Lc, B, 1)
    q_mask_tm = q_mask.T[:, :, None]                 # (Lq, B, 1)

    # Embedding lookup (gather glue), then one shared projection+highway call
    wv = params['word_vectors']
    Dw = wv.shape[1]
    c_wemb = jnp.take(wv, cw_idxs.T, axis=0)         # (Lc, B, Dw)
    q_wemb = jnp.take(wv, qw_idxs.T, axis=0)         # (Lq, B, Dw)
    emb_all = jnp.concatenate([c_wemb.reshape(Lc * B, Dw),
                               q_wemb.reshape(Lq * B, Dw)], axis=0)
    hwy_all = emb_project_highway(emb_all, params['emb'])      # (N, H)
    c_emb = hwy_all[:Lc * B].reshape(Lc, B, H)
    q_emb = hwy_all[Lc * B:].reshape(Lq, B, H)

    # Contextual encoders (shared weights, as in the PyTorch model), time-major
    c_enc_tm = bilstm(c_emb, c_mask_tm, params['enc'])         # (Lc, B, 2H)
    q_enc_tm = bilstm(q_emb, q_mask_tm, params['enc'])         # (Lq, B, 2H)

    # Bidirectional attention flow (batch-first)
    c_enc = jnp.transpose(c_enc_tm, (1, 0, 2))                 # (B, Lc, 2H)
    q_enc = jnp.transpose(q_enc_tm, (1, 0, 2))                 # (B, Lq, 2H)
    att = bidaf_attention(c_enc, q_enc, c_mask, q_mask, params['att'])  # (B,Lc,8H)

    # Modeling layers stay time-major throughout (no per-layer transposes)
    att_tm = jnp.transpose(att, (1, 0, 2))                     # (Lc, B, 8H)
    m1_tm = bilstm(att_tm, c_mask_tm, params['mod1'])          # (Lc, B, 2H)
    mod_tm = bilstm(m1_tm, c_mask_tm, params['mod2'])          # (Lc, B, 2H)
    mod2_tm = bilstm(mod_tm, c_mask_tm, params['out_rnn'])     # (Lc, B, 2H)

    mod = jnp.transpose(mod_tm, (1, 0, 2))
    mod2 = jnp.transpose(mod2_tm, (1, 0, 2))
    log_p1, log_p2 = bidaf_output(att, mod, mod2, c_mask, params['out'])
    return log_p1, log_p2


# ----------------------------------------------------------------------------
# Deterministic parameter init (shapes implied by the module's __init__)
# ----------------------------------------------------------------------------
def init_params(key, V, Dw, H):
    keys = iter(jax.random.split(key, 64))

    def w(shape, scale=0.1):
        return (scale * jax.random.normal(next(keys), shape)).astype(jnp.float32)

    def lstm(d_in):
        return {'wih_f': w((d_in, 4 * H)), 'whh_f': w((H, 4 * H)), 'b_f': w((1, 4 * H)),
                'wih_b': w((d_in, 4 * H)), 'whh_b': w((H, 4 * H)), 'b_b': w((1, 4 * H))}

    return {
        'word_vectors': w((V, Dw), 1.0),
        'emb': {'w_proj': w((Dw, H)),
                'w_t1': w((H, H)), 'b_t1': w((1, H)),
                'w_g1': w((H, H)), 'b_g1': w((1, H)),
                'w_t2': w((H, H)), 'b_t2': w((1, H)),
                'w_g2': w((H, H)), 'b_g2': w((1, H))},
        'enc': lstm(H),
        'att': {'cw': w((1, 2 * H)), 'qw': w((1, 2 * H)), 'cqw': w((1, 2 * H)),
                'bias': jnp.zeros((1, 1), jnp.float32)},
        'mod1': lstm(8 * H),
        'mod2': lstm(2 * H),
        'out_rnn': lstm(2 * H),
        'out': {'wa1': w((1, 8 * H)), 'ba1': jnp.zeros((1, 1), jnp.float32),
                'wm1': w((1, 2 * H)), 'bm1': jnp.zeros((1, 1), jnp.float32),
                'wa2': w((1, 8 * H)), 'ba2': jnp.zeros((1, 1), jnp.float32),
                'wm2': w((1, 2 * H)), 'bm2': jnp.zeros((1, 1), jnp.float32)},
    }


if __name__ == "__main__":
    B, Lc, Lq = 2, 16, 8
    V, Dw, H = 100, 64, 32

    params = init_params(jax.random.PRNGKey(0), V, Dw, H)

    kc, kq = jax.random.split(jax.random.PRNGKey(0), 2)
    cw_idxs = jax.random.randint(kc, (B, Lc), 1, V)
    qw_idxs = jax.random.randint(kq, (B, Lq), 1, V)
    # contiguous end padding (token 0) so masks / lengths are exercised
    c_lens = jnp.array([Lc, Lc - 4])
    q_lens = jnp.array([Lq, Lq - 2])
    cw_idxs = jnp.where(jnp.arange(Lc)[None, :] < c_lens[:, None], cw_idxs, 0)
    qw_idxs = jnp.where(jnp.arange(Lq)[None, :] < q_lens[:, None], qw_idxs, 0)

    fwd = jax.jit(bidaf_forward)
    log_p1, log_p2 = fwd(params, cw_idxs, qw_idxs)
    jax.block_until_ready((log_p1, log_p2))

    assert log_p1.shape == (B, Lc) and log_p2.shape == (B, Lc)
    assert bool(jnp.all(jnp.isfinite(log_p1))) and bool(jnp.all(jnp.isfinite(log_p2)))
    # masked softmax sanity: probabilities sum to ~1 over the context axis
    assert bool(jnp.allclose(jnp.sum(jnp.exp(log_p1), axis=-1), 1.0, atol=1e-3))
    assert bool(jnp.allclose(jnp.sum(jnp.exp(log_p2), axis=-1), 1.0, atol=1e-3))
    print("KERNEL_OK")
</pallas_src>

<mosaic_0001>
module attributes {stable_mosaic.version = 11 : i64} {
  func.func @_matmul_kernel(%arg0: i32, %arg1: memref<32x32xf32, #tpu.memory_space<vmem>>, %arg2: memref<32x256xf32, #tpu.memory_space<vmem>>, %arg3: memref<32x256xf32, #tpu.memory_space<vmem>>) attributes {dimension_semantics = [#tpu.dimension_semantics<parallel>], iteration_bounds = array<i64: 1>, scalar_prefetch = 0 : i64, scratch_operands = 0 : i64, tpu.core_type = #tpu.core_type<tc>, window_params = [{transform_indices = @transform_0, window_bounds = array<i64: 32, 32>}, {pipeline_mode = #tpu.pipeline_mode<synchronous>, transform_indices = @transform_1, window_bounds = array<i64: 32, 256>}, {transform_indices = @transform_2, window_bounds = array<i64: 32, 256>}]} {
    %c0 = arith.constant 0 : index
    %c0_0 = arith.constant 0 : index
    %0 = vector.load %arg1[%c0, %c0_0] : memref<32x32xf32, #tpu.memory_space<vmem>>, vector<32x32xf32>
    %c0_1 = arith.constant 0 : index
    %c0_2 = arith.constant 0 : index
    %1 = vector.load %arg2[%c0_1, %c0_2] : memref<32x256xf32, #tpu.memory_space<vmem>>, vector<32x256xf32>
    %cst = arith.constant dense<0.000000e+00> : vector<32x256xf32>
    %2 = tpu.matmul %0, %1, %cst {dimension_numbers = #tpu.dot_dimension_numbers<[1], [0], [0], [1], [0, 0, 1, 1], [], []>} : vector<32x32xf32>, vector<32x256xf32>, vector<32x256xf32> -> vector<32x256xf32>
    %c0_3 = arith.constant 0 : index
    %c0_4 = arith.constant 0 : index
    %3 = vector.load %arg3[%c0_3, %c0_4] : memref<32x256xf32, #tpu.memory_space<vmem>>, vector<32x256xf32>
    tpu.vector_store %arg3[%c0_3, %c0_4], %2 {strides = array<i32>} : memref<32x256xf32, #tpu.memory_space<vmem>>, vector<32x256xf32>,
    return
  }
  func.func @transform_0(%arg0: i32) -> (i32, i32) {
    %c0_i32 = arith.constant 0 : i32
    %c0_i32_0 = arith.constant 0 : i32
    return %arg0, %c0_i32 : i32, i32
  }
  func.func @transform_1(%arg0: i32) -> (i32, i32) {
    %c0_i32 = arith.constant 0 : i32
    %c0_i32_0 = arith.constant 0 : i32
    %c0_i32_1 = arith.constant 0 : i32
    return %c0_i32, %c0_i32_0 : i32, i32
  }
  func.func @transform_2(%arg0: i32) -> (i32, i32) {
    %c0_i32 = arith.constant 0 : i32
    %c0_i32_0 = arith.constant 0 : i32
    return %arg0, %c0_i32 : i32, i32
  }
}

module attributes {stable_mosaic.version = 11 : i64} {
  func.func @emb_hwy_kernel(%arg0: i32, %arg1: memref<48x64xf32, #tpu.memory_space<vmem>>, %arg2: memref<64x32xf32, #tpu.memory_space<vmem>>, %arg3: memref<32x32xf32, #tpu.memory_space<vmem>>, %arg4: memref<1x32xf32, #tpu.memory_space<vmem>>, %arg5: memref<32x32xf32, #tpu.memory_space<vmem>>, %arg6: memref<1x32xf32, #tpu.memory_space<vmem>>, %arg7: memref<32x32xf32, #tpu.memory_space<vmem>>, %arg8: memref<1x32xf32, #tpu.memory_space<vmem>>, %arg9: memref<32x32xf32, #tpu.memory_space<vmem>>, %arg10: memref<1x32xf32, #tpu.memory_space<vmem>>, %arg11: memref<48x32xf32, #tpu.memory_space<vmem>>) attributes {dimension_semantics = [#tpu.dimension_semantics<parallel>], iteration_bounds = array<i64: 1>, scalar_prefetch = 0 : i64, scratch_operands = 0 : i64, tpu.core_type = #tpu.core_type<tc>, window_params = [{transform_indices = @transform_0, window_bounds = array<i64: 48, 64>}, {pipeline_mode = #tpu.pipeline_mode<synchronous>, transform_indices = @transform_1, window_bounds = array<i64: 64, 32>}, {pipeline_mode = #tpu.pipeline_mode<synchronous>, transform_indices = @transform_2, window_bounds = array<i64: 32, 32>}, {pipeline_mode = #tpu.pipeline_mode<synchronous>, transform_indices = @transform_3, window_bounds = array<i64: 1, 32>}, {pipeline_mode = #tpu.pipeline_mode<synchronous>, transform_indices = @transform_4, window_bounds = array<i64: 32, 32>}, {pipeline_mode = #tpu.pipeline_mode<synchronous>, transform_indices = @transform_5, window_bounds = array<i64: 1, 32>}, {pipeline_mode = #tpu.pipeline_mode<synchronous>, transform_indices = @transform_6, window_bounds = array<i64: 32, 32>}, {pipeline_mode = #tpu.pipeline_mode<synchronous>, transform_indices = @transform_7, window_bounds = array<i64: 1, 32>}, {pipeline_mode = #tpu.pipeline_mode<synchronous>, transform_indices = @transform_8, window_bounds = array<i64: 32, 32>}, {pipeline_mode = #tpu.pipeline_mode<synchronous>, transform_indices = @transform_9, window_bounds = array<i64: 1, 32>}, {transform_indices = @transform_10, window_bounds = array<i64: 48, 32>}]} {
    %c0 = arith.constant 0 : index
    %c0_0 = arith.constant 0 : index
    %0 = vector.load %arg1[%c0, %c0_0] : memref<48x64xf32, #tpu.memory_space<vmem>>, vector<48x64xf32>
    %c0_1 = arith.constant 0 : index
    %c0_2 = arith.constant 0 : index
    %1 = vector.load %arg2[%c0_1, %c0_2] : memref<64x32xf32, #tpu.memory_space<vmem>>, vector<64x32xf32>
    %cst = arith.constant dense<0.000000e+00> : vector<48x32xf32>
    %2 = tpu.matmul %0, %1, %cst {dimension_numbers = #tpu.dot_dimension_numbers<[1], [0], [0], [1], [0, 0, 1, 1], [], []>} : vector<48x64xf32>, vector<64x32xf32>, vector<48x32xf32> -> vector<48x32xf32>
    %c0_3 = arith.constant 0 : index
    %c0_4 = arith.constant 0 : index
    %3 = vector.load %arg5[%c0_3, %c0_4] : memref<32x32xf32, #tpu.memory_space<vmem>>, vector<32x32xf32>
    %cst_5 = arith.constant dense<0.000000e+00> : vector<48x32xf32>
    %4 = tpu.matmul %2, %3, %cst_5 {dimension_numbers = #tpu.dot_dimension_numbers<[1], [0], [0], [1], [0, 0, 1, 1], [], []>} : vector<48x32xf32>, vector<32x32xf32>, vector<48x32xf32> -> vector<48x32xf32>
    %c0_6 = arith.constant 0 : index
    %c0_7 = arith.constant 0 : index
    %5 = vector.load %arg6[%c0_6, %c0_7] : memref<1x32xf32, #tpu.memory_space<vmem>>, vector<1x32xf32>
    %6 = vector.broadcast %5 : vector<1x32xf32> to vector<48x32xf32>
    %7 = arith.addf %4, %6 : vector<48x32xf32>
    %8 = arith.negf %7 : vector<48x32xf32>
    %9 = math.exp %8 : vector<48x32xf32>
    %cst_8 = arith.constant 1.000000e+00 : f32
    %10 = vector.broadcast %cst_8 : f32 to vector<48x32xf32>
    %11 = arith.addf %10, %9 : vector<48x32xf32>
    %12 = arith.divf %10, %11 : vector<48x32xf32>
    %c0_9 = arith.constant 0 : index
    %c0_10 = arith.constant 0 : index
    %13 = vector.load %arg3[%c0_9, %c0_10] : memref<32x32xf32, #tpu.memory_space<vmem>>, vector<32x32xf32>
    %cst_11 = arith.constant dense<0.000000e+00> : vector<48x32xf32>
    %14 = tpu.matmul %2, %13, %cst_11 {dimension_numbers = #tpu.dot_dimension_numbers<[1], [0], [0], [1], [0, 0, 1, 1], [], []>} : vector<48x32xf32>, vector<32x32xf32>, vector<48x32xf32> -> vector<48x32xf32>
    %c0_12 = arith.constant 0 : index
    %c0_13 = arith.constant 0 : index
    %15 = vector.load %arg4[%c0_12, %c0_13] : memref<1x32xf32, #tpu.memory_space<vmem>>, vector<1x32xf32>
    %16 = vector.broadcast %15 : vector<1x32xf32> to vector<48x32xf32>
    %17 = arith.addf %14, %16 : vector<48x32xf32>
    %cst_14 = arith.constant 0.000000e+00 : f32
    %18 = vector.broadcast %cst_14 : f32 to vector<48x32xf32>
    %19 = arith.maximumf %17, %18 : vector<48x32xf32>
    %20 = arith.mulf %12, %19 : vector<48x32xf32>
    %cst_15 = arith.constant 1.000000e+00 : f32
    %21 = vector.broadcast %cst_15 : f32 to vector<48x32xf32>
    %22 = arith.subf %21, %12 : vector<48x32xf32>
    %23 = arith.mulf %22, %2 : vector<48x32xf32>
    %24 = arith.addf %20, %23 : vector<48x32xf32>
    %c0_16 = arith.constant 0 : index
    %c0_17 = arith.constant 0 : index
    %25 = vector.load %arg9[%c0_16, %c0_17] : memref<32x32xf32, #tpu.memory_space<vmem>>, vector<32x32xf32>
    %cst_18 = arith.constant dense<0.000000e+00> : vector<48x32xf32>
    %26 = tpu.matmul %24, %25, %cst_18 {dimension_numbers = #tpu.dot_dimension_numbers<[1], [0], [0], [1], [0, 0, 1, 1], [], []>} : vector<48x32xf32>, vector<32x32xf32>, vector<48x32xf32> -> vector<48x32xf32>
    %c0_19 = arith.constant 0 : index
    %c0_20 = arith.constant 0 : index
    %27 = vector.load %arg10[%c0_19, %c0_20] : memref<1x32xf32, #tpu.memory_space<vmem>>, vector<1x32xf32>
    %28 = vector.broadcast %27 : vector<1x32xf32> to vector<48x32xf32>
    %29 = arith.addf %26, %28 : vector<48x32xf32>
    %30 = arith.negf %29 : vector<48x32xf32>
    %31 = math.exp %30 : vector<48x32xf32>
    %cst_21 = arith.constant 1.000000e+00 : f32
    %32 = vector.broadcast %cst_21 : f32 to vector<48x32xf32>
    %33 = arith.addf %32, %31 : vector<48x32xf32>
    %34 = arith.divf %32, %33 : vector<48x32xf32>
    %c0_22 = arith.constant 0 : index
    %c0_23 = arith.constant 0 : index
    %35 = vector.load %arg7[%c0_22, %c0_23] : memref<32x32xf32, #tpu.memory_space<vmem>>, vector<32x32xf32>
    %cst_24 = arith.constant dense<0.000000e+00> : vector<48x32xf32>
    %36 = tpu.matmul %24, %35, %cst_24 {dimension_numbers = #tpu.dot_dimension_numbers<[1], [0], [0], [1], [0, 0, 1, 1], [], []>} : vector<48x32xf32>, vector<32x32xf32>, vector<48x32xf32> -> vector<48x32xf32>
    %c0_25 = arith.constant 0 : index
    %c0_26 = arith.constant 0 : index
    %37 = vector.load %arg8[%c0_25, %c0_26] : memref<1x32xf32, #tpu.memory_space<vmem>>, vector<1x32xf32>
    %38 = vector.broadcast %37 : vector<1x32xf32> to vector<48x32xf32>
    %39 = arith.addf %36, %38 : vector<48x32xf32>
    %cst_27 = arith.constant 0.000000e+00 : f32
    %40 = vector.broadcast %cst_27 : f32 to vector<48x32xf32>
    %41 = arith.maximumf %39, %40 : vector<48x32xf32>
    %42 = arith.mulf %34, %41 : vector<48x32xf32>
    %cst_28 = arith.constant 1.000000e+00 : f32
    %43 = vector.broadcast %cst_28 : f32 to vector<48x32xf32>
    %44 = arith.subf %43, %34 : vector<48x32xf32>
    %45 = arith.mulf %44, %24 : vector<48x32xf32>
    %46 = arith.addf %42, %45 : vector<48x32xf32>
    %c0_29 = arith.constant 0 : index
    %c0_30 = arith.constant 0 : index
    %47 = vector.load %arg11[%c0_29, %c0_30] : memref<48x32xf32, #tpu.memory_space<vmem>>, vector<48x32xf32>
    tpu.vector_store %arg11[%c0_29, %c0_30], %46 {strides = array<i32>} : memref<48x32xf32, #tpu.memory_space<vmem>>, vector<48x32xf32>,
    return
  }
  func.func @transform_0(%arg0: i32) -> (i32, i32) {
    %c0_i32 = arith.constant 0 : i32
    %c0_i32_0 = arith.constant 0 : i32
    return %arg0, %c0_i32 : i32, i32
  }
  func.func @transform_1(%arg0: i32) -> (i32, i32) {
    %c0_i32 = arith.constant 0 : i32
    %c0_i32_0 = arith.constant 0 : i32
    %c0_i32_1 = arith.constant 0 : i32
    return %c0_i32, %c0_i32_0 : i32, i32
  }
  func.func @transform_2(%arg0: i32) -> (i32, i32) {
    %c0_i32 = arith.constant 0 : i32
    %c0_i32_0 = arith.constant 0 : i32
    %c0_i32_1 = arith.constant 0 : i32
    return %c0_i32, %c0_i32_0 : i32, i32
  }
  func.func @transform_3(%arg0: i32) -> (i32, i32) {
    %c0_i32 = arith.constant 0 : i32
    %c0_i32_0 = arith.constant 0 : i32
    %c0_i32_1 = arith.constant 0 : i32
    return %c0_i32, %c0_i32_0 : i32, i32
  }
  func.func @transform_4(%arg0: i32) -> (i32, i32) {
    %c0_i32 = arith.constant 0 : i32
    %c0_i32_0 = arith.constant 0 : i32
    %c0_i32_1 = arith.constant 0 : i32
    return %c0_i32, %c0_i32_0 : i32, i32
  }
  func.func @transform_5(%arg0: i32) -> (i32, i32) {
    %c0_i32 = arith.constant 0 : i32
    %c0_i32_0 = arith.constant 0 : i32
    %c0_i32_1 = arith.constant 0 : i32
    return %c0_i32, %c0_i32_0 : i32, i32
  }
  func.func @transform_6(%arg0: i32) -> (i32, i32) {
    %c0_i32 = arith.constant 0 : i32
    %c0_i32_0 = arith.constant 0 : i32
    %c0_i32_1 = arith.constant 0 : i32
    return %c0_i32, %c0_i32_0 : i32, i32
  }
  func.func @transform_7(%arg0: i32) -> (i32, i32) {
    %c0_i32 = arith.constant 0 : i32
    %c0_i32_0 = arith.constant 0 : i32
    %c0_i32_1 = arith.constant 0 : i32
    return %c0_i32, %c0_i32_0 : i32, i32
  }
  func.func @transform_8(%arg0: i32) -> (i32, i32) {
    %c0_i32 = arith.constant 0 : i32
    %c0_i32_0 = arith.constant 0 : i32
    %c0_i32_1 = arith.constant 0 : i32
    return %c0_i32, %c0_i32_0 : i32, i32
  }
  func.func @transform_9(%arg0: i32) -> (i32, i32) {
    %c0_i32 = arith.constant 0 : i32
    %c0_i32_0 = arith.constant 0 : i32
    %c0_i32_1 = arith.constant 0 : i32
    return %c0_i32, %c0_i32_0 : i32, i32
  }
  func.func @transform_10(%arg0: i32) -> (i32, i32) {
    %c0_i32 = arith.constant 0 : i32
    %c0_i32_0 = arith.constant 0 : i32
    return %arg0, %c0_i32 : i32, i32
  }
}

module attributes {stable_mosaic.version = 11 : i64} {
  func.func @bilstm_rec_kernel(%arg0: i32, %arg1: memref<16x2x256xf32, #tpu.memory_space<vmem>>, %arg2: memref<16x2x1xf32, #tpu.memory_space<vmem>>, %arg3: memref<32x128xf32, #tpu.memory_space<vmem>>, %arg4: memref<1x128xf32, #tpu.memory_space<vmem>>, %arg5: memref<32x128xf32, #tpu.memory_space<vmem>>, %arg6: memref<1x128xf32, #tpu.memory_space<vmem>>, %arg7: memref<16x2x64xf32, #tpu.memory_space<vmem>>) attributes {dimension_semantics = [#tpu.dimension_semantics<parallel>], iteration_bounds = array<i64: 1>, scalar_prefetch = 0 : i64, scratch_operands = 0 : i64, tpu.core_type = #tpu.core_type<tc>, window_params = [{transform_indices = @transform_0, window_bounds = array<i64: 16, 2, 256>}, {transform_indices = @transform_1, window_bounds = array<i64: 16, 2, 1>}, {pipeline_mode = #tpu.pipeline_mode<synchronous>, transform_indices = @transform_2, window_bounds = array<i64: 32, 128>}, {pipeline_mode = #tpu.pipeline_mode<synchronous>, transform_indices = @transform_3, window_bounds = array<i64: 1, 128>}, {pipeline_mode = #tpu.pipeline_mode<synchronous>, transform_indices = @transform_4, window_bounds = array<i64: 32, 128>}, {pipeline_mode = #tpu.pipeline_mode<synchronous>, transform_indices = @transform_5, window_bounds = array<i64: 1, 128>}, {transform_indices = @transform_6, window_bounds = array<i64: 16, 2, 64>}]} {
    %c0 = arith.constant 0 : index
    %c0_0 = arith.constant 0 : index
    %0 = vector.load %arg3[%c0, %c0_0] : memref<32x128xf32, #tpu.memory_space<vmem>>, vector<32x128xf32>
    %c0_1 = arith.constant 0 : index
    %c0_2 = arith.constant 0 : index
    %1 = vector.load %arg4[%c0_1, %c0_2] : memref<1x128xf32, #tpu.memory_space<vmem>>, vector<1x128xf32>
    %c0_3 = arith.constant 0 : index
    %c0_4 = arith.constant 0 : index
    %2 = vector.load %arg5[%c0_3, %c0_4] : memref<32x128xf32, #tpu.memory_space<vmem>>, vector<32x128xf32>
    %c0_5 = arith.constant 0 : index
    %c0_6 = arith.constant 0 : index
    %3 = vector.load %arg6[%c0_5, %c0_6] : memref<1x128xf32, #tpu.memory_space<vmem>>, vector<1x128xf32>
    %cst = arith.constant 0.000000e+00 : f32
    %4 = vector.broadcast %cst : f32 to vector<2x32xf32>
    %c0_i32 = arith.constant 0 : i32
    %c16_i32 = arith.constant 16 : i32
    %5 = arith.addi %c0_i32, %c16_i32 : i32
    %c1_i32 = arith.constant 1 : i32
    %6:4 = scf.for %arg8 = %c0_i32 to %5 step %c1_i32 iter_args(%arg9 = %4, %arg10 = %4, %arg11 = %4, %arg12 = %4) -> (vector<2x32xf32>, vector<2x32xf32>, vector<2x32xf32>, vector<2x32xf32>)  : i32 {
      %c15_i32 = arith.constant 15 : i32
      %7 = arith.subi %c15_i32, %arg8 : i32
      %8 = arith.index_cast %arg8 : i32 to index
      %c0_8 = arith.constant 0 : index
      %c0_9 = arith.constant 0 : index
      %9 = vector.load %arg1[%8, %c0_8, %c0_9] : memref<16x2x256xf32, #tpu.memory_space<vmem>>, vector<1x2x256xf32>
      %10 = vector.shape_cast %9 : vector<1x2x256xf32> to vector<2x256xf32>
      %11 = arith.index_cast %7 : i32 to index
      %c0_10 = arith.constant 0 : index
      %c0_11 = arith.constant 0 : index
      %12 = vector.load %arg1[%11, %c0_10, %c0_11] : memref<16x2x256xf32, #tpu.memory_space<vmem>>, vector<1x2x256xf32>
      %13 = vector.shape_cast %12 : vector<1x2x256xf32> to vector<2x256xf32>
      %14 = vector.extract_strided_slice %10 {offsets = [0, 0], sizes = [2, 128], strides = [1, 1]} : vector<2x256xf32> to vector<2x128xf32>
      %15 = arith.index_cast %arg8 : i32 to index
      %c0_12 = arith.constant 0 : index
      %c0_13 = arith.constant 0 : index
      %16 = vector.load %arg2[%15, %c0_12, %c0_13] : memref<16x2x1xf32, #tpu.memory_space<vmem>>, vector<1x2x1xf32>
      %17 = vector.shape_cast %16 : vector<1x2x1xf32> to vector<2x1xf32>
      %cst_14 = arith.constant dense<0.000000e+00> : vector<2x128xf32>
      %18 = tpu.matmul %arg9, %0, %cst_14 {dimension_numbers = #tpu.dot_dimension_numbers<[1], [0], [0], [1], [0, 0, 1, 1], [], []>} : vector<2x32xf32>, vector<32x128xf32>, vector<2x128xf32> -> vector<2x128xf32>
      %19 = arith.addf %14, %18 : vector<2x128xf32>
      %20 = vector.broadcast %1 : vector<1x128xf32> to vector<2x128xf32>
      %21 = arith.addf %19, %20 : vector<2x128xf32>
      %22 = vector.extract_strided_slice %21 {offsets = [0, 0], sizes = [2, 32], strides = [1, 1]} : vector<2x128xf32> to vector<2x32xf32>
      %23 = arith.negf %22 : vector<2x32xf32>
      %24 = math.exp %23 : vector<2x32xf32>
      %cst_15 = arith.constant 1.000000e+00 : f32
      %25 = vector.broadcast %cst_15 : f32 to vector<2x32xf32>
      %26 = arith.addf %25, %24 : vector<2x32xf32>
      %27 = arith.divf %25, %26 : vector<2x32xf32>
      %28 = vector.extract_strided_slice %21 {offsets = [0, 32], sizes = [2, 32], strides = [1, 1]} : vector<2x128xf32> to vector<2x32xf32>
      %29 = arith.negf %28 : vector<2x32xf32>
      %30 = math.exp %29 : vector<2x32xf32>
      %cst_16 = arith.constant 1.000000e+00 : f32
      %31 = vector.broadcast %cst_16 : f32 to vector<2x32xf32>
      %32 = arith.addf %31, %30 : vector<2x32xf32>
      %33 = arith.divf %31, %32 : vector<2x32xf32>
      %34 = vector.extract_strided_slice %21 {offsets = [0, 64], sizes = [2, 32], strides = [1, 1]} : vector<2x128xf32> to vector<2x32xf32>
      %35 = math.tanh %34 : vector<2x32xf32>
      %36 = vector.extract_strided_slice %21 {offsets = [0, 96], sizes = [2, 32], strides = [1, 1]} : vector<2x128xf32> to vector<2x32xf32>
      %37 = arith.negf %36 : vector<2x32xf32>
      %38 = math.exp %37 : vector<2x32xf32>
      %cst_17 = arith.constant 1.000000e+00 : f32
      %39 = vector.broadcast %cst_17 : f32 to vector<2x32xf32>
      %40 = arith.addf %39, %38 : vector<2x32xf32>
      %41 = arith.divf %39, %40 : vector<2x32xf32>
      %42 = arith.mulf %33, %arg10 : vector<2x32xf32>
      %43 = arith.mulf %27, %35 : vector<2x32xf32>
      %44 = arith.addf %42, %43 : vector<2x32xf32>
      %45 = math.tanh %44 : vector<2x32xf32>
      %46 = arith.mulf %41, %45 : vector<2x32xf32>
      %cst_18 = arith.constant 0.000000e+00 : f32
      %47 = vector.broadcast %cst_18 : f32 to vector<2x1xf32>
      %48 = arith.cmpf one, %17, %47 : vector<2x1xf32>
      %49 = vector.shape_cast %48 : vector<2x1xi1> to vector<2x1xi1>
      %50 = vector.broadcast %49 : vector<2x1xi1> to vector<2x32xi1>
      %51 = arith.select %50, %46, %arg9 : vector<2x32xi1>, vector<2x32xf32>
      %52 = vector.shape_cast %48 : vector<2x1xi1> to vector<2x1xi1>
      %53 = vector.broadcast %52 : vector<2x1xi1> to vector<2x32xi1>
      %54 = arith.select %53, %44, %arg10 : vector<2x32xi1>, vector<2x32xf32>
      %cst_19 = arith.constant 0.000000e+00 : f32
      %55 = vector.shape_cast %48 : vector<2x1xi1> to vector<2x1xi1>
      %56 = vector.broadcast %55 : vector<2x1xi1> to vector<2x32xi1>
      %57 = vector.broadcast %cst_19 : f32 to vector<2x32xf32>
      %58 = arith.select %56, %46, %57 : vector<2x32xi1>, vector<2x32xf32>
      %59 = vector.extract_strided_slice %13 {offsets = [0, 128], sizes = [2, 128], strides = [1, 1]} : vector<2x256xf32> to vector<2x128xf32>
      %60 = arith.index_cast %7 : i32 to index
      %c0_20 = arith.constant 0 : index
      %c0_21 = arith.constant 0 : index
      %61 = vector.load %arg2[%60, %c0_20, %c0_21] : memref<16x2x1xf32, #tpu.memory_space<vmem>>, vector<1x2x1xf32>
      %62 = vector.shape_cast %61 : vector<1x2x1xf32> to vector<2x1xf32>
      %cst_22 = arith.constant dense<0.000000e+00> : vector<2x128xf32>
      %63 = tpu.matmul %arg11, %2, %cst_22 {dimension_numbers = #tpu.dot_dimension_numbers<[1], [0], [0], [1], [0, 0, 1, 1], [], []>} : vector<2x32xf32>, vector<32x128xf32>, vector<2x128xf32> -> vector<2x128xf32>
      %64 = arith.addf %59, %63 : vector<2x128xf32>
      %65 = vector.broadcast %3 : vector<1x128xf32> to vector<2x128xf32>
      %66 = arith.addf %64, %65 : vector<2x128xf32>
      %67 = vector.extract_strided_slice %66 {offsets = [0, 0], sizes = [2, 32], strides = [1, 1]} : vector<2x128xf32> to vector<2x32xf32>
      %68 = arith.negf %67 : vector<2x32xf32>
      %69 = math.exp %68 : vector<2x32xf32>
      %cst_23 = arith.constant 1.000000e+00 : f32
      %70 = vector.broadcast %cst_23 : f32 to vector<2x32xf32>
      %71 = arith.addf %70, %69 : vector<2x32xf32>
      %72 = arith.divf %70, %71 : vector<2x32xf32>
      %73 = vector.extract_strided_slice %66 {offsets = [0, 32], sizes = [2, 32], strides = [1, 1]} : vector<2x128xf32> to vector<2x32xf32>
      %74 = arith.negf %73 : vector<2x32xf32>
      %75 = math.exp %74 : vector<2x32xf32>
      %cst_24 = arith.constant 1.000000e+00 : f32
      %76 = vector.broadcast %cst_24 : f32 to vector<2x32xf32>
      %77 = arith.addf %76, %75 : vector<2x32xf32>
      %78 = arith.divf %76, %77 : vector<2x32xf32>
      %79 = vector.extract_strided_slice %66 {offsets = [0, 64], sizes = [2, 32], strides = [1, 1]} : vector<2x128xf32> to vector<2x32xf32>
      %80 = math.tanh %79 : vector<2x32xf32>
      %81 = vector.extract_strided_slice %66 {offsets = [0, 96], sizes = [2, 32], strides = [1, 1]} : vector<2x128xf32> to vector<2x32xf32>
      %82 = arith.negf %81 : vector<2x32xf32>
      %83 = math.exp %82 : vector<2x32xf32>
      %cst_25 = arith.constant 1.000000e+00 : f32
      %84 = vector.broadcast %cst_25 : f32 to vector<2x32xf32>
      %85 = arith.addf %84, %83 : vector<2x32xf32>
      %86 = arith.divf %84, %85 : vector<2x32xf32>
      %87 = arith.mulf %78, %arg12 : vector<2x32xf32>
      %88 = arith.mulf %72, %80 : vector<2x32xf32>
      %89 = arith.addf %87, %88 : vector<2x32xf32>
      %90 = math.tanh %89 : vector<2x32xf32>
      %91 = arith.mulf %86, %90 : vector<2x32xf32>
      %cst_26 = arith.constant 0.000000e+00 : f32
      %92 = vector.broadcast %cst_26 : f32 to vector<2x1xf32>
      %93 = arith.cmpf one, %62, %92 : vector<2x1xf32>
      %94 = vector.shape_cast %93 : vector<2x1xi1> to vector<2x1xi1>
      %95 = vector.broadcast %94 : vector<2x1xi1> to vector<2x32xi1>
      %96 = arith.select %95, %91, %arg11 : vector<2x32xi1>, vector<2x32xf32>
      %97 = vector.shape_cast %93 : vector<2x1xi1> to vector<2x1xi1>
      %98 = vector.broadcast %97 : vector<2x1xi1> to vector<2x32xi1>
      %99 = arith.select %98, %89, %arg12 : vector<2x32xi1>, vector<2x32xf32>
      %cst_27 = arith.constant 0.000000e+00 : f32
      %100 = vector.shape_cast %93 : vector<2x1xi1> to vector<2x1xi1>
      %101 = vector.broadcast %100 : vector<2x1xi1> to vector<2x32xi1>
      %102 = vector.broadcast %cst_27 : f32 to vector<2x32xf32>
      %103 = arith.select %101, %91, %102 : vector<2x32xi1>, vector<2x32xf32>
      %104 = arith.index_cast %arg8 : i32 to index
      %c0_28 = arith.constant 0 : index
      %c0_29 = arith.constant 0 : index
      %105 = vector.load %arg7[%104, %c0_28, %c0_29] : memref<16x2x64xf32, #tpu.memory_space<vmem>>, vector<1x2x32xf32>
      %106 = vector.shape_cast %105 : vector<1x2x32xf32> to vector<2x32xf32>
      %107 = vector.shape_cast %58 : vector<2x32xf32> to vector<1x2x32xf32>
      tpu.vector_store %arg7[%104, %c0_28, %c0_29], %107 {strides = array<i32>} : memref<16x2x64xf32, #tpu.memory_space<vmem>>, vector<1x2x32xf32>,
      %108 = arith.index_cast %7 : i32 to index
      %c0_30 = arith.constant 0 : index
      %c32 = arith.constant 32 : index
      %109 = vector.load %arg7[%108, %c0_30, %c32] : memref<16x2x64xf32, #tpu.memory_space<vmem>>, vector<1x2x32xf32>
      %110 = vector.shape_cast %109 : vector<1x2x32xf32> to vector<2x32xf32>
      %111 = vector.shape_cast %103 : vector<2x32xf32> to vector<1x2x32xf32>
      tpu.vector_store %arg7[%108, %c0_30, %c32], %111 {strides = array<i32>} : memref<16x2x64xf32, #tpu.memory_space<vmem>>, vector<1x2x32xf32>,
      scf.yield %51, %54, %96, %99 : vector<2x32xf32>, vector<2x32xf32>, vector<2x32xf32>, vector<2x32xf32>
    }
    %c16_i32_7 = arith.constant 16 : i32
    return
  }
  func.func @transform_0(%arg0: i32) -> (i32, i32, i32) {
    %c0_i32 = arith.constant 0 : i32
    %c0_i32_0 = arith.constant 0 : i32
    %c0_i32_1 = arith.constant 0 : i32
    return %c0_i32, %arg0, %c0_i32_0 : i32, i32, i32
  }
  func.func @transform_1(%arg0: i32) -> (i32, i32, i32) {
    %c0_i32 = arith.constant 0 : i32
    %c0_i32_0 = arith.constant 0 : i32
    %c0_i32_1 = arith.constant 0 : i32
    return %c0_i32, %arg0, %c0_i32_0 : i32, i32, i32
  }
  func.func @transform_2(%arg0: i32) -> (i32, i32) {
    %c0_i32 = arith.constant 0 : i32
    %c0_i32_0 = arith.constant 0 : i32
    %c0_i32_1 = arith.constant 0 : i32
    return %c0_i32, %c0_i32_0 : i32, i32
  }
  func.func @transform_3(%arg0: i32) -> (i32, i32) {
    %c0_i32 = arith.constant 0 : i32
    %c0_i32_0 = arith.constant 0 : i32
    %c0_i32_1 = arith.constant 0 : i32
    return %c0_i32, %c0_i32_0 : i32, i32
  }
  func.func @transform_4(%arg0: i32) -> (i32, i32) {
    %c0_i32 = arith.constant 0 : i32
    %c0_i32_0 = arith.constant 0 : i32
    %c0_i32_1 = arith.constant 0 : i32
    return %c0_i32, %c0_i32_0 : i32, i32
  }
  func.func @transform_5(%arg0: i32) -> (i32, i32) {
    %c0_i32 = arith.constant 0 : i32
    %c0_i32_0 = arith.constant 0 : i32
    %c0_i32_1 = arith.constant 0 : i32
    return %c0_i32, %c0_i32_0 : i32, i32
  }
  func.func @transform_6(%arg0: i32) -> (i32, i32, i32) {
    %c0_i32 = arith.constant 0 : i32
    %c0_i32_0 = arith.constant 0 : i32
    %c0_i32_1 = arith.constant 0 : i32
    return %c0_i32, %arg0, %c0_i32_0 : i32, i32, i32
  }
}

module attributes {stable_mosaic.version = 11 : i64} {
  func.func @_matmul_kernel(%arg0: i32, %arg1: memref<16x32xf32, #tpu.memory_space<vmem>>, %arg2: memref<32x256xf32, #tpu.memory_space<vmem>>, %arg3: memref<16x256xf32, #tpu.memory_space<vmem>>) attributes {dimension_semantics = [#tpu.dimension_semantics<parallel>], iteration_bounds = array<i64: 1>, scalar_prefetch = 0 : i64, scratch_operands = 0 : i64, tpu.core_type = #tpu.core_type<tc>, window_params = [{transform_indices = @transform_0, window_bounds = array<i64: 16, 32>}, {pipeline_mode = #tpu.pipeline_mode<synchronous>, transform_indices = @transform_1, window_bounds = array<i64: 32, 256>}, {transform_indices = @transform_2, window_bounds = array<i64: 16, 256>}]} {
    %c0 = arith.constant 0 : index
    %c0_0 = arith.constant 0 : index
    %0 = vector.load %arg1[%c0, %c0_0] : memref<16x32xf32, #tpu.memory_space<vmem>>, vector<16x32xf32>
    %c0_1 = arith.constant 0 : index
    %c0_2 = arith.constant 0 : index
    %1 = vector.load %arg2[%c0_1, %c0_2] : memref<32x256xf32, #tpu.memory_space<vmem>>, vector<32x256xf32>
    %cst = arith.constant dense<0.000000e+00> : vector<16x256xf32>
    %2 = tpu.matmul %0, %1, %cst {dimension_numbers = #tpu.dot_dimension_numbers<[1], [0], [0], [1], [0, 0, 1, 1], [], []>} : vector<16x32xf32>, vector<32x256xf32>, vector<16x256xf32> -> vector<16x256xf32>
    %c0_3 = arith.constant 0 : index
    %c0_4 = arith.constant 0 : index
    %3 = vector.load %arg3[%c0_3, %c0_4] : memref<16x256xf32, #tpu.memory_space<vmem>>, vector<16x256xf32>
    tpu.vector_store %arg3[%c0_3, %c0_4], %2 {strides = array<i32>} : memref<16x256xf32, #tpu.memory_space<vmem>>, vector<16x256xf32>,
    return
  }
  func.func @transform_0(%arg0: i32) -> (i32, i32) {
    %c0_i32 = arith.constant 0 : i32
    %c0_i32_0 = arith.constant 0 : i32
    return %arg0, %c0_i32 : i32, i32
  }
  func.func @transform_1(%arg0: i32) -> (i32, i32) {
    %c0_i32 = arith.constant 0 : i32
    %c0_i32_0 = arith.constant 0 : i32
    %c0_i32_1 = arith.constant 0 : i32
    return %c0_i32, %c0_i32_0 : i32, i32
  }
  func.func @transform_2(%arg0: i32) -> (i32, i32) {
    %c0_i32 = arith.constant 0 : i32
    %c0_i32_0 = arith.constant 0 : i32
    return %arg0, %c0_i32 : i32, i32
  }
}

module attributes {stable_mosaic.version = 11 : i64} {
  func.func @bilstm_rec_kernel(%arg0: i32, %arg1: memref<8x2x256xf32, #tpu.memory_space<vmem>>, %arg2: memref<8x2x1xf32, #tpu.memory_space<vmem>>, %arg3: memref<32x128xf32, #tpu.memory_space<vmem>>, %arg4: memref<1x128xf32, #tpu.memory_space<vmem>>, %arg5: memref<32x128xf32, #tpu.memory_space<vmem>>, %arg6: memref<1x128xf32, #tpu.memory_space<vmem>>, %arg7: memref<8x2x64xf32, #tpu.memory_space<vmem>>) attributes {dimension_semantics = [#tpu.dimension_semantics<parallel>], iteration_bounds = array<i64: 1>, scalar_prefetch = 0 : i64, scratch_operands = 0 : i64, tpu.core_type = #tpu.core_type<tc>, window_params = [{transform_indices = @transform_0, window_bounds = array<i64: 8, 2, 256>}, {transform_indices = @transform_1, window_bounds = array<i64: 8, 2, 1>}, {pipeline_mode = #tpu.pipeline_mode<synchronous>, transform_indices = @transform_2, window_bounds = array<i64: 32, 128>}, {pipeline_mode = #tpu.pipeline_mode<synchronous>, transform_indices = @transform_3, window_bounds = array<i64: 1, 128>}, {pipeline_mode = #tpu.pipeline_mode<synchronous>, transform_indices = @transform_4, window_bounds = array<i64: 32, 128>}, {pipeline_mode = #tpu.pipeline_mode<synchronous>, transform_indices = @transform_5, window_bounds = array<i64: 1, 128>}, {transform_indices = @transform_6, window_bounds = array<i64: 8, 2, 64>}]} {
    %c0 = arith.constant 0 : index
    %c0_0 = arith.constant 0 : index
    %0 = vector.load %arg3[%c0, %c0_0] : memref<32x128xf32, #tpu.memory_space<vmem>>, vector<32x128xf32>
    %c0_1 = arith.constant 0 : index
    %c0_2 = arith.constant 0 : index
    %1 = vector.load %arg4[%c0_1, %c0_2] : memref<1x128xf32, #tpu.memory_space<vmem>>, vector<1x128xf32>
    %c0_3 = arith.constant 0 : index
    %c0_4 = arith.constant 0 : index
    %2 = vector.load %arg5[%c0_3, %c0_4] : memref<32x128xf32, #tpu.memory_space<vmem>>, vector<32x128xf32>
    %c0_5 = arith.constant 0 : index
    %c0_6 = arith.constant 0 : index
    %3 = vector.load %arg6[%c0_5, %c0_6] : memref<1x128xf32, #tpu.memory_space<vmem>>, vector<1x128xf32>
    %cst = arith.constant 0.000000e+00 : f32
    %4 = vector.broadcast %cst : f32 to vector<2x32xf32>
    %c0_i32 = arith.constant 0 : i32
    %c8_i32 = arith.constant 8 : i32
    %5 = arith.addi %c0_i32, %c8_i32 : i32
    %c1_i32 = arith.constant 1 : i32
    %6:4 = scf.for %arg8 = %c0_i32 to %5 step %c1_i32 iter_args(%arg9 = %4, %arg10 = %4, %arg11 = %4, %arg12 = %4) -> (vector<2x32xf32>, vector<2x32xf32>, vector<2x32xf32>, vector<2x32xf32>)  : i32 {
      %c7_i32 = arith.constant 7 : i32
      %7 = arith.subi %c7_i32, %arg8 : i32
      %8 = arith.index_cast %arg8 : i32 to index
      %c0_8 = arith.constant 0 : index
      %c0_9 = arith.constant 0 : index
      %9 = vector.load %arg1[%8, %c0_8, %c0_9] : memref<8x2x256xf32, #tpu.memory_space<vmem>>, vector<1x2x256xf32>
      %10 = vector.shape_cast %9 : vector<1x2x256xf32> to vector<2x256xf32>
      %11 = arith.index_cast %7 : i32 to index
      %c0_10 = arith.constant 0 : index
      %c0_11 = arith.constant 0 : index
      %12 = vector.load %arg1[%11, %c0_10, %c0_11] : memref<8x2x256xf32, #tpu.memory_space<vmem>>, vector<1x2x256xf32>
      %13 = vector.shape_cast %12 : vector<1x2x256xf32> to vector<2x256xf32>
      %14 = vector.extract_strided_slice %10 {offsets = [0, 0], sizes = [2, 128], strides = [1, 1]} : vector<2x256xf32> to vector<2x128xf32>
      %15 = arith.index_cast %arg8 : i32 to index
      %c0_12 = arith.constant 0 : index
      %c0_13 = arith.constant 0 : index
      %16 = vector.load %arg2[%15, %c0_12, %c0_13] : memref<8x2x1xf32, #tpu.memory_space<vmem>>, vector<1x2x1xf32>
      %17 = vector.shape_cast %16 : vector<1x2x1xf32> to vector<2x1xf32>
      %cst_14 = arith.constant dense<0.000000e+00> : vector<2x128xf32>
      %18 = tpu.matmul %arg9, %0, %cst_14 {dimension_numbers = #tpu.dot_dimension_numbers<[1], [0], [0], [1], [0, 0, 1, 1], [], []>} : vector<2x32xf32>, vector<32x128xf32>, vector<2x128xf32> -> vector<2x128xf32>
      %19 = arith.addf %14, %18 : vector<2x128xf32>
      %20 = vector.broadcast %1 : vector<1x128xf32> to vector<2x128xf32>
      %21 = arith.addf %19, %20 : vector<2x128xf32>
      %22 = vector.extract_strided_slice %21 {offsets = [0, 0], sizes = [2, 32], strides = [1, 1]} : vector<2x128xf32> to vector<2x32xf32>
      %23 = arith.negf %22 : vector<2x32xf32>
      %24 = math.exp %23 : vector<2x32xf32>
      %cst_15 = arith.constant 1.000000e+00 : f32
      %25 = vector.broadcast %cst_15 : f32 to vector<2x32xf32>
      %26 = arith.addf %25, %24 : vector<2x32xf32>
      %27 = arith.divf %25, %26 : vector<2x32xf32>
      %28 = vector.extract_strided_slice %21 {offsets = [0, 32], sizes = [2, 32], strides = [1, 1]} : vector<2x128xf32> to vector<2x32xf32>
      %29 = arith.negf %28 : vector<2x32xf32>
      %30 = math.exp %29 : vector<2x32xf32>
      %cst_16 = arith.constant 1.000000e+00 : f32
      %31 = vector.broadcast %cst_16 : f32 to vector<2x32xf32>
      %32 = arith.addf %31, %30 : vector<2x32xf32>
      %33 = arith.divf %31, %32 : vector<2x32xf32>
      %34 = vector.extract_strided_slice %21 {offsets = [0, 64], sizes = [2, 32], strides = [1, 1]} : vector<2x128xf32> to vector<2x32xf32>
      %35 = math.tanh %34 : vector<2x32xf32>
      %36 = vector.extract_strided_slice %21 {offsets = [0, 96], sizes = [2, 32], strides = [1, 1]} : vector<2x128xf32> to vector<2x32xf32>
      %37 = arith.negf %36 : vector<2x32xf32>
      %38 = math.exp %37 : vector<2x32xf32>
      %cst_17 = arith.constant 1.000000e+00 : f32
      %39 = vector.broadcast %cst_17 : f32 to vector<2x32xf32>
      %40 = arith.addf %39, %38 : vector<2x32xf32>
      %41 = arith.divf %39, %40 : vector<2x32xf32>
      %42 = arith.mulf %33, %arg10 : vector<2x32xf32>
      %43 = arith.mulf %27, %35 : vector<2x32xf32>
      %44 = arith.addf %42, %43 : vector<2x32xf32>
      %45 = math.tanh %44 : vector<2x32xf32>
      %46 = arith.mulf %41, %45 : vector<2x32xf32>
      %cst_18 = arith.constant 0.000000e+00 : f32
      %47 = vector.broadcast %cst_18 : f32 to vector<2x1xf32>
      %48 = arith.cmpf one, %17, %47 : vector<2x1xf32>
      %49 = vector.shape_cast %48 : vector<2x1xi1> to vector<2x1xi1>
      %50 = vector.broadcast %49 : vector<2x1xi1> to vector<2x32xi1>
      %51 = arith.select %50, %46, %arg9 : vector<2x32xi1>, vector<2x32xf32>
      %52 = vector.shape_cast %48 : vector<2x1xi1> to vector<2x1xi1>
      %53 = vector.broadcast %52 : vector<2x1xi1> to vector<2x32xi1>
      %54 = arith.select %53, %44, %arg10 : vector<2x32xi1>, vector<2x32xf32>
      %cst_19 = arith.constant 0.000000e+00 : f32
      %55 = vector.shape_cast %48 : vector<2x1xi1> to vector<2x1xi1>
      %56 = vector.broadcast %55 : vector<2x1xi1> to vector<2x32xi1>
      %57 = vector.broadcast %cst_19 : f32 to vector<2x32xf32>
      %58 = arith.select %56, %46, %57 : vector<2x32xi1>, vector<2x32xf32>
      %59 = vector.extract_strided_slice %13 {offsets = [0, 128], sizes = [2, 128], strides = [1, 1]} : vector<2x256xf32> to vector<2x128xf32>
      %60 = arith.index_cast %7 : i32 to index
      %c0_20 = arith.constant 0 : index
      %c0_21 = arith.constant 0 : index
      %61 = vector.load %arg2[%60, %c0_20, %c0_21] : memref<8x2x1xf32, #tpu.memory_space<vmem>>, vector<1x2x1xf32>
      %62 = vector.shape_cast %61 : vector<1x2x1xf32> to vector<2x1xf32>
      %cst_22 = arith.constant dense<0.000000e+00> : vector<2x128xf32>
      %63 = tpu.matmul %arg11, %2, %cst_22 {dimension_numbers = #tpu.dot_dimension_numbers<[1], [0], [0], [1], [0, 0, 1, 1], [], []>} : vector<2x32xf32>, vector<32x128xf32>, vector<2x128xf32> -> vector<2x128xf32>
      %64 = arith.addf %59, %63 : vector<2x128xf32>
      %65 = vector.broadcast %3 : vector<1x128xf32> to vector<2x128xf32>
      %66 = arith.addf %64, %65 : vector<2x128xf32>
      %67 = vector.extract_strided_slice %66 {offsets = [0, 0], sizes = [2, 32], strides = [1, 1]} : vector<2x128xf32> to vector<2x32xf32>
      %68 = arith.negf %67 : vector<2x32xf32>
      %69 = math.exp %68 : vector<2x32xf32>
      %cst_23 = arith.constant 1.000000e+00 : f32
      %70 = vector.broadcast %cst_23 : f32 to vector<2x32xf32>
      %71 = arith.addf %70, %69 : vector<2x32xf32>
      %72 = arith.divf %70, %71 : vector<2x32xf32>
      %73 = vector.extract_strided_slice %66 {offsets = [0, 32], sizes = [2, 32], strides = [1, 1]} : vector<2x128xf32> to vector<2x32xf32>
      %74 = arith.negf %73 : vector<2x32xf32>
      %75 = math.exp %74 : vector<2x32xf32>
      %cst_24 = arith.constant 1.000000e+00 : f32
      %76 = vector.broadcast %cst_24 : f32 to vector<2x32xf32>
      %77 = arith.addf %76, %75 : vector<2x32xf32>
      %78 = arith.divf %76, %77 : vector<2x32xf32>
      %79 = vector.extract_strided_slice %66 {offsets = [0, 64], sizes = [2, 32], strides = [1, 1]} : vector<2x128xf32> to vector<2x32xf32>
      %80 = math.tanh %79 : vector<2x32xf32>
      %81 = vector.extract_strided_slice %66 {offsets = [0, 96], sizes = [2, 32], strides = [1, 1]} : vector<2x128xf32> to vector<2x32xf32>
      %82 = arith.negf %81 : vector<2x32xf32>
      %83 = math.exp %82 : vector<2x32xf32>
      %cst_25 = arith.constant 1.000000e+00 : f32
      %84 = vector.broadcast %cst_25 : f32 to vector<2x32xf32>
      %85 = arith.addf %84, %83 : vector<2x32xf32>
      %86 = arith.divf %84, %85 : vector<2x32xf32>
      %87 = arith.mulf %78, %arg12 : vector<2x32xf32>
      %88 = arith.mulf %72, %80 : vector<2x32xf32>
      %89 = arith.addf %87, %88 : vector<2x32xf32>
      %90 = math.tanh %89 : vector<2x32xf32>
      %91 = arith.mulf %86, %90 : vector<2x32xf32>
      %cst_26 = arith.constant 0.000000e+00 : f32
      %92 = vector.broadcast %cst_26 : f32 to vector<2x1xf32>
      %93 = arith.cmpf one, %62, %92 : vector<2x1xf32>
      %94 = vector.shape_cast %93 : vector<2x1xi1> to vector<2x1xi1>
      %95 = vector.broadcast %94 : vector<2x1xi1> to vector<2x32xi1>
      %96 = arith.select %95, %91, %arg11 : vector<2x32xi1>, vector<2x32xf32>
      %97 = vector.shape_cast %93 : vector<2x1xi1> to vector<2x1xi1>
      %98 = vector.broadcast %97 : vector<2x1xi1> to vector<2x32xi1>
      %99 = arith.select %98, %89, %arg12 : vector<2x32xi1>, vector<2x32xf32>
      %cst_27 = arith.constant 0.000000e+00 : f32
      %100 = vector.shape_cast %93 : vector<2x1xi1> to vector<2x1xi1>
      %101 = vector.broadcast %100 : vector<2x1xi1> to vector<2x32xi1>
      %102 = vector.broadcast %cst_27 : f32 to vector<2x32xf32>
      %103 = arith.select %101, %91, %102 : vector<2x32xi1>, vector<2x32xf32>
      %104 = arith.index_cast %arg8 : i32 to index
      %c0_28 = arith.constant 0 : index
      %c0_29 = arith.constant 0 : index
      %105 = vector.load %arg7[%104, %c0_28, %c0_29] : memref<8x2x64xf32, #tpu.memory_space<vmem>>, vector<1x2x32xf32>
      %106 = vector.shape_cast %105 : vector<1x2x32xf32> to vector<2x32xf32>
      %107 = vector.shape_cast %58 : vector<2x32xf32> to vector<1x2x32xf32>
      tpu.vector_store %arg7[%104, %c0_28, %c0_29], %107 {strides = array<i32>} : memref<8x2x64xf32, #tpu.memory_space<vmem>>, vector<1x2x32xf32>,
      %108 = arith.index_cast %7 : i32 to index
      %c0_30 = arith.constant 0 : index
      %c32 = arith.constant 32 : index
      %109 = vector.load %arg7[%108, %c0_30, %c32] : memref<8x2x64xf32, #tpu.memory_space<vmem>>, vector<1x2x32xf32>
      %110 = vector.shape_cast %109 : vector<1x2x32xf32> to vector<2x32xf32>
      %111 = vector.shape_cast %103 : vector<2x32xf32> to vector<1x2x32xf32>
      tpu.vector_store %arg7[%108, %c0_30, %c32], %111 {strides = array<i32>} : memref<8x2x64xf32, #tpu.memory_space<vmem>>, vector<1x2x32xf32>,
      scf.yield %51, %54, %96, %99 : vector<2x32xf32>, vector<2x32xf32>, vector<2x32xf32>, vector<2x32xf32>
    }
    %c8_i32_7 = arith.constant 8 : i32
    return
  }
  func.func @transform_0(%arg0: i32) -> (i32, i32, i32) {
    %c0_i32 = arith.constant 0 : i32
    %c0_i32_0 = arith.constant 0 : i32
    %c0_i32_1 = arith.constant 0 : i32
    return %c0_i32, %arg0, %c0_i32_0 : i32, i32, i32
  }
  func.func @transform_1(%arg0: i32) -> (i32, i32, i32) {
    %c0_i32 = arith.constant 0 : i32
    %c0_i32_0 = arith.constant 0 : i32
    %c0_i32_1 = arith.constant 0 : i32
    return %c0_i32, %arg0, %c0_i32_0 : i32, i32, i32
  }
  func.func @transform_2(%arg0: i32) -> (i32, i32) {
    %c0_i32 = arith.constant 0 : i32
    %c0_i32_0 = arith.constant 0 : i32
    %c0_i32_1 = arith.constant 0 : i32
    return %c0_i32, %c0_i32_0 : i32, i32
  }
  func.func @transform_3(%arg0: i32) -> (i32, i32) {
    %c0_i32 = arith.constant 0 : i32
    %c0_i32_0 = arith.constant 0 : i32
    %c0_i32_1 = arith.constant 0 : i32
    return %c0_i32, %c0_i32_0 : i32, i32
  }
  func.func @transform_4(%arg0: i32) -> (i32, i32) {
    %c0_i32 = arith.constant 0 : i32
    %c0_i32_0 = arith.constant 0 : i32
    %c0_i32_1 = arith.constant 0 : i32
    return %c0_i32, %c0_i32_0 : i32, i32
  }
  func.func @transform_5(%arg0: i32) -> (i32, i32) {
    %c0_i32 = arith.constant 0 : i32
    %c0_i32_0 = arith.constant 0 : i32
    %c0_i32_1 = arith.constant 0 : i32
    return %c0_i32, %c0_i32_0 : i32, i32
  }
  func.func @transform_6(%arg0: i32) -> (i32, i32, i32) {
    %c0_i32 = arith.constant 0 : i32
    %c0_i32_0 = arith.constant 0 : i32
    %c0_i32_1 = arith.constant 0 : i32
    return %c0_i32, %arg0, %c0_i32_0 : i32, i32, i32
  }
}

module attributes {stable_mosaic.version = 11 : i64} {
  func.func @bidaf_att_kernel(%arg0: i32, %arg1: memref<1x16x64xf32, #tpu.memory_space<vmem>>, %arg2: memref<1x8x64xf32, #tpu.memory_space<vmem>>, %arg3: memref<1x16x1xf32, #tpu.memory_space<vmem>>, %arg4: memref<1x1x8xf32, #tpu.memory_space<vmem>>, %arg5: memref<1x64xf32, #tpu.memory_space<vmem>>, %arg6: memref<1x64xf32, #tpu.memory_space<vmem>>, %arg7: memref<1x64xf32, #tpu.memory_space<vmem>>, %arg8: memref<1x1xf32, #tpu.memory_space<smem>>, %arg9: memref<1x16x256xf32, #tpu.memory_space<vmem>>) attributes {dimension_semantics = [#tpu.dimension_semantics<parallel>], iteration_bounds = array<i64: 2>, scalar_prefetch = 0 : i64, scratch_operands = 0 : i64, tpu.core_type = #tpu.core_type<tc>, window_params = [{transform_indices = @transform_0, window_bounds = array<i64: 1, 16, 64>}, {transform_indices = @transform_1, window_bounds = array<i64: 1, 8, 64>}, {transform_indices = @transform_2, window_bounds = array<i64: 1, 16, 1>}, {transform_indices = @transform_3, window_bounds = array<i64: 1, 1, 8>}, {pipeline_mode = #tpu.pipeline_mode<synchronous>, transform_indices = @transform_4, window_bounds = array<i64: 1, 64>}, {pipeline_mode = #tpu.pipeline_mode<synchronous>, transform_indices = @transform_5, window_bounds = array<i64: 1, 64>}, {pipeline_mode = #tpu.pipeline_mode<synchronous>, transform_indices = @transform_6, window_bounds = array<i64: 1, 64>}, {transform_indices = @transform_7, window_bounds = array<i64: 1, 1>}, {transform_indices = @transform_8, window_bounds = array<i64: 1, 16, 256>}]} {
    %c0 = arith.constant 0 : index
    %c0_0 = arith.constant 0 : index
    %c0_1 = arith.constant 0 : index
    %0 = vector.load %arg1[%c0, %c0_0, %c0_1] : memref<1x16x64xf32, #tpu.memory_space<vmem>>, vector<1x16x64xf32>
    %1 = vector.shape_cast %0 : vector<1x16x64xf32> to vector<16x64xf32>
    %c0_2 = arith.constant 0 : index
    %c0_3 = arith.constant 0 : index
    %c0_4 = arith.constant 0 : index
    %2 = vector.load %arg2[%c0_2, %c0_3, %c0_4] : memref<1x8x64xf32, #tpu.memory_space<vmem>>, vector<1x8x64xf32>
    %3 = vector.shape_cast %2 : vector<1x8x64xf32> to vector<8x64xf32>
    %c0_5 = arith.constant 0 : index
    %c0_6 = arith.constant 0 : index
    %c0_7 = arith.constant 0 : index
    %4 = vector.load %arg3[%c0_5, %c0_6, %c0_7] : memref<1x16x1xf32, #tpu.memory_space<vmem>>, vector<1x16x1xf32>
    %5 = vector.shape_cast %4 : vector<1x16x1xf32> to vector<16x1xf32>
    %c0_8 = arith.constant 0 : index
    %c0_9 = arith.constant 0 : index
    %c0_10 = arith.constant 0 : index
    %6 = vector.load %arg4[%c0_8, %c0_9, %c0_10] : memref<1x1x8xf32, #tpu.memory_space<vmem>>, vector<1x1x8xf32>
    %7 = vector.shape_cast %6 : vector<1x1x8xf32> to vector<1x8xf32>
    %c0_11 = arith.constant 0 : index
    %c0_12 = arith.constant 0 : index
    %8 = memref.load %arg8[%c0_11, %c0_12] : memref<1x1xf32, #tpu.memory_space<smem>>
    %c0_13 = arith.constant 0 : index
    %c0_14 = arith.constant 0 : index
    %9 = vector.load %arg5[%c0_13, %c0_14] : memref<1x64xf32, #tpu.memory_space<vmem>>, vector<1x64xf32>
    %c0_15 = arith.constant 0 : index
    %c0_16 = arith.constant 0 : index
    %10 = vector.load %arg6[%c0_15, %c0_16] : memref<1x64xf32, #tpu.memory_space<vmem>>, vector<1x64xf32>
    %c0_17 = arith.constant 0 : index
    %c0_18 = arith.constant 0 : index
    %11 = vector.load %arg7[%c0_17, %c0_18] : memref<1x64xf32, #tpu.memory_space<vmem>>, vector<1x64xf32>
    %cst = arith.constant dense<0.000000e+00> : vector<16x1xf32>
    %12 = tpu.matmul %1, %9, %cst {dimension_numbers = #tpu.dot_dimension_numbers<[1], [1], [0], [0], [0, 0, 1, 0], [], []>} : vector<16x64xf32>, vector<1x64xf32>, vector<16x1xf32> -> vector<16x1xf32>
    %cst_19 = arith.constant dense<0.000000e+00> : vector<1x8xf32>
    %13 = tpu.matmul %10, %3, %cst_19 {dimension_numbers = #tpu.dot_dimension_numbers<[1], [1], [0], [0], [0, 0, 1, 0], [], []>} : vector<1x64xf32>, vector<8x64xf32>, vector<1x8xf32> -> vector<1x8xf32>
    %14 = vector.broadcast %11 : vector<1x64xf32> to vector<16x64xf32>
    %15 = arith.mulf %1, %14 : vector<16x64xf32>
    %cst_20 = arith.constant dense<0.000000e+00> : vector<16x8xf32>
    %16 = tpu.matmul %15, %3, %cst_20 {dimension_numbers = #tpu.dot_dimension_numbers<[1], [1], [0], [0], [0, 0, 1, 0], [], []>} : vector<16x64xf32>, vector<8x64xf32>, vector<16x8xf32> -> vector<16x8xf32>
    %17 = vector.broadcast %12 : vector<16x1xf32> to vector<16x8xf32>
    %18 = vector.broadcast %13 : vector<1x8xf32> to vector<16x8xf32>
    %19 = arith.addf %17, %18 : vector<16x8xf32>
    %20 = arith.addf %19, %16 : vector<16x8xf32>
    %21 = vector.broadcast %8 : f32 to vector<16x8xf32>
    %22 = arith.addf %20, %21 : vector<16x8xf32>
    %cst_21 = arith.constant 0.000000e+00 : f32
    %23 = vector.broadcast %cst_21 : f32 to vector<1x8xf32>
    %24 = arith.cmpf one, %7, %23 : vector<1x8xf32>
    %cst_22 = arith.constant -1.000000e+30 : f32
    %25 = vector.shape_cast %24 : vector<1x8xi1> to vector<1x8xi1>
    %26 = vector.broadcast %25 : vector<1x8xi1> to vector<16x8xi1>
    %27 = vector.broadcast %cst_22 : f32 to vector<16x8xf32>
    %28 = arith.select %26, %22, %27 : vector<16x8xi1>, vector<16x8xf32>
    %cst_23 = arith.constant dense<0xFF800000> : vector<16xf32>
    %29 = vector.multi_reduction <maximumf>, %28, %cst_23 [1] : vector<16x8xf32> to vector<16xf32>
    %30 = vector.shape_cast %29 : vector<16xf32> to vector<16x1xf32>
    %31 = vector.broadcast %30 : vector<16x1xf32> to vector<16x8xf32>
    %32 = arith.subf %28, %31 : vector<16x8xf32>
    %33 = math.exp %32 : vector<16x8xf32>
    %cst_24 = arith.constant dense<0.000000e+00> : vector<16xf32>
    %34 = vector.multi_reduction <add>, %33, %cst_24 [1] : vector<16x8xf32> to vector<16xf32>
    %35 = vector.shape_cast %34 : vector<16xf32> to vector<16x1xf32>
    %36 = tpu.reciprocal %35 {approx = true} : vector<16x1xf32> -> vector<16x1xf32>
    %37 = vector.broadcast %36 : vector<16x1xf32> to vector<16x8xf32>
    %38 = arith.mulf %33, %37 : vector<16x8xf32>
    %cst_25 = arith.constant 0.000000e+00 : f32
    %39 = vector.broadcast %cst_25 : f32 to vector<16x1xf32>
    %40 = arith.cmpf one, %5, %39 : vector<16x1xf32>
    %cst_26 = arith.constant -1.000000e+30 : f32
    %41 = vector.shape_cast %40 : vector<16x1xi1> to vector<16x1xi1>
    %42 = vector.broadcast %41 : vector<16x1xi1> to vector<16x8xi1>
    %43 = vector.broadcast %cst_26 : f32 to vector<16x8xf32>
    %44 = arith.select %42, %22, %43 : vector<16x8xi1>, vector<16x8xf32>
    %cst_27 = arith.constant dense<0xFF800000> : vector<8xf32>
    %45 = vector.multi_reduction <maximumf>, %44, %cst_27 [0] : vector<16x8xf32> to vector<8xf32>
    %46 = vector.shape_cast %45 : vector<8xf32> to vector<1x8xf32>
    %47 = vector.broadcast %46 : vector<1x8xf32> to vector<16x8xf32>
    %48 = arith.subf %44, %47 : vector<16x8xf32>
    %49 = math.exp %48 : vector<16x8xf32>
    %cst_28 = arith.constant dense<0.000000e+00> : vector<8xf32>
    %50 = vector.multi_reduction <add>, %49, %cst_28 [0] : vector<16x8xf32> to vector<8xf32>
    %51 = vector.shape_cast %50 : vector<8xf32> to vector<1x8xf32>
    %52 = tpu.reciprocal %51 {approx = true} : vector<1x8xf32> -> vector<1x8xf32>
    %53 = vector.broadcast %52 : vector<1x8xf32> to vector<16x8xf32>
    %54 = arith.mulf %49, %53 : vector<16x8xf32>
    %cst_29 = arith.constant dense<0.000000e+00> : vector<16x64xf32>
    %55 = tpu.matmul %38, %3, %cst_29 {dimension_numbers = #tpu.dot_dimension_numbers<[1], [0], [0], [1], [0, 0, 1, 1], [], []>} : vector<16x8xf32>, vector<8x64xf32>, vector<16x64xf32> -> vector<16x64xf32>
    %cst_30 = arith.constant dense<0.000000e+00> : vector<8x64xf32>
    %56 = tpu.matmul %54, %1, %cst_30 {dimension_numbers = #tpu.dot_dimension_numbers<[0], [0], [1], [1], [0, 1, 1, 1], [], []>} : vector<16x8xf32>, vector<16x64xf32>, vector<8x64xf32> -> vector<8x64xf32>
    %cst_31 = arith.constant dense<0.000000e+00> : vector<16x64xf32>
    %57 = tpu.matmul %38, %56, %cst_31 {dimension_numbers = #tpu.dot_dimension_numbers<[1], [0], [0], [1], [0, 0, 1, 1], [], []>} : vector<16x8xf32>, vector<8x64xf32>, vector<16x64xf32> -> vector<16x64xf32>
    %58 = arith.mulf %1, %55 : vector<16x64xf32>
    %59 = arith.mulf %1, %57 : vector<16x64xf32>
    %60 = tpu.concatenate %1, %55, %58, %59 in 1 : vector<16x64xf32>, vector<16x64xf32>, vector<16x64xf32>, vector<16x64xf32> -> vector<16x256xf32>
    %c0_32 = arith.constant 0 : index
    %c0_33 = arith.constant 0 : index
    %c0_34 = arith.constant 0 : index
    %61 = vector.load %arg9[%c0_32, %c0_33, %c0_34] : memref<1x16x256xf32, #tpu.memory_space<vmem>>, vector<1x16x256xf32>
    %62 = vector.shape_cast %61 : vector<1x16x256xf32> to vector<16x256xf32>
    %63 = vector.shape_cast %60 : vector<16x256xf32> to vector<1x16x256xf32>
    tpu.vector_store %arg9[%c0_32, %c0_33, %c0_34], %63 {strides = array<i32>} : memref<1x16x256xf32, #tpu.memory_space<vmem>>, vector<1x16x256xf32>,
    return
  }
  func.func @transform_0(%arg0: i32) -> (i32, i32, i32) {
    %c0_i32 = arith.constant 0 : i32
    %c0_i32_0 = arith.constant 0 : i32
    %c0_i32_1 = arith.constant 0 : i32
    return %arg0, %c0_i32, %c0_i32_0 : i32, i32, i32
  }
  func.func @transform_1(%arg0: i32) -> (i32, i32, i32) {
    %c0_i32 = arith.constant 0 : i32
    %c0_i32_0 = arith.constant 0 : i32
    %c0_i32_1 = arith.constant 0 : i32
    return %arg0, %c0_i32, %c0_i32_0 : i32, i32, i32
  }
  func.func @transform_2(%arg0: i32) -> (i32, i32, i32) {
    %c0_i32 = arith.constant 0 : i32
    %c0_i32_0 = arith.constant 0 : i32
    %c0_i32_1 = arith.constant 0 : i32
    return %arg0, %c0_i32, %c0_i32_0 : i32, i32, i32
  }
  func.func @transform_3(%arg0: i32) -> (i32, i32, i32) {
    %c0_i32 = arith.constant 0 : i32
    %c0_i32_0 = arith.constant 0 : i32
    %c0_i32_1 = arith.constant 0 : i32
    return %arg0, %c0_i32, %c0_i32_0 : i32, i32, i32
  }
  func.func @transform_4(%arg0: i32) -> (i32, i32) {
    %c0_i32 = arith.constant 0 : i32
    %c0_i32_0 = arith.constant 0 : i32
    %c0_i32_1 = arith.constant 0 : i32
    return %c0_i32, %c0_i32_0 : i32, i32
  }
  func.func @transform_5(%arg0: i32) -> (i32, i32) {
    %c0_i32 = arith.constant 0 : i32
    %c0_i32_0 = arith.constant 0 : i32
    %c0_i32_1 = arith.constant 0 : i32
    return %c0_i32, %c0_i32_0 : i32, i32
  }
  func.func @transform_6(%arg0: i32) -> (i32, i32) {
    %c0_i32 = arith.constant 0 : i32
    %c0_i32_0 = arith.constant 0 : i32
    %c0_i32_1 = arith.constant 0 : i32
    return %c0_i32, %c0_i32_0 : i32, i32
  }
  func.func @transform_7(%arg0: i32) -> (i32, i32) {
    %c0_i32 = arith.constant 0 : i32
    %c0_i32_0 = arith.constant 0 : i32
    %c0_i32_1 = arith.constant 0 : i32
    return %c0_i32, %c0_i32_0 : i32, i32
  }
  func.func @transform_8(%arg0: i32) -> (i32, i32, i32) {
    %c0_i32 = arith.constant 0 : i32
    %c0_i32_0 = arith.constant 0 : i32
    %c0_i32_1 = arith.constant 0 : i32
    return %arg0, %c0_i32, %c0_i32_0 : i32, i32, i32
  }
}

module attributes {stable_mosaic.version = 11 : i64} {
  func.func @_matmul_kernel(%arg0: i32, %arg1: memref<32x256xf32, #tpu.memory_space<vmem>>, %arg2: memref<256x256xf32, #tpu.memory_space<vmem>>, %arg3: memref<32x256xf32, #tpu.memory_space<vmem>>) attributes {dimension_semantics = [#tpu.dimension_semantics<parallel>], iteration_bounds = array<i64: 1>, scalar_prefetch = 0 : i64, scratch_operands = 0 : i64, tpu.core_type = #tpu.core_type<tc>, window_params = [{transform_indices = @transform_0, window_bounds = array<i64: 32, 256>}, {pipeline_mode = #tpu.pipeline_mode<synchronous>, transform_indices = @transform_1, window_bounds = array<i64: 256, 256>}, {transform_indices = @transform_2, window_bounds = array<i64: 32, 256>}]} {
    %c0 = arith.constant 0 : index
    %c0_0 = arith.constant 0 : index
    %0 = vector.load %arg1[%c0, %c0_0] : memref<32x256xf32, #tpu.memory_space<vmem>>, vector<32x256xf32>
    %c0_1 = arith.constant 0 : index
    %c0_2 = arith.constant 0 : index
    %1 = vector.load %arg2[%c0_1, %c0_2] : memref<256x256xf32, #tpu.memory_space<vmem>>, vector<256x256xf32>
    %cst = arith.constant dense<0.000000e+00> : vector<32x256xf32>
    %2 = tpu.matmul %0, %1, %cst {dimension_numbers = #tpu.dot_dimension_numbers<[1], [0], [0], [1], [0, 0, 1, 1], [], []>} : vector<32x256xf32>, vector<256x256xf32>, vector<32x256xf32> -> vector<32x256xf32>
    %c0_3 = arith.constant 0 : index
    %c0_4 = arith.constant 0 : index
    %3 = vector.load %arg3[%c0_3, %c0_4] : memref<32x256xf32, #tpu.memory_space<vmem>>, vector<32x256xf32>
    tpu.vector_store %arg3[%c0_3, %c0_4], %2 {strides = array<i32>} : memref<32x256xf32, #tpu.memory_space<vmem>>, vector<32x256xf32>,
    return
  }
  func.func @transform_0(%arg0: i32) -> (i32, i32) {
    %c0_i32 = arith.constant 0 : i32
    %c0_i32_0 = arith.constant 0 : i32
    return %arg0, %c0_i32 : i32, i32
  }
  func.func @transform_1(%arg0: i32) -> (i32, i32) {
    %c0_i32 = arith.constant 0 : i32
    %c0_i32_0 = arith.constant 0 : i32
    %c0_i32_1 = arith.constant 0 : i32
    return %c0_i32, %c0_i32_0 : i32, i32
  }
  func.func @transform_2(%arg0: i32) -> (i32, i32) {
    %c0_i32 = arith.constant 0 : i32
    %c0_i32_0 = arith.constant 0 : i32
    return %arg0, %c0_i32 : i32, i32
  }
}

module attributes {stable_mosaic.version = 11 : i64} {
  func.func @_matmul_kernel(%arg0: i32, %arg1: memref<32x64xf32, #tpu.memory_space<vmem>>, %arg2: memref<64x256xf32, #tpu.memory_space<vmem>>, %arg3: memref<32x256xf32, #tpu.memory_space<vmem>>) attributes {dimension_semantics = [#tpu.dimension_semantics<parallel>], iteration_bounds = array<i64: 1>, scalar_prefetch = 0 : i64, scratch_operands = 0 : i64, tpu.core_type = #tpu.core_type<tc>, window_params = [{transform_indices = @transform_0, window_bounds = array<i64: 32, 64>}, {pipeline_mode = #tpu.pipeline_mode<synchronous>, transform_indices = @transform_1, window_bounds = array<i64: 64, 256>}, {transform_indices = @transform_2, window_bounds = array<i64: 32, 256>}]} {
    %c0 = arith.constant 0 : index
    %c0_0 = arith.constant 0 : index
    %0 = vector.load %arg1[%c0, %c0_0] : memref<32x64xf32, #tpu.memory_space<vmem>>, vector<32x64xf32>
    %c0_1 = arith.constant 0 : index
    %c0_2 = arith.constant 0 : index
    %1 = vector.load %arg2[%c0_1, %c0_2] : memref<64x256xf32, #tpu.memory_space<vmem>>, vector<64x256xf32>
    %cst = arith.constant dense<0.000000e+00> : vector<32x256xf32>
    %2 = tpu.matmul %0, %1, %cst {dimension_numbers = #tpu.dot_dimension_numbers<[1], [0], [0], [1], [0, 0, 1, 1], [], []>} : vector<32x64xf32>, vector<64x256xf32>, vector<32x256xf32> -> vector<32x256xf32>
    %c0_3 = arith.constant 0 : index
    %c0_4 = arith.constant 0 : index
    %3 = vector.load %arg3[%c0_3, %c0_4] : memref<32x256xf32, #tpu.memory_space<vmem>>, vector<32x256xf32>
    tpu.vector_store %arg3[%c0_3, %c0_4], %2 {strides = array<i32>} : memref<32x256xf32, #tpu.memory_space<vmem>>, vector<32x256xf32>,
    return
  }
  func.func @transform_0(%arg0: i32) -> (i32, i32) {
    %c0_i32 = arith.constant 0 : i32
    %c0_i32_0 = arith.constant 0 : i32
    return %arg0, %c0_i32 : i32, i32
  }
  func.func @transform_1(%arg0: i32) -> (i32, i32) {
    %c0_i32 = arith.constant 0 : i32
    %c0_i32_0 = arith.constant 0 : i32
    %c0_i32_1 = arith.constant 0 : i32
    return %c0_i32, %c0_i32_0 : i32, i32
  }
  func.func @transform_2(%arg0: i32) -> (i32, i32) {
    %c0_i32 = arith.constant 0 : i32
    %c0_i32_0 = arith.constant 0 : i32
    return %arg0, %c0_i32 : i32, i32
  }
}

module attributes {stable_mosaic.version = 11 : i64} {
  func.func @output_kernel(%arg0: i32, %arg1: memref<1x16x256xf32, #tpu.memory_space<vmem>>, %arg2: memref<1x16x64xf32, #tpu.memory_space<vmem>>, %arg3: memref<1x16x64xf32, #tpu.memory_space<vmem>>, %arg4: memref<1x1x16xf32, #tpu.memory_space<vmem>>, %arg5: memref<1x256xf32, #tpu.memory_space<vmem>>, %arg6: memref<1x64xf32, #tpu.memory_space<vmem>>, %arg7: memref<1x256xf32, #tpu.memory_space<vmem>>, %arg8: memref<1x64xf32, #tpu.memory_space<vmem>>, %arg9: memref<4xf32, #tpu.memory_space<smem>>, %arg10: memref<1x1x16xf32, #tpu.memory_space<vmem>>, %arg11: memref<1x1x16xf32, #tpu.memory_space<vmem>>) attributes {dimension_semantics = [#tpu.dimension_semantics<parallel>], iteration_bounds = array<i64: 2>, scalar_prefetch = 0 : i64, scratch_operands = 0 : i64, tpu.core_type = #tpu.core_type<tc>, window_params = [{transform_indices = @transform_0, window_bounds = array<i64: 1, 16, 256>}, {transform_indices = @transform_1, window_bounds = array<i64: 1, 16, 64>}, {transform_indices = @transform_2, window_bounds = array<i64: 1, 16, 64>}, {transform_indices = @transform_3, window_bounds = array<i64: 1, 1, 16>}, {pipeline_mode = #tpu.pipeline_mode<synchronous>, transform_indices = @transform_4, window_bounds = array<i64: 1, 256>}, {pipeline_mode = #tpu.pipeline_mode<synchronous>, transform_indices = @transform_5, window_bounds = array<i64: 1, 64>}, {pipeline_mode = #tpu.pipeline_mode<synchronous>, transform_indices = @transform_6, window_bounds = array<i64: 1, 256>}, {pipeline_mode = #tpu.pipeline_mode<synchronous>, transform_indices = @transform_7, window_bounds = array<i64: 1, 64>}, {transform_indices = @transform_8, window_bounds = array<i64: 4>}, {transform_indices = @transform_9, window_bounds = array<i64: 1, 1, 16>}, {transform_indices = @transform_10, window_bounds = array<i64: 1, 1, 16>}]} {
    %c0 = arith.constant 0 : index
    %c0_0 = arith.constant 0 : index
    %c0_1 = arith.constant 0 : index
    %0 = vector.load %arg1[%c0, %c0_0, %c0_1] : memref<1x16x256xf32, #tpu.memory_space<vmem>>, vector<1x16x256xf32>
    %1 = vector.shape_cast %0 : vector<1x16x256xf32> to vector<16x256xf32>
    %c0_2 = arith.constant 0 : index
    %c0_3 = arith.constant 0 : index
    %c0_4 = arith.constant 0 : index
    %2 = vector.load %arg2[%c0_2, %c0_3, %c0_4] : memref<1x16x64xf32, #tpu.memory_space<vmem>>, vector<1x16x64xf32>
    %3 = vector.shape_cast %2 : vector<1x16x64xf32> to vector<16x64xf32>
    %c0_5 = arith.constant 0 : index
    %c0_6 = arith.constant 0 : index
    %c0_7 = arith.constant 0 : index
    %4 = vector.load %arg3[%c0_5, %c0_6, %c0_7] : memref<1x16x64xf32, #tpu.memory_space<vmem>>, vector<1x16x64xf32>
    %5 = vector.shape_cast %4 : vector<1x16x64xf32> to vector<16x64xf32>
    %c0_8 = arith.constant 0 : index
    %c0_9 = arith.constant 0 : index
    %c0_10 = arith.constant 0 : index
    %6 = vector.load %arg4[%c0_8, %c0_9, %c0_10] : memref<1x1x16xf32, #tpu.memory_space<vmem>>, vector<1x1x16xf32>
    %7 = vector.shape_cast %6 : vector<1x1x16xf32> to vector<1x16xf32>
    %c0_11 = arith.constant 0 : index
    %c0_12 = arith.constant 0 : index
    %8 = vector.load %arg5[%c0_11, %c0_12] : memref<1x256xf32, #tpu.memory_space<vmem>>, vector<1x256xf32>
    %cst = arith.constant dense<0.000000e+00> : vector<1x16xf32>
    %9 = tpu.matmul %8, %1, %cst {dimension_numbers = #tpu.dot_dimension_numbers<[1], [1], [0], [0], [0, 0, 1, 0], [], []>} : vector<1x256xf32>, vector<16x256xf32>, vector<1x16xf32> -> vector<1x16xf32>
    %c0_13 = arith.constant 0 : index
    %c0_14 = arith.constant 0 : index
    %10 = vector.load %arg6[%c0_13, %c0_14] : memref<1x64xf32, #tpu.memory_space<vmem>>, vector<1x64xf32>
    %cst_15 = arith.constant dense<0.000000e+00> : vector<1x16xf32>
    %11 = tpu.matmul %10, %3, %cst_15 {dimension_numbers = #tpu.dot_dimension_numbers<[1], [1], [0], [0], [0, 0, 1, 0], [], []>} : vector<1x64xf32>, vector<16x64xf32>, vector<1x16xf32> -> vector<1x16xf32>
    %12 = arith.addf %9, %11 : vector<1x16xf32>
    %c0_16 = arith.constant 0 : index
    %13 = memref.load %arg9[%c0_16] : memref<4xf32, #tpu.memory_space<smem>>
    %c1 = arith.constant 1 : index
    %14 = memref.load %arg9[%c1] : memref<4xf32, #tpu.memory_space<smem>>
    %15 = arith.addf %13, %14 : f32
    %16 = vector.broadcast %15 : f32 to vector<1x16xf32>
    %17 = arith.addf %12, %16 : vector<1x16xf32>
    %c0_17 = arith.constant 0 : index
    %c0_18 = arith.constant 0 : index
    %18 = vector.load %arg7[%c0_17, %c0_18] : memref<1x256xf32, #tpu.memory_space<vmem>>, vector<1x256xf32>
    %cst_19 = arith.constant dense<0.000000e+00> : vector<1x16xf32>
    %19 = tpu.matmul %18, %1, %cst_19 {dimension_numbers = #tpu.dot_dimension_numbers<[1], [1], [0], [0], [0, 0, 1, 0], [], []>} : vector<1x256xf32>, vector<16x256xf32>, vector<1x16xf32> -> vector<1x16xf32>
    %c0_20 = arith.constant 0 : index
    %c0_21 = arith.constant 0 : index
    %20 = vector.load %arg8[%c0_20, %c0_21] : memref<1x64xf32, #tpu.memory_space<vmem>>, vector<1x64xf32>
    %cst_22 = arith.constant dense<0.000000e+00> : vector<1x16xf32>
    %21 = tpu.matmul %20, %5, %cst_22 {dimension_numbers = #tpu.dot_dimension_numbers<[1], [1], [0], [0], [0, 0, 1, 0], [], []>} : vector<1x64xf32>, vector<16x64xf32>, vector<1x16xf32> -> vector<1x16xf32>
    %22 = arith.addf %19, %21 : vector<1x16xf32>
    %c2 = arith.constant 2 : index
    %23 = memref.load %arg9[%c2] : memref<4xf32, #tpu.memory_space<smem>>
    %c3 = arith.constant 3 : index
    %24 = memref.load %arg9[%c3] : memref<4xf32, #tpu.memory_space<smem>>
    %25 = arith.addf %23, %24 : f32
    %26 = vector.broadcast %25 : f32 to vector<1x16xf32>
    %27 = arith.addf %22, %26 : vector<1x16xf32>
    %cst_23 = arith.constant 0.000000e+00 : f32
    %28 = vector.broadcast %cst_23 : f32 to vector<1x16xf32>
    %29 = arith.cmpf one, %7, %28 : vector<1x16xf32>
    %cst_24 = arith.constant -1.000000e+30 : f32
    %30 = vector.broadcast %cst_24 : f32 to vector<1x16xf32>
    %31 = arith.select %29, %17, %30 : vector<1x16xi1>, vector<1x16xf32>
    %cst_25 = arith.constant dense<0xFF800000> : vector<1xf32>
    %32 = vector.multi_reduction <maximumf>, %31, %cst_25 [1] : vector<1x16xf32> to vector<1xf32>
    %33 = vector.shape_cast %32 : vector<1xf32> to vector<1x1xf32>
    %34 = vector.broadcast %33 : vector<1x1xf32> to vector<1x16xf32>
    %35 = arith.subf %31, %34 : vector<1x16xf32>
    %36 = math.exp %35 : vector<1x16xf32>
    %cst_26 = arith.constant dense<0.000000e+00> : vector<1xf32>
    %37 = vector.multi_reduction <add>, %36, %cst_26 [1] : vector<1x16xf32> to vector<1xf32>
    %38 = vector.shape_cast %37 : vector<1xf32> to vector<1x1xf32>
    %39 = math.log %38 : vector<1x1xf32>
    %40 = vector.broadcast %39 : vector<1x1xf32> to vector<1x16xf32>
    %41 = arith.subf %35, %40 : vector<1x16xf32>
    %c0_27 = arith.constant 0 : index
    %c0_28 = arith.constant 0 : index
    %c0_29 = arith.constant 0 : index
    %42 = vector.load %arg10[%c0_27, %c0_28, %c0_29] : memref<1x1x16xf32, #tpu.memory_space<vmem>>, vector<1x1x16xf32>
    %43 = vector.shape_cast %42 : vector<1x1x16xf32> to vector<1x16xf32>
    %44 = vector.shape_cast %41 : vector<1x16xf32> to vector<1x1x16xf32>
    tpu.vector_store %arg10[%c0_27, %c0_28, %c0_29], %44 {strides = array<i32>} : memref<1x1x16xf32, #tpu.memory_space<vmem>>, vector<1x1x16xf32>,
    %cst_30 = arith.constant 0.000000e+00 : f32
    %45 = vector.broadcast %cst_30 : f32 to vector<1x16xf32>
    %46 = arith.cmpf one, %7, %45 : vector<1x16xf32>
    %cst_31 = arith.constant -1.000000e+30 : f32
    %47 = vector.broadcast %cst_31 : f32 to vector<1x16xf32>
    %48 = arith.select %46, %27, %47 : vector<1x16xi1>, vector<1x16xf32>
    %cst_32 = arith.constant dense<0xFF800000> : vector<1xf32>
    %49 = vector.multi_reduction <maximumf>, %48, %cst_32 [1] : vector<1x16xf32> to vector<1xf32>
    %50 = vector.shape_cast %49 : vector<1xf32> to vector<1x1xf32>
    %51 = vector.broadcast %50 : vector<1x1xf32> to vector<1x16xf32>
    %52 = arith.subf %48, %51 : vector<1x16xf32>
    %53 = math.exp %52 : vector<1x16xf32>
    %cst_33 = arith.constant dense<0.000000e+00> : vector<1xf32>
    %54 = vector.multi_reduction <add>, %53, %cst_33 [1] : vector<1x16xf32> to vector<1xf32>
    %55 = vector.shape_cast %54 : vector<1xf32> to vector<1x1xf32>
    %56 = math.log %55 : vector<1x1xf32>
    %57 = vector.broadcast %56 : vector<1x1xf32> to vector<1x16xf32>
    %58 = arith.subf %52, %57 : vector<1x16xf32>
    %c0_34 = arith.constant 0 : index
    %c0_35 = arith.constant 0 : index
    %c0_36 = arith.constant 0 : index
    %59 = vector.load %arg11[%c0_34, %c0_35, %c0_36] : memref<1x1x16xf32, #tpu.memory_space<vmem>>, vector<1x1x16xf32>
    %60 = vector.shape_cast %59 : vector<1x1x16xf32> to vector<1x16xf32>
    %61 = vector.shape_cast %58 : vector<1x16xf32> to vector<1x1x16xf32>
    tpu.vector_store %arg11[%c0_34, %c0_35, %c0_36], %61 {strides = array<i32>} : memref<1x1x16xf32, #tpu.memory_space<vmem>>, vector<1x1x16xf32>,
    return
  }
  func.func @transform_0(%arg0: i32) -> (i32, i32, i32) {
    %c0_i32 = arith.constant 0 : i32
    %c0_i32_0 = arith.constant 0 : i32
    %c0_i32_1 = arith.constant 0 : i32
    return %arg0, %c0_i32, %c0_i32_0 : i32, i32, i32
  }
  func.func @transform_1(%arg0: i32) -> (i32, i32, i32) {
    %c0_i32 = arith.constant 0 : i32
    %c0_i32_0 = arith.constant 0 : i32
    %c0_i32_1 = arith.constant 0 : i32
    return %arg0, %c0_i32, %c0_i32_0 : i32, i32, i32
  }
  func.func @transform_2(%arg0: i32) -> (i32, i32, i32) {
    %c0_i32 = arith.constant 0 : i32
    %c0_i32_0 = arith.constant 0 : i32
    %c0_i32_1 = arith.constant 0 : i32
    return %arg0, %c0_i32, %c0_i32_0 : i32, i32, i32
  }
  func.func @transform_3(%arg0: i32) -> (i32, i32, i32) {
    %c0_i32 = arith.constant 0 : i32
    %c0_i32_0 = arith.constant 0 : i32
    %c0_i32_1 = arith.constant 0 : i32
    return %arg0, %c0_i32, %c0_i32_0 : i32, i32, i32
  }
  func.func @transform_4(%arg0: i32) -> (i32, i32) {
    %c0_i32 = arith.constant 0 : i32
    %c0_i32_0 = arith.constant 0 : i32
    %c0_i32_1 = arith.constant 0 : i32
    return %c0_i32, %c0_i32_0 : i32, i32
  }
  func.func @transform_5(%arg0: i32) -> (i32, i32) {
    %c0_i32 = arith.constant 0 : i32
    %c0_i32_0 = arith.constant 0 : i32
    %c0_i32_1 = arith.constant 0 : i32
    return %c0_i32, %c0_i32_0 : i32, i32
  }
  func.func @transform_6(%arg0: i32) -> (i32, i32) {
    %c0_i32 = arith.constant 0 : i32
    %c0_i32_0 = arith.constant 0 : i32
    %c0_i32_1 = arith.constant 0 : i32
    return %c0_i32, %c0_i32_0 : i32, i32
  }
  func.func @transform_7(%arg0: i32) -> (i32, i32) {
    %c0_i32 = arith.constant 0 : i32
    %c0_i32_0 = arith.constant 0 : i32
    %c0_i32_1 = arith.constant 0 : i32
    return %c0_i32, %c0_i32_0 : i32, i32
  }
  func.func @transform_8(%arg0: i32) -> i32 {
    %c0_i32 = arith.constant 0 : i32
    %c0_i32_0 = arith.constant 0 : i32
    return %c0_i32 : i32
  }
  func.func @transform_9(%arg0: i32) -> (i32, i32, i32) {
    %c0_i32 = arith.constant 0 : i32
    %c0_i32_0 = arith.constant 0 : i32
    %c0_i32_1 = arith.constant 0 : i32
    return %arg0, %c0_i32, %c0_i32_0 : i32, i32, i32
  }
  func.func @transform_10(%arg0: i32) -> (i32, i32, i32) {
    %c0_i32 = arith.constant 0 : i32
    %c0_i32_0 = arith.constant 0 : i32
    %c0_i32_1 = arith.constant 0 : i32
    return %arg0, %c0_i32, %c0_i32_0 : i32, i32, i32
  }
}

</mosaic_0001>

<llo_original>
// kernel: bidaf_forward.14
$region0: #{bidaf_forward.14}
  #allocation0 [shape = 'u32[]', space=smem, size = 0x4, offset = 0x4, fixed_abs, tag = 'smem constant byte address 0x4 - core index']
  #allocation1 [shape = 'u32[144,128]{1,0:T(1,128)}', space=vmem, size = 0x12000, scoped, tag = 'internal scratch']
  %s0 = inlined_call_operand.vmem [shape: f32[32,32], index: 0, kind: input, shape index: {}]
  %s1 = inlined_call_operand.vmem [shape: f32[32,256], index: 1, kind: input, shape index: {}]
  %s2 = inlined_call_operand.vmem [shape: f32[32,256], index: 2, kind: output, shape index: {}]
  %s3 = sld [smem:[#allocation0]]
  $region18: #{bidaf_forward.14} parent=0
    _
  %s5 = ssub.s32 1, %s3
  %s6 = scalar_select 0, %s5, %s3
  // Predicated region
  $region2: #{bidaf_forward.14} parent=0 // pred_check
    _
  $region3: #{bidaf_forward.14} parent=0 // pred_check_branch
    %8 = sbr.rel (0) target = $region5
  $region4: #{bidaf_forward.14} parent=0 // pred_region
    _
  $region5: #{bidaf_forward.14} parent=0 // pred_fallthru
    _
  // Predicated region
  $region6: #{bidaf_forward.14} parent=0 // pred_check
    _
  $region7: #{bidaf_forward.14} parent=0 // pred_check_branch
    %10 = sbr.rel (0) target = $region9
  $region8: #{bidaf_forward.14} parent=0 // pred_region
    _
  $region9: #{bidaf_forward.14} parent=0 // pred_fallthru
    _
  %v11 = vld [vmem:[%s0] sm:$0xff]
  %v12 = vld [vmem:[%s0 + $0x8] sm:$0xff]
  %v13 = vld [vmem:[%s0 + $0x10] sm:$0xff]
  %v14 = vld [vmem:[%s0 + $0x18] sm:$0xff]
  %v15 = vld [vmem:[%s1] sm:$0xff]
  %v16 = vld [vmem:[%s1 + $0x8] sm:$0xff]
  %v17 = vld [vmem:[%s1 + $0x10] sm:$0xff]
  %v18 = vld [vmem:[%s1 + $0x18] sm:$0xff]
  %v19 = vld [vmem:[%s1 + $0x20] sm:$0xff]
  %v20 = vld [vmem:[%s1 + $0x28] sm:$0xff]
  %v21 = vld [vmem:[%s1 + $0x30] sm:$0xff]
  %v22 = vld [vmem:[%s1 + $0x38] sm:$0xff]
  %vm23 = vcmask 261120
  %v25 = vsel %vm23, %v11, 0
  %v28 = vsel %vm23, %v12, 0
  %v31 = vsel %vm23, %v13, 0
  %v34 = vsel %vm23, %v14, 0
  %36 = vmatprep.subr.mxu0 %v16
  %37 = vmatpush1.msra.mxu0 %v15
  %38 = vmatprep.subr.mxu0 %v18
  %39 = vmatpush1.msra.mxu0 %v17
  %40 = vmatprep.subr.mxu0 %v20
  %41 = vmatpush1.msra.mxu0 %v19
  %42 = vmatprep.subr.mxu0 %v22
  %43 = vmatpush1.msra.mxu0 %v21
  %44 = vmatprep.subr.mxu0 0.0
  %45 = vmatpush1.msra.mxu0 0.0
  %46 = vmatprep.subr.mxu0 0.0
  %47 = vmatpush1.msra.mxu0 0.0
  %48 = vmatprep.subr.mxu0 0.0
  %49 = vmatpush1.msra.mxu0 0.0
  %50 = vmatprep.subr.mxu0 0.0
  %51 = vmatpush1.msra.mxu0 0.0
  %52 = vmatprep.subr.mxu0 0.0
  %53 = vmatpush1.msra.mxu0 0.0
  %54 = vmatprep.subr.mxu0 0.0
  %55 = vmatpush1.msra.mxu0 0.0
  %56 = vmatprep.subr.mxu0 0.0
  %57 = vmatpush1.msra.mxu0 0.0
  %58 = vmatprep.subr.mxu0 0.0
  %59 = vmatpush1.msra.mxu0 0.0
  %60 = vmatprep.subr.mxu0 0.0
  %61 = vmatpush1.msra.mxu0 0.0
  %62 = vmatprep.subr.mxu0 0.0
  %63 = vmatpush1.msra.mxu0 0.0
  %64 = vmatprep.subr.mxu0 0.0
  %65 = vmatpush1.msra.mxu0 0.0
  %66 = vmatprep.subr.mxu0 0.0
  %67 = vmatpush1.msra.mxu0 0.0
  %68 = vmatprep.subr.mxu0 0.0
  %69 = vmatpush1.msra.mxu0 0.0
  %70 = vmatprep.subr.mxu0 0.0
  %71 = vmatpush1.msra.mxu0 0.0
  %72 = vmatprep.subr.mxu0 0.0
  %73 = vmatpush1.msra.mxu0 0.0
  %74 = vmatprep.subr.mxu0 0.0
  %75 = vmatpush1.msra.mxu0 0.0
  %76 = vmatprep.subr.mxu0 0.0
  %77 = vmatpush1.msra.mxu0 0.0
  %78 = vmatprep.subr.mxu0 0.0
  %79 = vmatpush1.msra.mxu0 0.0
  %80 = vmatprep.subr.mxu0 0.0
  %81 = vmatpush1.msra.mxu0 0.0
  %82 = vmatprep.subr.mxu0 0.0
  %83 = vmatpush1.msra.mxu0 0.0
  %84 = vmatprep.subr.mxu0 0.0
  %85 = vmatpush1.msra.mxu0 0.0
  %86 = vmatprep.subr.mxu0 0.0
  %87 = vmatpush1.msra.mxu0 0.0
  %88 = vmatprep.subr.mxu0 0.0
  %89 = vmatpush1.msra.mxu0 0.0
  %90 = vmatprep.subr.mxu0 0.0
  %91 = vmatpush1.msra.mxu0 0.0
  %92 = vmatprep.subr.mxu0 0.0
  %93 = vmatpush1.msra.mxu0 0.0
  %94 = vmatprep.subr.mxu0 0.0
  %95 = vmatpush1.msra.mxu0 0.0
  %96 = vmatprep.subr.mxu0 0.0
  %97 = vmatpush1.msra.mxu0 0.0
  %98 = vmatprep.subr.mxu0 0.0
  %99 = vmatpush1.msra.mxu0 0.0
  %100 = vmatprep.mubr.f32.mxu0 0.0
  %101 = vmatmul.mubr.f32.gmra.mrb[0].mxu0 %v25
  %v102 = vpop.f32.mrb[0].mxu0
  %v103 = vadd.f32 0.0, %v102
  %v104 = vpop.f32.mrb[0].mxu0
  %v105 = vadd.f32 0.0, %v104
  %106 = vmatprep.mubr.f32.mxu0 0.0
  %107 = vmatmul.mubr.f32.gmra.mrb[0].mxu0 %v28
  %v108 = vpop.f32.mrb[0].mxu0
  %v109 = vadd.f32 0.0, %v108
  %v110 = vpop.f32.mrb[0].mxu0
  %v111 = vadd.f32 0.0, %v110
  %112 = vmatprep.mubr.f32.mxu0 0.0
  %113 = vmatmul.mubr.f32.gmra.mrb[0].mxu0 %v31
  %v114 = vpop.f32.mrb[0].mxu0
  %v115 = vadd.f32 0.0, %v114
  %v116 = vpop.f32.mrb[0].mxu0
  %v117 = vadd.f32 0.0, %v116
  %118 = vmatprep.mubr.f32.mxu0 0.0
  %119 = vmatmul.mubr.f32.gmra.mrb[0].mxu0 %v34
  %v120 = vpop.f32.mrb[0].mxu0
  %v121 = vadd.f32 0.0, %v120
  %v122 = vpop.f32.mrb[0].mxu0
  %v123 = vadd.f32 0.0, %v122
  %124 = vdwg.mxu0
  %125 = vst [vmem:[%s2] sm:$0xff] %v103
  %126 = vst [vmem:[%s2 + $0x8] sm:$0xff] %v105
  %127 = vst [vmem:[%s2 + $0x10] sm:$0xff] %v109
  %128 = vst [vmem:[%s2 + $0x18] sm:$0xff] %v111
  %129 = vst [vmem:[%s2 + $0x20] sm:$0xff] %v115
  %130 = vst [vmem:[%s2 + $0x28] sm:$0xff] %v117
  %131 = vst [vmem:[%s2 + $0x30] sm:$0xff] %v121
  %132 = vst [vmem:[%s2 + $0x38] sm:$0xff] %v123
  // Predicated region
  $region10: #{bidaf_forward.14} parent=0 // pred_check
    _
  $region11: #{bidaf_forward.14} parent=0 // pred_check_branch
    %134 = sbr.rel (0) target = $region13
  $region12: #{bidaf_forward.14} parent=0 // pred_region
    _
  $region13: #{bidaf_forward.14} parent=0 // pred_fallthru
    _
  // Predicated region
  $region14: #{bidaf_forward.14} parent=0 // pred_check
    _
  $region15: #{bidaf_forward.14} parent=0 // pred_check_branch
    %136 = sbr.rel (0) target = $region17
  $region16: #{bidaf_forward.14} parent=0 // pred_region
    _
  $region17: #{bidaf_forward.14} parent=0 // pred_fallthru
    _

// kernel: bidaf_forward.16
$region0: #{bidaf_forward.16}
  #allocation0 [shape = 'u32[]', space=smem, size = 0x4, offset = 0x4, fixed_abs, tag = 'smem constant byte address 0x4 - core index']
  #allocation1 [shape = 'u32[144,128]{1,0:T(1,128)}', space=vmem, size = 0x12000, scoped, tag = 'internal scratch']
  %s0 = inlined_call_operand.vmem [shape: f32[16,32], index: 0, kind: input, shape index: {}]
  %s1 = inlined_call_operand.vmem [shape: f32[32,256], index: 1, kind: input, shape index: {}]
  %s2 = inlined_call_operand.vmem [shape: f32[16,256], index: 2, kind: output, shape index: {}]
  %s3 = sld [smem:[#allocation0]]
  $region18: #{bidaf_forward.16} parent=0
    _
  %s5 = ssub.s32 1, %s3
  %s6 = scalar_select 0, %s5, %s3
  // Predicated region
  $region2: #{bidaf_forward.16} parent=0 // pred_check
    _
  $region3: #{bidaf_forward.16} parent=0 // pred_check_branch
    %8 = sbr.rel (0) target = $region5
  $region4: #{bidaf_forward.16} parent=0 // pred_region
    _
  $region5: #{bidaf_forward.16} parent=0 // pred_fallthru
    _
  // Predicated region
  $region6: #{bidaf_forward.16} parent=0 // pred_check
    _
  $region7: #{bidaf_forward.16} parent=0 // pred_check_branch
    %10 = sbr.rel (0) target = $region9
  $region8: #{bidaf_forward.16} parent=0 // pred_region
    _
  $region9: #{bidaf_forward.16} parent=0 // pred_fallthru
    _
  %v11 = vld [vmem:[%s0] sm:$0xff]
  %v12 = vld [vmem:[%s0 + $0x8] sm:$0xff]
  %v13 = vld [vmem:[%s1] sm:$0xff]
  %v14 = vld [vmem:[%s1 + $0x8] sm:$0xff]
  %v15 = vld [vmem:[%s1 + $0x10] sm:$0xff]
  %v16 = vld [vmem:[%s1 + $0x18] sm:$0xff]
  %v17 = vld [vmem:[%s1 + $0x20] sm:$0xff]
  %v18 = vld [vmem:[%s1 + $0x28] sm:$0xff]
  %v19 = vld [vmem:[%s1 + $0x30] sm:$0xff]
  %v20 = vld [vmem:[%s1 + $0x38] sm:$0xff]
  %vm21 = vcmask 261120
  %v23 = vsel %vm21, %v11, 0
  %v26 = vsel %vm21, %v12, 0
  %28 = vmatprep.subr.mxu0 %v14
  %29 = vmatpush1.msra.mxu0 %v13
  %30 = vmatprep.subr.mxu0 %v16
  %31 = vmatpush1.msra.mxu0 %v15
  %32 = vmatprep.subr.mxu0 %v18
  %33 = vmatpush1.msra.mxu0 %v17
  %34 = vmatprep.subr.mxu0 %v20
  %35 = vmatpush1.msra.mxu0 %v19
  %36 = vmatprep.subr.mxu0 0.0
  %37 = vmatpush1.msra.mxu0 0.0
  %38 = vmatprep.subr.mxu0 0.0
  %39 = vmatpush1.msra.mxu0 0.0
  %40 = vmatprep.subr.mxu0 0.0
  %41 = vmatpush1.msra.mxu0 0.0
  %42 = vmatprep.subr.mxu0 0.0
  %43 = vmatpush1.msra.mxu0 0.0
  %44 = vmatprep.subr.mxu0 0.0
  %45 = vmatpush1.msra.mxu0 0.0
  %46 = vmatprep.subr.mxu0 0.0
  %47 = vmatpush1.msra.mxu0 0.0
  %48 = vmatprep.subr.mxu0 0.0
  %49 = vmatpush1.msra.mxu0 0.0
  %50 = vmatprep.subr.mxu0 0.0
  %51 = vmatpush1.msra.mxu0 0.0
  %52 = vmatprep.subr.mxu0 0.0
  %53 = vmatpush1.msra.mxu0 0.0
  %54 = vmatprep.subr.mxu0 0.0
  %55 = vmatpush1.msra.mxu0 0.0
  %56 = vmatprep.subr.mxu0 0.0
  %57 = vmatpush1.msra.mxu0 0.0
  %58 = vmatprep.subr.mxu0 0.0
  %59 = vmatpush1.msra.mxu0 0.0
  %60 = vmatprep.subr.mxu0 0.0
  %61 = vmatpush1.msra.mxu0 0.0
  %62 = vmatprep.subr.mxu0 0.0
  %63 = vmatpush1.msra.mxu0 0.0
  %64 = vmatprep.subr.mxu0 0.0
  %65 = vmatpush1.msra.mxu0 0.0
  %66 = vmatprep.subr.mxu0 0.0
  %67 = vmatpush1.msra.mxu0 0.0
  %68 = vmatprep.subr.mxu0 0.0
  %69 = vmatpush1.msra.mxu0 0.0
  %70 = vmatprep.subr.mxu0 0.0
  %71 = vmatpush1.msra.mxu0 0.0
  %72 = vmatprep.subr.mxu0 0.0
  %73 = vmatpush1.msra.mxu0 0.0
  %74 = vmatprep.subr.mxu0 0.0
  %75 = vmatpush1.msra.mxu0 0.0
  %76 = vmatprep.subr.mxu0 0.0
  %77 = vmatpush1.msra.mxu0 0.0
  %78 = vmatprep.subr.mxu0 0.0
  %79 = vmatpush1.msra.mxu0 0.0
  %80 = vmatprep.subr.mxu0 0.0
  %81 = vmatpush1.msra.mxu0 0.0
  %82 = vmatprep.subr.mxu0 0.0
  %83 = vmatpush1.msra.mxu0 0.0
  %84 = vmatprep.subr.mxu0 0.0
  %85 = vmatpush1.msra.mxu0 0.0
  %86 = vmatprep.subr.mxu0 0.0
  %87 = vmatpush1.msra.mxu0 0.0
  %88 = vmatprep.subr.mxu0 0.0
  %89 = vmatpush1.msra.mxu0 0.0
  %90 = vmatprep.subr.mxu0 0.0
  %91 = vmatpush1.msra.mxu0 0.0
  %92 = vmatprep.mubr.f32.mxu0 0.0
  %93 = vmatmul.mubr.f32.gmra.mrb[0].mxu0 %v23
  %v94 = vpop.f32.mrb[0].mxu0
  %v95 = vadd.f32 0.0, %v94
  %v96 = vpop.f32.mrb[0].mxu0
  %v97 = vadd.f32 0.0, %v96
  %98 = vmatprep.mubr.f32.mxu0 0.0
  %99 = vmatmul.mubr.f32.gmra.mrb[0].mxu0 %v26
  %v100 = vpop.f32.mrb[0].mxu0
  %v101 = vadd.f32 0.0, %v100
  %v102 = vpop.f32.mrb[0].mxu0
  %v103 = vadd.f32 0.0, %v102
  %104 = vdwg.mxu0
  %105 = vst [vmem:[%s2] sm:$0xff] %v95
  %106 = vst [vmem:[%s2 + $0x8] sm:$0xff] %v97
  %107 = vst [vmem:[%s2 + $0x10] sm:$0xff] %v101
  %108 = vst [vmem:[%s2 + $0x18] sm:$0xff] %v103
  // Predicated region
  $region10: #{bidaf_forward.16} parent=0 // pred_check
    _
  $region11: #{bidaf_forward.16} parent=0 // pred_check_branch
    %110 = sbr.rel (0) target = $region13
  $region12: #{bidaf_forward.16} parent=0 // pred_region
    _
  $region13: #{bidaf_forward.16} parent=0 // pred_fallthru
    _
  // Predicated region
  $region14: #{bidaf_forward.16} parent=0 // pred_check
    _
  $region15: #{bidaf_forward.16} parent=0 // pred_check_branch
    %112 = sbr.rel (0) target = $region17
  $region16: #{bidaf_forward.16} parent=0 // pred_region
    _
  $region17: #{bidaf_forward.16} parent=0 // pred_fallthru
    _

// kernel: bidaf_forward.13
$region0: #{bidaf_forward.13}
  #allocation0 [shape = 'u32[]', space=smem, size = 0x4, offset = 0x4, fixed_abs, tag = 'smem constant byte address 0x4 - core index']
  #allocation1 [shape = 'u32[144,128]{1,0:T(1,128)}', space=vmem, size = 0x12000, scoped, tag = 'internal scratch']
  %s0 = inlined_call_operand.vmem [shape: f32[48,64], index: 0, kind: input, shape index: {}]
  %s1 = inlined_call_operand.vmem [shape: f32[64,32], index: 1, kind: input, shape index: {}]
  %s2 = inlined_call_operand.vmem [shape: f32[32,32], index: 2, kind: input, shape index: {}]
  %s3 = inlined_call_operand.vmem [shape: f32[1,32], index: 3, kind: input, shape index: {}]
  %s4 = inlined_call_operand.vmem [shape: f32[32,32], index: 4, kind: input, shape index: {}]
  %s5 = inlined_call_operand.vmem [shape: f32[1,32], index: 5, kind: input, shape index: {}]
  %s6 = inlined_call_operand.vmem [shape: f32[32,32], index: 6, kind: input, shape index: {}]
  %s7 = inlined_call_operand.vmem [shape: f32[1,32], index: 7, kind: input, shape index: {}]
  %s8 = inlined_call_operand.vmem [shape: f32[32,32], index: 8, kind: input, shape index: {}]
  %s9 = inlined_call_operand.vmem [shape: f32[1,32], index: 9, kind: input, shape index: {}]
  %s10 = inlined_call_operand.vmem [shape: f32[48,32], index: 10, kind: output, shape index: {}]
  %s11 = sld [smem:[#allocation0]]
  $region50: #{bidaf_forward.13} parent=0
    _
  %s13 = ssub.s32 1, %s11
  %s14 = scalar_select 0, %s13, %s11
  // Predicated region
  $region2: #{bidaf_forward.13} parent=0 // pred_check
    _
  $region3: #{bidaf_forward.13} parent=0 // pred_check_branch
    %16 = sbr.rel (0) target = $region5
  $region4: #{bidaf_forward.13} parent=0 // pred_region
    _
  $region5: #{bidaf_forward.13} parent=0 // pred_fallthru
    _
  // Predicated region
  $region6: #{bidaf_forward.13} parent=0 // pred_check
    _
  $region7: #{bidaf_forward.13} parent=0 // pred_check_branch
    %18 = sbr.rel (0) target = $region9
  $region8: #{bidaf_forward.13} parent=0 // pred_region
    _
  $region9: #{bidaf_forward.13} parent=0 // pred_fallthru
    _
  // Predicated region
  $region10: #{bidaf_forward.13} parent=0 // pred_check
    _
  $region11: #{bidaf_forward.13} parent=0 // pred_check_branch
    %20 = sbr.rel (0) target = $region13
  $region12: #{bidaf_forward.13} parent=0 // pred_region
    _
  $region13: #{bidaf_forward.13} parent=0 // pred_fallthru
    _
  // Predicated region
  $region14: #{bidaf_forward.13} parent=0 // pred_check
    _
  $region15: #{bidaf_forward.13} parent=0 // pred_check_branch
    %22 = sbr.rel (0) target = $region17
  $region16: #{bidaf_forward.13} parent=0 // pred_region
    _
  $region17: #{bidaf_forward.13} parent=0 // pred_fallthru
    _
  // Predicated region
  $region18: #{bidaf_forward.13} parent=0 // pred_check
    _
  $region19: #{bidaf_forward.13} parent=0 // pred_check_branch
    %24 = sbr.rel (0) target = $region21
  $region20: #{bidaf_forward.13} parent=0 // pred_region
    _
  $region21: #{bidaf_forward.13} parent=0 // pred_fallthru
    _
  // Predicated region
  $region22: #{bidaf_forward.13} parent=0 // pred_check
    _
  $region23: #{bidaf_forward.13} parent=0 // pred_check_branch
    %26 = sbr.rel (0) target = $region25
  $region24: #{bidaf_forward.13} parent=0 // pred_region
    _
  $region25: #{bidaf_forward.13} parent=0 // pred_fallthru
    _
  // Predicated region
  $region26: #{bidaf_forward.13} parent=0 // pred_check
    _
  $region27: #{bidaf_forward.13} parent=0 // pred_check_branch
    %28 = sbr.rel (0) target = $region29
  $region28: #{bidaf_forward.13} parent=0 // pred_region
    _
  $region29: #{bidaf_forward.13} parent=0 // pred_fallthru
    _
  // Predicated region
  $region30: #{bidaf_forward.13} parent=0 // pred_check
    _
  $region31: #{bidaf_forward.13} parent=0 // pred_check_branch
    %30 = sbr.rel (0) target = $region33
  $region32: #{bidaf_forward.13} parent=0 // pred_region
    _
  $region33: #{bidaf_forward.13} parent=0 // pred_fallthru
    _
  // Predicated region
  $region34: #{bidaf_forward.13} parent=0 // pred_check
    _
  $region35: #{bidaf_forward.13} parent=0 // pred_check_branch
    %32 = sbr.rel (0) target = $region37
  $region36: #{bidaf_forward.13} parent=0 // pred_region
    _
  $region37: #{bidaf_forward.13} parent=0 // pred_fallthru
    _
  // Predicated region
  $region38: #{bidaf_forward.13} parent=0 // pred_check
    _
  $region39: #{bidaf_forward.13} parent=0 // pred_check_branch
    %34 = sbr.rel (0) target = $region41
  $region40: #{bidaf_forward.13} parent=0 // pred_region
    _
  $region41: #{bidaf_forward.13} parent=0 // pred_fallthru
    _
  %v35 = vld [vmem:[%s0] sm:$0xff]
  %v36 = vld [vmem:[%s0 + $0x8] sm:$0xff]
  %v37 = vld [vmem:[%s0 + $0x10] sm:$0xff]
  %v38 = vld [vmem:[%s0 + $0x18] sm:$0xff]
  %v39 = vld [vmem:[%s0 + $0x20] sm:$0xff]
  %v40 = vld [vmem:[%s0 + $0x28] sm:$0xff]
  %v41 = vld [vmem:[%s1] sm:$0xff]
  %v42 = vld [vmem:[%s1 + $0x8] sm:$0xff]
  %v43 = vld [vmem:[%s1 + $0x10] sm:$0xff]
  %v44 = vld [vmem:[%s1 + $0x18] sm:$0xff]
  %v45 = vld [vmem:[%s1 + $0x20] sm:$0xff]
  %v46 = vld [vmem:[%s1 + $0x28] sm:$0xff]
  %v47 = vld [vmem:[%s1 + $0x30] sm:$0xff]
  %v48 = vld [vmem:[%s1 + $0x38] sm:$0xff]
  %vm49 = vcmask 523264
  %v51 = vsel %vm49, %v35, 0
  %v54 = vsel %vm49, %v36, 0
  %v57 = vsel %vm49, %v37, 0
  %v60 = vsel %vm49, %v38, 0
  %v63 = vsel %vm49, %v39, 0
  %v66 = vsel %vm49, %v40, 0
  %68 = vmatprep.subr.mxu0 0.0
  %69 = vmatpush1.msra.mxu0 %v41
  %70 = vmatprep.subr.mxu0 0.0
  %71 = vmatpush1.msra.mxu0 %v42
  %72 = vmatprep.subr.mxu0 0.0
  %73 = vmatpush1.msra.mxu0 %v43
  %74 = vmatprep.subr.mxu0 0.0
  %75 = vmatpush1.msra.mxu0 %v44
  %76 = vmatprep.subr.mxu0 0.0
  %77 = vmatpush1.msra.mxu0 %v45
  %78 = vmatprep.subr.mxu0 0.0
  %79 = vmatpush1.msra.mxu0 %v46
  %80 = vmatprep.subr.mxu0 0.0
  %81 = vmatpush1.msra.mxu0 %v47
  %82 = vmatprep.subr.mxu0 0.0
  %83 = vmatpush1.msra.mxu0 %v48
  %84 = vmatprep.subr.mxu0 0.0
  %85 = vmatpush1.msra.mxu0 0.0
  %86 = vmatprep.subr.mxu0 0.0
  %87 = vmatpush1.msra.mxu0 0.0
  %88 = vmatprep.subr.mxu0 0.0
  %89 = vmatpush1.msra.mxu0 0.0
  %90 = vmatprep.subr.mxu0 0.0
  %91 = vmatpush1.msra.mxu0 0.0
  %92 = vmatprep.subr.mxu0 0.0
  %93 = vmatpush1.msra.mxu0 0.0
  %94 = vmatprep.subr.mxu0 0.0
  %95 = vmatpush1.msra.mxu0 0.0
  %96 = vmatprep.subr.mxu0 0.0
  %97 = vmatpush1.msra.mxu0 0.0
  %98 = vmatprep.subr.mxu0 0.0
  %99 = vmatpush1.msra.mxu0 0.0
  %100 = vmatprep.subr.mxu0 0.0
  %101 = vmatpush1.msra.mxu0 0.0
  %102 = vmatprep.subr.mxu0 0.0
  %103 = vmatpush1.msra.mxu0 0.0
  %104 = vmatprep.subr.mxu0 0.0
  %105 = vmatpush1.msra.mxu0 0.0
  %106 = vmatprep.subr.mxu0 0.0
  %107 = vmatpush1.msra.mxu0 0.0
  %108 = vmatprep.subr.mxu0 0.0
  %109 = vmatpush1.msra.mxu0 0.0
  %110 = vmatprep.subr.mxu0 0.0
  %111 = vmatpush1.msra.mxu0 0.0
  %112 = vmatprep.subr.mxu0 0.0
  %113 = vmatpush1.msra.mxu0 0.0
  %114 = vmatprep.subr.mxu0 0.0
  %115 = vmatpush1.msra.mxu0 0.0
  %116 = vmatprep.subr.mxu0 0.0
  %117 = vmatpush1.msra.mxu0 0.0
  %118 = vmatprep.subr.mxu0 0.0
  %119 = vmatpush1.msra.mxu0 0.0
  %120 = vmatprep.subr.mxu0 0.0
  %121 = vmatpush1.msra.mxu0 0.0
  %122 = vmatprep.subr.mxu0 0.0
  %123 = vmatpush1.msra.mxu0 0.0
  %124 = vmatprep.subr.mxu0 0.0
  %125 = vmatpush1.msra.mxu0 0.0
  %126 = vmatprep.subr.mxu0 0.0
  %127 = vmatpush1.msra.mxu0 0.0
  %128 = vmatprep.subr.mxu0 0.0
  %129 = vmatpush1.msra.mxu0 0.0
  %130 = vmatprep.subr.mxu0 0.0
  %131 = vmatpush1.msra.mxu0 0.0
  %132 = vmatprep.mubr.f32.mxu0 0.0
  %133 = vmatmul.mubr.f32.gmra.mrb[0].mxu0 %v51
  %v134 = vpop.f32.mrb[0].mxu0
  %v135 = vadd.f32 0.0, %v134
  %v136 = vpop.f32.mrb[0].mxu0
  %137 = vmatprep.mubr.f32.mxu0 0.0
  %138 = vmatmul.mubr.f32.gmra.mrb[0].mxu0 %v54
  %v139 = vpop.f32.mrb[0].mxu0
  %v140 = vadd.f32 0.0, %v139
  %v141 = vpop.f32.mrb[0].mxu0
  %142 = vmatprep.mubr.f32.mxu0 0.0
  %143 = vmatmul.mubr.f32.gmra.mrb[0].mxu0 %v57
  %v144 = vpop.f32.mrb[0].mxu0
  %v145 = vadd.f32 0.0, %v144
  %v146 = vpop.f32.mrb[0].mxu0
  %147 = vmatprep.mubr.f32.mxu0 0.0
  %148 = vmatmul.mubr.f32.gmra.mrb[0].mxu0 %v60
  %v149 = vpop.f32.mrb[0].mxu0
  %v150 = vadd.f32 0.0, %v149
  %v151 = vpop.f32.mrb[0].mxu0
  %152 = vmatprep.mubr.f32.mxu0 0.0
  %153 = vmatmul.mubr.f32.gmra.mrb[0].mxu0 %v63
  %v154 = vpop.f32.mrb[0].mxu0
  %v155 = vadd.f32 0.0, %v154
  %v156 = vpop.f32.mrb[0].mxu0
  %157 = vmatprep.mubr.f32.mxu0 0.0
  %158 = vmatmul.mubr.f32.gmra.mrb[0].mxu0 %v66
  %v159 = vpop.f32.mrb[0].mxu0
  %v160 = vadd.f32 0.0, %v159
  %v161 = vpop.f32.mrb[0].mxu0
  %162 = vdwg.mxu0
  %v163 = vld [vmem:[%s4] sm:$0xff]
  %v164 = vld [vmem:[%s4 + $0x8] sm:$0xff]
  %v165 = vld [vmem:[%s4 + $0x10] sm:$0xff]
  %v166 = vld [vmem:[%s4 + $0x18] sm:$0xff]
  %v167 = vld [vmem:[%s5] sm:$0x1]
  %v169 = vlaneseq
  %v170 = vshrl.u32 %v169, 7
  %v171 = vsub.s32 0, %v170
  %v172 = vrot.slane %v167, %v171
  %vm174 = vcmask 261120
  %v176 = vsel %vm174, %v135, 0
  %v179 = vsel %vm174, %v140, 0
  %v182 = vsel %vm174, %v145, 0
  %v185 = vsel %vm174, %v150, 0
  %v188 = vsel %vm174, %v155, 0
  %v191 = vsel %vm174, %v160, 0
  %193 = vmatprep.subr.mxu0 0.0
  %194 = vmatpush1.msra.mxu0 %v163
  %195 = vmatprep.subr.mxu0 0.0
  %196 = vmatpush1.msra.mxu0 %v164
  %197 = vmatprep.subr.mxu0 0.0
  %198 = vmatpush1.msra.mxu0 %v165
  %199 = vmatprep.subr.mxu0 0.0
  %200 = vmatpush1.msra.mxu0 %v166
  %201 = vmatprep.subr.mxu0 0.0
  %202 = vmatpush1.msra.mxu0 0.0
  %203 = vmatprep.subr.mxu0 0.0
  %204 = vmatpush1.msra.mxu0 0.0
  %205 = vmatprep.subr.mxu0 0.0
  %206 = vmatpush1.msra.mxu0 0.0
  %207 = vmatprep.subr.mxu0 0.0
  %208 = vmatpush1.msra.mxu0 0.0
  %209 = vmatprep.subr.mxu0 0.0
  %210 = vmatpush1.msra.mxu0 0.0
  %211 = vmatprep.subr.mxu0 0.0
  %212 = vmatpush1.msra.mxu0 0.0
  %213 = vmatprep.subr.mxu0 0.0
  %214 = vmatpush1.msra.mxu0 0.0
  %215 = vmatprep.subr.mxu0 0.0
  %216 = vmatpush1.msra.mxu0 0.0
  %217 = vmatprep.subr.mxu0 0.0
  %218 = vmatpush1.msra.mxu0 0.0
  %219 = vmatprep.subr.mxu0 0.0
  %220 = vmatpush1.msra.mxu0 0.0
  %221 = vmatprep.subr.mxu0 0.0
  %222 = vmatpush1.msra.mxu0 0.0
  %223 = vmatprep.subr.mxu0 0.0
  %224 = vmatpush1.msra.mxu0 0.0
  %225 = vmatprep.subr.mxu0 0.0
  %226 = vmatpush1.msra.mxu0 0.0
  %227 = vmatprep.subr.mxu0 0.0
  %228 = vmatpush1.msra.mxu0 0.0
  %229 = vmatprep.subr.mxu0 0.0
  %230 = vmatpush1.msra.mxu0 0.0
  %231 = vmatprep.subr.mxu0 0.0
  %232 = vmatpush1.msra.mxu0 0.0
  %233 = vmatprep.subr.mxu0 0.0
  %234 = vmatpush1.msra.mxu0 0.0
  %235 = vmatprep.subr.mxu0 0.0
  %236 = vmatpush1.msra.mxu0 0.0
  %237 = vmatprep.subr.mxu0 0.0
  %238 = vmatpush1.msra.mxu0 0.0
  %239 = vmatprep.subr.mxu0 0.0
  %240 = vmatpush1.msra.mxu0 0.0
  %241 = vmatprep.subr.mxu0 0.0
  %242 = vmatpush1.msra.mxu0 0.0
  %243 = vmatprep.subr.mxu0 0.0
  %244 = vmatpush1.msra.mxu0 0.0
  %245 = vmatprep.subr.mxu0 0.0
  %246 = vmatpush1.msra.mxu0 0.0
  %247 = vmatprep.subr.mxu0 0.0
  %248 = vmatpush1.msra.mxu0 0.0
  %249 = vmatprep.subr.mxu0 0.0
  %250 = vmatpush1.msra.mxu0 0.0
  %251 = vmatprep.subr.mxu0 0.0
  %252 = vmatpush1.msra.mxu0 0.0
  %253 = vmatprep.subr.mxu0 0.0
  %254 = vmatpush1.msra.mxu0 0.0
  %255 = vmatprep.subr.mxu0 0.0
  %256 = vmatpush1.msra.mxu0 0.0
  %257 = vmatprep.mubr.f32.mxu0 0.0
  %258 = vmatmul.mubr.f32.gmra.mrb[0].mxu0 %v176
  %v259 = vpop.f32.mrb[0].mxu0
  %v260 = vadd.f32 %v172, %v259
  %v261 = vpop.f32.mrb[0].mxu0
  %262 = vmatprep.mubr.f32.mxu0 0.0
  %263 = vmatmul.mubr.f32.gmra.mrb[0].mxu0 %v179
  %v264 = vpop.f32.mrb[0].mxu0
  %v265 = vadd.f32 %v172, %v264
  %v266 = vpop.f32.mrb[0].mxu0
  %267 = vmatprep.mubr.f32.mxu0 0.0
  %268 = vmatmul.mubr.f32.gmra.mrb[0].mxu0 %v182
  %v269 = vpop.f32.mrb[0].mxu0
  %v270 = vadd.f32 %v172, %v269
  %v271 = vpop.f32.mrb[0].mxu0
  %272 = vmatprep.mubr.f32.mxu0 0.0
  %273 = vmatmul.mubr.f32.gmra.mrb[0].mxu0 %v185
  %v274 = vpop.f32.mrb[0].mxu0
  %v275 = vadd.f32 %v172, %v274
  %v276 = vpop.f32.mrb[0].mxu0
  %277 = vmatprep.mubr.f32.mxu0 0.0
  %278 = vmatmul.mubr.f32.gmra.mrb[0].mxu0 %v188
  %v279 = vpop.f32.mrb[0].mxu0
  %v280 = vadd.f32 %v172, %v279
  %v281 = vpop.f32.mrb[0].mxu0
  %282 = vmatprep.mubr.f32.mxu0 0.0
  %283 = vmatmul.mubr.f32.gmra.mrb[0].mxu0 %v191
  %v284 = vpop.f32.mrb[0].mxu0
  %v285 = vadd.f32 %v172, %v284
  %v286 = vpop.f32.mrb[0].mxu0
  %287 = vdwg.mxu0
  %v288 = vxor.u32 %v260, 2147483648
  %v289 = vxor.u32 %v265, 2147483648
  %v290 = vxor.u32 %v270, 2147483648
  %v291 = vxor.u32 %v275, 2147483648
  %v292 = vxor.u32 %v280, 2147483648
  %v293 = vxor.u32 %v285, 2147483648
  %v294 = vmul.f32 %v288, 1.442695
  %v295 = vpow.pop %v294
  %v296 = vmul.f32 %v289, 1.442695
  %v297 = vpow.pop %v296
  %v298 = vmul.f32 %v290, 1.442695
  %v299 = vpow.pop %v298
  %v300 = vmul.f32 %v291, 1.442695
  %v301 = vpow.pop %v300
  %v302 = vmul.f32 %v292, 1.442695
  %v303 = vpow.pop %v302
  %v304 = vmul.f32 %v293, 1.442695
  %v305 = vpow.pop %v304
  %v306 = vadd.f32 %v295, 1.0
  %v307 = vadd.f32 %v297, 1.0
  %v308 = vadd.f32 %v299, 1.0
  %v309 = vadd.f32 %v301, 1.0
  %v310 = vadd.f32 %v303, 1.0
  %v311 = vadd.f32 %v305, 1.0
  %v312 = vrcp.pop %v306
  %v313 = vmul.f32 1.0, %v312
  %v314 = vrcp.pop %v307
  %v315 = vmul.f32 1.0, %v314
  %v316 = vrcp.pop %v308
  %v317 = vmul.f32 1.0, %v316
  %v318 = vrcp.pop %v309
  %v319 = vmul.f32 1.0, %v318
  %v320 = vrcp.pop %v310
  %v321 = vmul.f32 1.0, %v320
  %v322 = vrcp.pop %v311
  %v323 = vmul.f32 1.0, %v322
  %v324 = vld [vmem:[%s2] sm:$0xff]
  %v325 = vld [vmem:[%s2 + $0x8] sm:$0xff]
  %v326 = vld [vmem:[%s2 + $0x10] sm:$0xff]
  %v327 = vld [vmem:[%s2 + $0x18] sm:$0xff]
  %v328 = vld [vmem:[%s3] sm:$0x1]
  %v330 = vlaneseq
  %v331 = vshrl.u32 %v330, 7
  %v332 = vsub.s32 0, %v331
  %v333 = vrot.slane %v328, %v332
  %335 = vmatprep.subr.mxu0 0.0
  %336 = vmatpush1.msra.mxu0 %v324
  %337 = vmatprep.subr.mxu0 0.0
  %338 = vmatpush1.msra.mxu0 %v325
  %339 = vmatprep.subr.mxu0 0.0
  %340 = vmatpush1.msra.mxu0 %v326
  %341 = vmatprep.subr.mxu0 0.0
  %342 = vmatpush1.msra.mxu0 %v327
  %343 = vmatprep.subr.mxu0 0.0
  %344 = vmatpush1.msra.mxu0 0.0
  %345 = vmatprep.subr.mxu0 0.0
  %346 = vmatpush1.msra.mxu0 0.0
  %347 = vmatprep.subr.mxu0 0.0
  %348 = vmatpush1.msra.mxu0 0.0
  %349 = vmatprep.subr.mxu0 0.0
  %350 = vmatpush1.msra.mxu0 0.0
  %351 = vmatprep.subr.mxu0 0.0
  %352 = vmatpush1.msra.mxu0 0.0
  %353 = vmatprep.subr.mxu0 0.0
  %354 = vmatpush1.msra.mxu0 0.0
  %355 = vmatprep.subr.mxu0 0.0
  %356 = vmatpush1.msra.mxu0 0.0
  %357 = vmatprep.subr.mxu0 0.0
  %358 = vmatpush1.msra.mxu0 0.0
  %359 = vmatprep.subr.mxu0 0.0
  %360 = vmatpush1.msra.mxu0 0.0
  %361 = vmatprep.subr.mxu0 0.0
  %362 = vmatpush1.msra.mxu0 0.0
  %363 = vmatprep.subr.mxu0 0.0
  %364 = vmatpush1.msra.mxu0 0.0
  %365 = vmatprep.subr.mxu0 0.0
  %366 = vmatpush1.msra.mxu0 0.0
  %367 = vmatprep.subr.mxu0 0.0
  %368 = vmatpush1.msra.mxu0 0.0
  %369 = vmatprep.subr.mxu0 0.0
  %370 = vmatpush1.msra.mxu0 0.0
  %371 = vmatprep.subr.mxu0 0.0
  %372 = vmatpush1.msra.mxu0 0.0
  %373 = vmatprep.subr.mxu0 0.0
  %374 = vmatpush1.msra.mxu0 0.0
  %375 = vmatprep.subr.mxu0 0.0
  %376 = vmatpush1.msra.mxu0 0.0
  %377 = vmatprep.subr.mxu0 0.0
  %378 = vmatpush1.msra.mxu0 0.0
  %379 = vmatprep.subr.mxu0 0.0
  %380 = vmatpush1.msra.mxu0 0.0
  %381 = vmatprep.subr.mxu0 0.0
  %382 = vmatpush1.msra.mxu0 0.0
  %383 = vmatprep.subr.mxu0 0.0
  %384 = vmatpush1.msra.mxu0 0.0
  %385 = vmatprep.subr.mxu0 0.0
  %386 = vmatpush1.msra.mxu0 0.0
  %387 = vmatprep.subr.mxu0 0.0
  %388 = vmatpush1.msra.mxu0 0.0
  %389 = vmatprep.subr.mxu0 0.0
  %390 = vmatpush1.msra.mxu0 0.0
  %391 = vmatprep.subr.mxu0 0.0
  %392 = vmatpush1.msra.mxu0 0.0
  %393 = vmatprep.subr.mxu0 0.0
  %394 = vmatpush1.msra.mxu0 0.0
  %395 = vmatprep.subr.mxu0 0.0
  %396 = vmatpush1.msra.mxu0 0.0
  %397 = vmatprep.subr.mxu0 0.0
  %398 = vmatpush1.msra.mxu0 0.0
  %399 = vmatprep.mubr.f32.mxu0 0.0
  %400 = vmatmul.mubr.f32.gmra.mrb[0].mxu0 %v176
  %v401 = vpop.f32.mrb[0].mxu0
  %v402 = vadd.f32 %v333, %v401
  %v403 = vpop.f32.mrb[0].mxu0
  %404 = vmatprep.mubr.f32.mxu0 0.0
  %405 = vmatmul.mubr.f32.gmra.mrb[0].mxu0 %v179
  %v406 = vpop.f32.mrb[0].mxu0
  %v407 = vadd.f32 %v333, %v406
  %v408 = vpop.f32.mrb[0].mxu0
  %409 = vmatprep.mubr.f32.mxu0 0.0
  %410 = vmatmul.mubr.f32.gmra.mrb[0].mxu0 %v182
  %v411 = vpop.f32.mrb[0].mxu0
  %v412 = vadd.f32 %v333, %v411
  %v413 = vpop.f32.mrb[0].mxu0
  %414 = vmatprep.mubr.f32.mxu0 0.0
  %415 = vmatmul.mubr.f32.gmra.mrb[0].mxu0 %v185
  %v416 = vpop.f32.mrb[0].mxu0
  %v417 = vadd.f32 %v333, %v416
  %v418 = vpop.f32.mrb[0].mxu0
  %419 = vmatprep.mubr.f32.mxu0 0.0
  %420 = vmatmul.mubr.f32.gmra.mrb[0].mxu0 %v188
  %v421 = vpop.f32.mrb[0].mxu0
  %v422 = vadd.f32 %v333, %v421
  %v423 = vpop.f32.mrb[0].mxu0
  %424 = vmatprep.mubr.f32.mxu0 0.0
  %425 = vmatmul.mubr.f32.gmra.mrb[0].mxu0 %v191
  %v426 = vpop.f32.mrb[0].mxu0
  %v427 = vadd.f32 %v333, %v426
  %v428 = vpop.f32.mrb[0].mxu0
  %429 = vdwg.mxu0
  %v430 = vmax.f32 %v402, 0.0
  %v431 = vmax.f32 %v407, 0.0
  %v432 = vmax.f32 %v412, 0.0
  %v433 = vmax.f32 %v417, 0.0
  %v434 = vmax.f32 %v422, 0.0
  %v435 = vmax.f32 %v427, 0.0
  %v436 = vmul.f32 %v313, %v430
  %v437 = vmul.f32 %v315, %v431
  %v438 = vmul.f32 %v317, %v432
  %v439 = vmul.f32 %v319, %v433
  %v440 = vmul.f32 %v321, %v434
  %v441 = vmul.f32 %v323, %v435
  %v442 = vsub.f32 1.0, %v313
  %v443 = vsub.f32 1.0, %v315
  %v444 = vsub.f32 1.0, %v317
  %v445 = vsub.f32 1.0, %v319
  %v446 = vsub.f32 1.0, %v321
  %v447 = vsub.f32 1.0, %v323
  %v448 = vmul.f32 %v442, %v135
  %v449 = vmul.f32 %v443, %v140
  %v450 = vmul.f32 %v444, %v145
  %v451 = vmul.f32 %v445, %v150
  %v452 = vmul.f32 %v446, %v155
  %v453 = vmul.f32 %v447, %v160
  %v454 = vadd.f32 %v436, %v448
  %v455 = vadd.f32 %v437, %v449
  %v456 = vadd.f32 %v438, %v450
  %v457 = vadd.f32 %v439, %v451
  %v458 = vadd.f32 %v440, %v452
  %v459 = vadd.f32 %v441, %v453
  %v460 = vld [vmem:[%s8] sm:$0xff]
  %v461 = vld [vmem:[%s8 + $0x8] sm:$0xff]
  %v462 = vld [vmem:[%s8 + $0x10] sm:$0xff]
  %v463 = vld [vmem:[%s8 + $0x18] sm:$0xff]
  %v464 = vld [vmem:[%s9] sm:$0x1]
  %v466 = vlaneseq
  %v467 = vshrl.u32 %v466, 7
  %v468 = vsub.s32 0, %v467
  %v469 = vrot.slane %v464, %v468
  %v472 = vsel %vm174, %v454, 0
  %v475 = vsel %vm174, %v455, 0
  %v478 = vsel %vm174, %v456, 0
  %v481 = vsel %vm174, %v457, 0
  %v484 = vsel %vm174, %v458, 0
  %v487 = vsel %vm174, %v459, 0
  %489 = vmatprep.subr.mxu0 0.0
  %490 = vmatpush1.msra.mxu0 %v460
  %491 = vmatprep.subr.mxu0 0.0
  %492 = vmatpush1.msra.mxu0 %v461
  %493 = vmatprep.subr.mxu0 0.0
  %494 = vmatpush1.msra.mxu0 %v462
  %495 = vmatprep.subr.mxu0 0.0
  %496 = vmatpush1.msra.mxu0 %v463
  %497 = vmatprep.subr.mxu0 0.0
  %498 = vmatpush1.msra.mxu0 0.0
  %499 = vmatprep.subr.mxu0 0.0
  %500 = vmatpush1.msra.mxu0 0.0
  %501 = vmatprep.subr.mxu0 0.0
  %502 = vmatpush1.msra.mxu0 0.0
  %503 = vmatprep.subr.mxu0 0.0
  %504 = vmatpush1.msra.mxu0 0.0
  %505 = vmatprep.subr.mxu0 0.0
  %506 = vmatpush1.msra.mxu0 0.0
  %507 = vmatprep.subr.mxu0 0.0
  %508 = vmatpush1.msra.mxu0 0.0
  %509 = vmatprep.subr.mxu0 0.0
  %510 = vmatpush1.msra.mxu0 0.0
  %511 = vmatprep.subr.mxu0 0.0
  %512 = vmatpush1.msra.mxu0 0.0
  %513 = vmatprep.subr.mxu0 0.0
  %514 = vmatpush1.msra.mxu0 0.0
  %515 = vmatprep.subr.mxu0 0.0
  %516 = vmatpush1.msra.mxu0 0.0
  %517 = vmatprep.subr.mxu0 0.0
  %518 = vmatpush1.msra.mxu0 0.0
  %519 = vmatprep.subr.mxu0 0.0
  %520 = vmatpush1.msra.mxu0 0.0
  %521 = vmatprep.subr.mxu0 0.0
  %522 = vmatpush1.msra.mxu0 0.0
  %523 = vmatprep.subr.mxu0 0.0
  %524 = vmatpush1.msra.mxu0 0.0
  %525 = vmatprep.subr.mxu0 0.0
  %526 = vmatpush1.msra.mxu0 0.0
  %527 = vmatprep.subr.mxu0 0.0
  %528 = vmatpush1.msra.mxu0 0.0
  %529 = vmatprep.subr.mxu0 0.0
  %530 = vmatpush1.msra.mxu0 0.0
  %531 = vmatprep.subr.mxu0 0.0
  %532 = vmatpush1.msra.mxu0 0.0
  %533 = vmatprep.subr.mxu0 0.0
  %534 = vmatpush1.msra.mxu0 0.0
  %535 = vmatprep.subr.mxu0 0.0
  %536 = vmatpush1.msra.mxu0 0.0
  %537 = vmatprep.subr.mxu0 0.0
  %538 = vmatpush1.msra.mxu0 0.0
  %539 = vmatprep.subr.mxu0 0.0
  %540 = vmatpush1.msra.mxu0 0.0
  %541 = vmatprep.subr.mxu0 0.0
  %542 = vmatpush1.msra.mxu0 0.0
  %543 = vmatprep.subr.mxu0 0.0
  %544 = vmatpush1.msra.mxu0 0.0
  %545 = vmatprep.subr.mxu0 0.0
  %546 = vmatpush1.msra.mxu0 0.0
  %547 = vmatprep.subr.mxu0 0.0
  %548 = vmatpush1.msra.mxu0 0.0
  %549 = vmatprep.subr.mxu0 0.0
  %550 = vmatpush1.msra.mxu0 0.0
  %551 = vmatprep.subr.mxu0 0.0
  %552 = vmatpush1.msra.mxu0 0.0
  %553 = vmatprep.mubr.f32.mxu0 0.0
  %554 = vmatmul.mubr.f32.gmra.mrb[0].mxu0 %v472
  %v555 = vpop.f32.mrb[0].mxu0
  %v556 = vadd.f32 %v469, %v555
  %v557 = vpop.f32.mrb[0].mxu0
  %558 = vmatprep.mubr.f32.mxu0 0.0
  %559 = vmatmul.mubr.f32.gmra.mrb[0].mxu0 %v475
  %v560 = vpop.f32.mrb[0].mxu0
  %v561 = vadd.f32 %v469, %v560
  %v562 = vpop.f32.mrb[0].mxu0
  %563 = vmatprep.mubr.f32.mxu0 0.0
  %564 = vmatmul.mubr.f32.gmra.mrb[0].mxu0 %v478
  %v565 = vpop.f32.mrb[0].mxu0
  %v566 = vadd.f32 %v469, %v565
  %v567 = vpop.f32.mrb[0].mxu0
  %568 = vmatprep.mubr.f32.mxu0 0.0
  %569 = vmatmul.mubr.f32.gmra.mrb[0].mxu0 %v481
  %v570 = vpop.f32.mrb[0].mxu0
  %v571 = vadd.f32 %v469, %v570
  %v572 = vpop.f32.mrb[0].mxu0
  %573 = vmatprep.mubr.f32.mxu0 0.0
  %574 = vmatmul.mubr.f32.gmra.mrb[0].mxu0 %v484
  %v575 = vpop.f32.mrb[0].mxu0
  %v576 = vadd.f32 %v469, %v575
  %v577 = vpop.f32.mrb[0].mxu0
  %578 = vmatprep.mubr.f32.mxu0 0.0
  %579 = vmatmul.mubr.f32.gmra.mrb[0].mxu0 %v487
  %v580 = vpop.f32.mrb[0].mxu0
  %v581 = vadd.f32 %v469, %v580
  %v582 = vpop.f32.mrb[0].mxu0
  %583 = vdwg.mxu0
  %v584 = vxor.u32 %v556, 2147483648
  %v585 = vxor.u32 %v561, 2147483648
  %v586 = vxor.u32 %v566, 2147483648
  %v587 = vxor.u32 %v571, 2147483648
  %v588 = vxor.u32 %v576, 2147483648
  %v589 = vxor.u32 %v581, 2147483648
  %v590 = vmul.f32 %v584, 1.442695
  %v591 = vpow.pop %v590
  %v592 = vmul.f32 %v585, 1.442695
  %v593 = vpow.pop %v592
  %v594 = vmul.f32 %v586, 1.442695
  %v595 = vpow.pop %v594
  %v596 = vmul.f32 %v587, 1.442695
  %v597 = vpow.pop %v596
  %v598 = vmul.f32 %v588, 1.442695
  %v599 = vpow.pop %v598
  %v600 = vmul.f32 %v589, 1.442695
  %v601 = vpow.pop %v600
  %v602 = vadd.f32 %v591, 1.0
  %v603 = vadd.f32 %v593, 1.0
  %v604 = vadd.f32 %v595, 1.0
  %v605 = vadd.f32 %v597, 1.0
  %v606 = vadd.f32 %v599, 1.0
  %v607 = vadd.f32 %v601, 1.0
  %v608 = vrcp.pop %v602
  %v609 = vmul.f32 1.0, %v608
  %v610 = vrcp.pop %v603
  %v611 = vmul.f32 1.0, %v610
  %v612 = vrcp.pop %v604
  %v613 = vmul.f32 1.0, %v612
  %v614 = vrcp.pop %v605
  %v615 = vmul.f32 1.0, %v614
  %v616 = vrcp.pop %v606
  %v617 = vmul.f32 1.0, %v616
  %v618 = vrcp.pop %v607
  %v619 = vmul.f32 1.0, %v618
  %v620 = vld [vmem:[%s6] sm:$0xff]
  %v621 = vld [vmem:[%s6 + $0x8] sm:$0xff]
  %v622 = vld [vmem:[%s6 + $0x10] sm:$0xff]
  %v623 = vld [vmem:[%s6 + $0x18] sm:$0xff]
  %v624 = vld [vmem:[%s7] sm:$0x1]
  %v626 = vlaneseq
  %v627 = vshrl.u32 %v626, 7
  %v628 = vsub.s32 0, %v627
  %v629 = vrot.slane %v624, %v628
  %631 = vmatprep.subr.mxu0 0.0
  %632 = vmatpush1.msra.mxu0 %v620
  %633 = vmatprep.subr.mxu0 0.0
  %634 = vmatpush1.msra.mxu0 %v621
  %635 = vmatprep.subr.mxu0 0.0
  %636 = vmatpush1.msra.mxu0 %v622
  %637 = vmatprep.subr.mxu0 0.0
  %638 = vmatpush1.msra.mxu0 %v623
  %639 = vmatprep.subr.mxu0 0.0
  %640 = vmatpush1.msra.mxu0 0.0
  %641 = vmatprep.subr.mxu0 0.0
  %642 = vmatpush1.msra.mxu0 0.0
  %643 = vmatprep.subr.mxu0 0.0
  %644 = vmatpush1.msra.mxu0 0.0
  %645 = vmatprep.subr.mxu0 0.0
  %646 = vmatpush1.msra.mxu0 0.0
  %647 = vmatprep.subr.mxu0 0.0
  %648 = vmatpush1.msra.mxu0 0.0
  %649 = vmatprep.subr.mxu0 0.0
  %650 = vmatpush1.msra.mxu0 0.0
  %651 = vmatprep.subr.mxu0 0.0
  %652 = vmatpush1.msra.mxu0 0.0
  %653 = vmatprep.subr.mxu0 0.0
  %654 = vmatpush1.msra.mxu0 0.0
  %655 = vmatprep.subr.mxu0 0.0
  %656 = vmatpush1.msra.mxu0 0.0
  %657 = vmatprep.subr.mxu0 0.0
  %658 = vmatpush1.msra.mxu0 0.0
  %659 = vmatprep.subr.mxu0 0.0
  %660 = vmatpush1.msra.mxu0 0.0
  %661 = vmatprep.subr.mxu0 0.0
  %662 = vmatpush1.msra.mxu0 0.0
  %663 = vmatprep.subr.mxu0 0.0
  %664 = vmatpush1.msra.mxu0 0.0
  %665 = vmatprep.subr.mxu0 0.0
  %666 = vmatpush1.msra.mxu0 0.0
  %667 = vmatprep.subr.mxu0 0.0
  %668 = vmatpush1.msra.mxu0 0.0
  %669 = vmatprep.subr.mxu0 0.0
  %670 = vmatpush1.msra.mxu0 0.0
  %671 = vmatprep.subr.mxu0 0.0
  %672 = vmatpush1.msra.mxu0 0.0
  %673 = vmatprep.subr.mxu0 0.0
  %674 = vmatpush1.msra.mxu0 0.0
  %675 = vmatprep.subr.mxu0 0.0
  %676 = vmatpush1.msra.mxu0 0.0
  %677 = vmatprep.subr.mxu0 0.0
  %678 = vmatpush1.msra.mxu0 0.0
  %679 = vmatprep.subr.mxu0 0.0
  %680 = vmatpush1.msra.mxu0 0.0
  %681 = vmatprep.subr.mxu0 0.0
  %682 = vmatpush1.msra.mxu0 0.0
  %683 = vmatprep.subr.mxu0 0.0
  %684 = vmatpush1.msra.mxu0 0.0
  %685 = vmatprep.subr.mxu0 0.0
  %686 = vmatpush1.msra.mxu0 0.0
  %687 = vmatprep.subr.mxu0 0.0
  %688 = vmatpush1.msra.mxu0 0.0
  %689 = vmatprep.subr.mxu0 0.0
  %690 = vmatpush1.msra.mxu0 0.0
  %691 = vmatprep.subr.mxu0 0.0
  %692 = vmatpush1.msra.mxu0 0.0
  %693 = vmatprep.subr.mxu0 0.0
  %694 = vmatpush1.msra.mxu0 0.0
  %695 = vmatprep.mubr.f32.mxu0 0.0
  %696 = vmatmul.mubr.f32.gmra.mrb[0].mxu0 %v472
  %v697 = vpop.f32.mrb[0].mxu0
  %v698 = vadd.f32 %v629, %v697
  %v699 = vpop.f32.mrb[0].mxu0
  %700 = vmatprep.mubr.f32.mxu0 0.0
  %701 = vmatmul.mubr.f32.gmra.mrb[0].mxu0 %v475
  %v702 = vpop.f32.mrb[0].mxu0
  %v703 = vadd.f32 %v629, %v702
  %v704 = vpop.f32.mrb[0].mxu0
  %705 = vmatprep.mubr.f32.mxu0 0.0
  %706 = vmatmul.mubr.f32.gmra.mrb[0].mxu0 %v478
  %v707 = vpop.f32.mrb[0].mxu0
  %v708 = vadd.f32 %v629, %v707
  %v709 = vpop.f32.mrb[0].mxu0
  %710 = vmatprep.mubr.f32.mxu0 0.0
  %711 = vmatmul.mubr.f32.gmra.mrb[0].mxu0 %v481
  %v712 = vpop.f32.mrb[0].mxu0
  %v713 = vadd.f32 %v629, %v712
  %v714 = vpop.f32.mrb[0].mxu0
  %715 = vmatprep.mubr.f32.mxu0 0.0
  %716 = vmatmul.mubr.f32.gmra.mrb[0].mxu0 %v484
  %v717 = vpop.f32.mrb[0].mxu0
  %v718 = vadd.f32 %v629, %v717
  %v719 = vpop.f32.mrb[0].mxu0
  %720 = vmatprep.mubr.f32.mxu0 0.0
  %721 = vmatmul.mubr.f32.gmra.mrb[0].mxu0 %v487
  %v722 = vpop.f32.mrb[0].mxu0
  %v723 = vadd.f32 %v629, %v722
  %v724 = vpop.f32.mrb[0].mxu0
  %725 = vdwg.mxu0
  %v726 = vmax.f32 %v698, 0.0
  %v727 = vmax.f32 %v703, 0.0
  %v728 = vmax.f32 %v708, 0.0
  %v729 = vmax.f32 %v713, 0.0
  %v730 = vmax.f32 %v718, 0.0
  %v731 = vmax.f32 %v723, 0.0
  %v732 = vmul.f32 %v609, %v726
  %v733 = vmul.f32 %v611, %v727
  %v734 = vmul.f32 %v613, %v728
  %v735 = vmul.f32 %v615, %v729
  %v736 = vmul.f32 %v617, %v730
  %v737 = vmul.f32 %v619, %v731
  %v738 = vsub.f32 1.0, %v609
  %v739 = vsub.f32 1.0, %v611
  %v740 = vsub.f32 1.0, %v613
  %v741 = vsub.f32 1.0, %v615
  %v742 = vsub.f32 1.0, %v617
  %v743 = vsub.f32 1.0, %v619
  %v744 = vmul.f32 %v738, %v454
  %v745 = vmul.f32 %v739, %v455
  %v746 = vmul.f32 %v740, %v456
  %v747 = vmul.f32 %v741, %v457
  %v748 = vmul.f32 %v742, %v458
  %v749 = vmul.f32 %v743, %v459
  %v750 = vadd.f32 %v732, %v744
  %v751 = vadd.f32 %v733, %v745
  %v752 = vadd.f32 %v734, %v746
  %v753 = vadd.f32 %v735, %v747
  %v754 = vadd.f32 %v736, %v748
  %v755 = vadd.f32 %v737, %v749
  %756 = vst.msk [vmem:[%s10] sm:$0xff] %vm174, %v750
  %757 = vst.msk [vmem:[%s10 + $0x8] sm:$0xff] %vm174, %v751
  %758 = vst.msk [vmem:[%s10 + $0x10] sm:$0xff] %vm174, %v752
  %759 = vst.msk [vmem:[%s10 + $0x18] sm:$0xff] %vm174, %v753
  %760 = vst.msk [vmem:[%s10 + $0x20] sm:$0xff] %vm174, %v754
  %761 = vst.msk [vmem:[%s10 + $0x28] sm:$0xff] %vm174, %v755
  // Predicated region
  $region42: #{bidaf_forward.13} parent=0 // pred_check
    _
  $region43: #{bidaf_forward.13} parent=0 // pred_check_branch
    %763 = sbr.rel (0) target = $region45
  $region44: #{bidaf_forward.13} parent=0 // pred_region
    _
  $region45: #{bidaf_forward.13} parent=0 // pred_fallthru
    _
  // Predicated region
  $region46: #{bidaf_forward.13} parent=0 // pred_check
    _
  $region47: #{bidaf_forward.13} parent=0 // pred_check_branch
    %765 = sbr.rel (0) target = $region49
  $region48: #{bidaf_forward.13} parent=0 // pred_region
    _
  $region49: #{bidaf_forward.13} parent=0 // pred_fallthru
    _

// kernel: bidaf_forward.15
$region0: #{bidaf_forward.15}
  #allocation0 [shape = 'u32[]', space=smem, size = 0x4, offset = 0x4, fixed_abs, tag = 'smem constant byte address 0x4 - core index']
  #allocation1 [shape = 'u32[144,128]{1,0:T(1,128)}', space=vmem, size = 0x12000, scoped, tag = 'internal scratch']
  %s0 = inlined_call_operand.vmem [shape: f32[16,2,256], index: 0, kind: input, shape index: {}]
  %s1 = inlined_call_operand.vmem [shape: f32[16,2,1], index: 1, kind: input, shape index: {}]
  %s2 = inlined_call_operand.vmem [shape: f32[32,128], index: 2, kind: input, shape index: {}]
  %s3 = inlined_call_operand.vmem [shape: f32[1,128], index: 3, kind: input, shape index: {}]
  %s4 = inlined_call_operand.vmem [shape: f32[32,128], index: 4, kind: input, shape index: {}]
  %s5 = inlined_call_operand.vmem [shape: f32[1,128], index: 5, kind: input, shape index: {}]
  %s6 = inlined_call_operand.vmem [shape: f32[16,2,64], index: 6, kind: output, shape index: {}]
  %s7 = sld [smem:[#allocation0]]
  $region41: #{bidaf_forward.15} parent=0
    _
  %s9 = ssub.s32 1, %s7
  %s10 = scalar_select 0, %s9, %s7
  // Predicated region
  $region2: #{bidaf_forward.15} parent=0 // pred_check
    _
  $region3: #{bidaf_forward.15} parent=0 // pred_check_branch
    %12 = sbr.rel (0) target = $region5
  $region4: #{bidaf_forward.15} parent=0 // pred_region
    _
  $region5: #{bidaf_forward.15} parent=0 // pred_fallthru
    _
  // Predicated region
  $region6: #{bidaf_forward.15} parent=0 // pred_check
    _
  $region7: #{bidaf_forward.15} parent=0 // pred_check_branch
    %14 = sbr.rel (0) target = $region9
  $region8: #{bidaf_forward.15} parent=0 // pred_region
    _
  $region9: #{bidaf_forward.15} parent=0 // pred_fallthru
    _
  // Predicated region
  $region10: #{bidaf_forward.15} parent=0 // pred_check
    _
  $region11: #{bidaf_forward.15} parent=0 // pred_check_branch
    %16 = sbr.rel (0) target = $region13
  $region12: #{bidaf_forward.15} parent=0 // pred_region
    _
  $region13: #{bidaf_forward.15} parent=0 // pred_fallthru
    _
  // Predicated region
  $region14: #{bidaf_forward.15} parent=0 // pred_check
    _
  $region15: #{bidaf_forward.15} parent=0 // pred_check_branch
    %18 = sbr.rel (0) target = $region17
  $region16: #{bidaf_forward.15} parent=0 // pred_region
    _
  $region17: #{bidaf_forward.15} parent=0 // pred_fallthru
    _
  // Predicated region
  $region18: #{bidaf_forward.15} parent=0 // pred_check
    _
  $region19: #{bidaf_forward.15} parent=0 // pred_check_branch
    %20 = sbr.rel (0) target = $region21
  $region20: #{bidaf_forward.15} parent=0 // pred_region
    _
  $region21: #{bidaf_forward.15} parent=0 // pred_fallthru
    _
  // Predicated region
  $region22: #{bidaf_forward.15} parent=0 // pred_check
    _
  $region23: #{bidaf_forward.15} parent=0 // pred_check_branch
    %22 = sbr.rel (0) target = $region25
  $region24: #{bidaf_forward.15} parent=0 // pred_region
    _
  $region25: #{bidaf_forward.15} parent=0 // pred_fallthru
    _
  %v23 = vld [vmem:[%s2] sm:$0xff]
  %v24 = vld [vmem:[%s2 + $0x8] sm:$0xff]
  %v25 = vld [vmem:[%s2 + $0x10] sm:$0xff]
  %v26 = vld [vmem:[%s2 + $0x18] sm:$0xff]
  %v27 = vld [vmem:[%s3] sm:$0x1]
  %v28 = vld [vmem:[%s4] sm:$0xff]
  %v29 = vld [vmem:[%s4 + $0x8] sm:$0xff]
  %v30 = vld [vmem:[%s4 + $0x10] sm:$0xff]
  %v31 = vld [vmem:[%s4 + $0x18] sm:$0xff]
  %v32 = vld [vmem:[%s5] sm:$0x1]
  loop: start=0, step=1, limit=16
  $region26: #{bidaf_forward.15} parent=0 // loop_pre_header
    _
  $region27: #{bidaf_forward.15} parent=0 // loop_header
    %s34 = sphi 0, %s38
    %p35 = scmp.ge.s32.totalorder %s34, 16
    %v39 = vphi 0.0, %v188
    %v40 = vphi 0.0, %v200
    %v41 = vphi 0.0, %v340
    %v42 = vphi 0.0, %v352
  $region28: #{bidaf_forward.15} parent=0 // loop_header_branch
    %37 = sbr.rel (%p35) target = $region32
  $region29: #{bidaf_forward.15} parent=0 // loop_body
    %s43 = ssub.s32 15, %s34
    %s44 = smul.u32 %s34, 2
    %s45 = smul.addr %s44, 2
    %s46 = scalar_lea.vmem %s0, %s45
    %v47 = vld [vmem:[%s46] sm:$0xf]
    %s48 = smul.u32 %s43, 2
    %s49 = smul.addr %s48, 2
    %s50 = scalar_lea.vmem %s0, %s49
    %v51 = vld [vmem:[%s50] sm:$0xf]
    %s52 = scalar_lea.vmem %s1, %s44
    %v53 = vld [vmem:[%s52] sm:$0x3]
    %vm54 = vcmask 261120
    %v56 = vsel %vm54, %v39, 0
    %58 = vmatprep.subr.mxu0 0.0
    %59 = vmatpush1.msra.mxu0 %v23
    %60 = vmatprep.subr.mxu0 0.0
    %61 = vmatpush1.msra.mxu0 %v24
    %62 = vmatprep.subr.mxu0 0.0
    %63 = vmatpush1.msra.mxu0 %v25
    %64 = vmatprep.subr.mxu0 0.0
    %65 = vmatpush1.msra.mxu0 %v26
    %66 = vmatprep.subr.mxu0 0.0
    %67 = vmatpush1.msra.mxu0 0.0
    %68 = vmatprep.subr.mxu0 0.0
    %69 = vmatpush1.msra.mxu0 0.0
    %70 = vmatprep.subr.mxu0 0.0
    %71 = vmatpush1.msra.mxu0 0.0
    %72 = vmatprep.subr.mxu0 0.0
    %73 = vmatpush1.msra.mxu0 0.0
    %74 = vmatprep.subr.mxu0 0.0
    %75 = vmatpush1.msra.mxu0 0.0
    %76 = vmatprep.subr.mxu0 0.0
    %77 = vmatpush1.msra.mxu0 0.0
    %78 = vmatprep.subr.mxu0 0.0
    %79 = vmatpush1.msra.mxu0 0.0
    %80 = vmatprep.subr.mxu0 0.0
    %81 = vmatpush1.msra.mxu0 0.0
    %82 = vmatprep.subr.mxu0 0.0
    %83 = vmatpush1.msra.mxu0 0.0
    %84 = vmatprep.subr.mxu0 0.0
    %85 = vmatpush1.msra.mxu0 0.0
    %86 = vmatprep.subr.mxu0 0.0
    %87 = vmatpush1.msra.mxu0 0.0
    %88 = vmatprep.subr.mxu0 0.0
    %89 = vmatpush1.msra.mxu0 0.0
    %90 = vmatprep.subr.mxu0 0.0
    %91 = vmatpush1.msra.mxu0 0.0
    %92 = vmatprep.subr.mxu0 0.0
    %93 = vmatpush1.msra.mxu0 0.0
    %94 = vmatprep.subr.mxu0 0.0
    %95 = vmatpush1.msra.mxu0 0.0
    %96 = vmatprep.subr.mxu0 0.0
    %97 = vmatpush1.msra.mxu0 0.0
    %98 = vmatprep.subr.mxu0 0.0
    %99 = vmatpush1.msra.mxu0 0.0
    %100 = vmatprep.subr.mxu0 0.0
    %101 = vmatpush1.msra.mxu0 0.0
    %102 = vmatprep.subr.mxu0 0.0
    %103 = vmatpush1.msra.mxu0 0.0
    %104 = vmatprep.subr.mxu0 0.0
    %105 = vmatpush1.msra.mxu0 0.0
    %106 = vmatprep.subr.mxu0 0.0
    %107 = vmatpush1.msra.mxu0 0.0
    %108 = vmatprep.subr.mxu0 0.0
    %109 = vmatpush1.msra.mxu0 0.0
    %110 = vmatprep.subr.mxu0 0.0
    %111 = vmatpush1.msra.mxu0 0.0
    %112 = vmatprep.subr.mxu0 0.0
    %113 = vmatpush1.msra.mxu0 0.0
    %114 = vmatprep.subr.mxu0 0.0
    %115 = vmatpush1.msra.mxu0 0.0
    %116 = vmatprep.subr.mxu0 0.0
    %117 = vmatpush1.msra.mxu0 0.0
    %118 = vmatprep.subr.mxu0 0.0
    %119 = vmatpush1.msra.mxu0 0.0
    %120 = vmatprep.subr.mxu0 0.0
    %121 = vmatpush1.msra.mxu0 0.0
    %122 = vmatprep.mubr.f32.mxu0 0.0
    %123 = vmatmul.mubr.f32.gmra.mrb[0].mxu0 %v56
    %v124 = vpop.f32.mrb[0].mxu0
    %v125 = vadd.f32 0.0, %v124
    %v126 = vpop.f32.mrb[0].mxu0
    %127 = vdwg.mxu0
    %v128 = vadd.f32 %v47, %v125
    %v130 = vlaneseq
    %v131 = vshrl.u32 %v130, 7
    %v132 = vsub.s32 0, %v131
    %v133 = vrot.slane %v27, %v132
    %v135 = vadd.f32 %v128, %v133
    %v136 = vxor.u32 %v135, 2147483648
    %v137 = vmul.f32 %v136, 1.442695
    %v138 = vpow.pop %v137
    %v139 = vadd.f32 %v138, 1.0
    %v140 = vrcp.pop %v139
    %v141 = vmul.f32 1.0, %v140
    %v142 = vtanh.pop %v135
    %v145 = vunpack.c.l.s4 1983009808
    %v146 = vunpack.c.0.s8 %v145
    %v147 = vlaneseq
    %v148 = vshrl.u32 %v147, 7
    %v149 = vsub.s32 %v146, %v148
    %v150 = vrot.slane %v40, %v149
    %151 = vrot.lane.b32.xlu0 %v150, 32
    %v152 = vpop.permute.xlu0 %151
    %v154 = vmul.f32 %v141, %v152
    %156 = vrot.lane.b32.xlu0 %v142, 64
    %v157 = vpop.permute.xlu0 %156
    %v159 = vmul.f32 %v141, %v157
    %161 = vrot.lane.b32.xlu0 %v159, 32
    %v162 = vpop.permute.xlu0 %161
    %v164 = vadd.f32 %v154, %v162
    %v165 = vtanh.pop %v164
    %167 = vrot.lane.b32.xlu0 %v165, 64
    %v168 = vpop.permute.xlu0 %167
    %v170 = vmul.f32 %v141, %v168
    %vm171 = vcmp.ne.f32.partialorder %v53, 0.0
    %v172 = vsel %vm171, 1, 0
    %173 = vset.pattern.permute.xlu0 0
    %174 = vperm.xlu0 %173, %v172
    %v175 = vpop.permute.xlu0 %174
    %vm176 = vcmp.eq.s32.totalorder %v175, 1
    %v179 = vunpack.c.l.s4 1983009808
    %v180 = vunpack.c.0.s8 %v179
    %v181 = vlaneseq
    %v182 = vshrl.u32 %v181, 7
    %v183 = vsub.s32 %v180, %v182
    %v184 = vrot.slane %v170, %v183
    %185 = vrot.lane.b32.xlu0 %v184, 32
    %v186 = vpop.permute.xlu0 %185
    %v188 = vsel %vm176, %v186, %v39
    %v191 = vunpack.c.l.s4 1983009808
    %v192 = vunpack.c.0.s8 %v191
    %v193 = vlaneseq
    %v194 = vshrl.u32 %v193, 7
    %v195 = vsub.s32 %v192, %v194
    %v196 = vrot.slane %v164, %v195
    %197 = vrot.lane.b32.xlu0 %v196, 96
    %v198 = vpop.permute.xlu0 %197
    %v200 = vsel %vm176, %v198, %v40
    %v201 = vsel %vm176, %v186, 0.0
    %s202 = scalar_lea.vmem %s1, %s48
    %v203 = vld [vmem:[%s202] sm:$0x3]
    %v205 = vsel %vm54, %v41, 0
    %207 = vmatprep.subr.mxu0 0.0
    %208 = vmatpush1.msra.mxu0 %v28
    %209 = vmatprep.subr.mxu0 0.0
    %210 = vmatpush1.msra.mxu0 %v29
    %211 = vmatprep.subr.mxu0 0.0
    %212 = vmatpush1.msra.mxu0 %v30
    %213 = vmatprep.subr.mxu0 0.0
    %214 = vmatpush1.msra.mxu0 %v31
    %215 = vmatprep.subr.mxu0 0.0
    %216 = vmatpush1.msra.mxu0 0.0
    %217 = vmatprep.subr.mxu0 0.0
    %218 = vmatpush1.msra.mxu0 0.0
    %219 = vmatprep.subr.mxu0 0.0
    %220 = vmatpush1.msra.mxu0 0.0
    %221 = vmatprep.subr.mxu0 0.0
    %222 = vmatpush1.msra.mxu0 0.0
    %223 = vmatprep.subr.mxu0 0.0
    %224 = vmatpush1.msra.mxu0 0.0
    %225 = vmatprep.subr.mxu0 0.0
    %226 = vmatpush1.msra.mxu0 0.0
    %227 = vmatprep.subr.mxu0 0.0
    %228 = vmatpush1.msra.mxu0 0.0
    %229 = vmatprep.subr.mxu0 0.0
    %230 = vmatpush1.msra.mxu0 0.0
    %231 = vmatprep.subr.mxu0 0.0
    %232 = vmatpush1.msra.mxu0 0.0
    %233 = vmatprep.subr.mxu0 0.0
    %234 = vmatpush1.msra.mxu0 0.0
    %235 = vmatprep.subr.mxu0 0.0
    %236 = vmatpush1.msra.mxu0 0.0
    %237 = vmatprep.subr.mxu0 0.0
    %238 = vmatpush1.msra.mxu0 0.0
    %239 = vmatprep.subr.mxu0 0.0
    %240 = vmatpush1.msra.mxu0 0.0
    %241 = vmatprep.subr.mxu0 0.0
    %242 = vmatpush1.msra.mxu0 0.0
    %243 = vmatprep.subr.mxu0 0.0
    %244 = vmatpush1.msra.mxu0 0.0
    %245 = vmatprep.subr.mxu0 0.0
    %246 = vmatpush1.msra.mxu0 0.0
    %247 = vmatprep.subr.mxu0 0.0
    %248 = vmatpush1.msra.mxu0 0.0
    %249 = vmatprep.subr.mxu0 0.0
    %250 = vmatpush1.msra.mxu0 0.0
    %251 = vmatprep.subr.mxu0 0.0
    %252 = vmatpush1.msra.mxu0 0.0
    %253 = vmatprep.subr.mxu0 0.0
    %254 = vmatpush1.msra.mxu0 0.0
    %255 = vmatprep.subr.mxu0 0.0
    %256 = vmatpush1.msra.mxu0 0.0
    %257 = vmatprep.subr.mxu0 0.0
    %258 = vmatpush1.msra.mxu0 0.0
    %259 = vmatprep.subr.mxu0 0.0
    %260 = vmatpush1.msra.mxu0 0.0
    %261 = vmatprep.subr.mxu0 0.0
    %262 = vmatpush1.msra.mxu0 0.0
    %263 = vmatprep.subr.mxu0 0.0
    %264 = vmatpush1.msra.mxu0 0.0
    %265 = vmatprep.subr.mxu0 0.0
    %266 = vmatpush1.msra.mxu0 0.0
    %267 = vmatprep.subr.mxu0 0.0
    %268 = vmatpush1.msra.mxu0 0.0
    %269 = vmatprep.subr.mxu0 0.0
    %270 = vmatpush1.msra.mxu0 0.0
    %271 = vmatprep.mubr.f32.mxu0 0.0
    %272 = vmatmul.mubr.f32.gmra.mrb[0].mxu0 %v205
    %v273 = vpop.f32.mrb[0].mxu0
    %v274 = vadd.f32 0.0, %v273
    %v275 = vpop.f32.mrb[0].mxu0
    %276 = vdwg.mxu0
    %v278 = vrot.slane %v51, 2
    %v280 = vadd.f32 %v278, %v274
    %v282 = vlaneseq
    %v283 = vshrl.u32 %v282, 7
    %v284 = vsub.s32 0, %v283
    %v285 = vrot.slane %v32, %v284
    %v287 = vadd.f32 %v280, %v285
    %v288 = vxor.u32 %v287, 2147483648
    %v289 = vmul.f32 %v288, 1.442695
    %v290 = vpow.pop %v289
    %v291 = vadd.f32 %v290, 1.0
    %v292 = vrcp.pop %v291
    %v293 = vmul.f32 1.0, %v292
    %v294 = vtanh.pop %v287
    %v297 = vunpack.c.l.s4 1983009808
    %v298 = vunpack.c.0.s8 %v297
    %v299 = vlaneseq
    %v300 = vshrl.u32 %v299, 7
    %v301 = vsub.s32 %v298, %v300
    %v302 = vrot.slane %v42, %v301
    %303 = vrot.lane.b32.xlu0 %v302, 32
    %v304 = vpop.permute.xlu0 %303
    %v306 = vmul.f32 %v293, %v304
    %308 = vrot.lane.b32.xlu0 %v294, 64
    %v309 = vpop.permute.xlu0 %308
    %v311 = vmul.f32 %v293, %v309
    %313 = vrot.lane.b32.xlu0 %v311, 32
    %v314 = vpop.permute.xlu0 %313
    %v316 = vadd.f32 %v306, %v314
    %v317 = vtanh.pop %v316
    %319 = vrot.lane.b32.xlu0 %v317, 64
    %v320 = vpop.permute.xlu0 %319
    %v322 = vmul.f32 %v293, %v320
    %vm323 = vcmp.ne.f32.partialorder %v203, 0.0
    %v324 = vsel %vm323, 1, 0
    %325 = vset.pattern.permute.xlu0 0
    %326 = vperm.xlu0 %325, %v324
    %v327 = vpop.permute.xlu0 %326
    %vm328 = vcmp.eq.s32.totalorder %v327, 1
    %v331 = vunpack.c.l.s4 1983009808
    %v332 = vunpack.c.0.s8 %v331
    %v333 = vlaneseq
    %v334 = vshrl.u32 %v333, 7
    %v335 = vsub.s32 %v332, %v334
    %v336 = vrot.slane %v322, %v335
    %337 = vrot.lane.b32.xlu0 %v336, 32
    %v338 = vpop.permute.xlu0 %337
    %v340 = vsel %vm328, %v338, %v41
    %v343 = vunpack.c.l.s4 1983009808
    %v344 = vunpack.c.0.s8 %v343
    %v345 = vlaneseq
    %v346 = vshrl.u32 %v345, 7
    %v347 = vsub.s32 %v344, %v346
    %v348 = vrot.slane %v316, %v347
    %349 = vrot.lane.b32.xlu0 %v348, 96
    %v350 = vpop.permute.xlu0 %349
    %v352 = vsel %vm328, %v350, %v42
    %v353 = vsel %vm328, %v338, 0.0
    %s354 = scalar_lea.vmem %s6, %s44
    %vm355 = vcmask 254976
    %356 = vst.msk [vmem:[%s354] sm:$0x3] %vm355, %v201
    %358 = vrot.lane.b32.xlu0 %v353, 32
    %v359 = vpop.permute.xlu0 %358
    %s361 = scalar_lea.vmem %s6, %s48
    %vm362 = vcmask 517376
    %363 = vst.msk [vmem:[%s361] sm:$0x3] %vm362, %v359
  $region30: #{bidaf_forward.15} parent=0 // loop_footer
    %s38 = sadd.s32 1, %s34
  $region31: #{bidaf_forward.15} parent=0 // loop_footer_branch
    %33 = sbr.rel target = $region27
  $region32: #{bidaf_forward.15} parent=0 // loop_exit
    _
  // Predicated region
  $region33: #{bidaf_forward.15} parent=0 // pred_check
    _
  $region34: #{bidaf_forward.15} parent=0 // pred_check_branch
    %365 = sbr.rel (0) target = $region36
  $region35: #{bidaf_forward.15} parent=0 // pred_region
    _
  $region36: #{bidaf_forward.15} parent=0 // pred_fallthru
    _
  // Predicated region
  $region37: #{bidaf_forward.15} parent=0 // pred_check
    _
  $region38: #{bidaf_forward.15} parent=0 // pred_check_branch
    %367 = sbr.rel (0) target = $region40
  $region39: #{bidaf_forward.15} parent=0 // pred_region
    _
  $region40: #{bidaf_forward.15} parent=0 // pred_fallthru
    _

// kernel: bidaf_forward.17
$region0: #{bidaf_forward.17}
  #allocation0 [shape = 'u32[]', space=smem, size = 0x4, offset = 0x4, fixed_abs, tag = 'smem constant byte address 0x4 - core index']
  #allocation1 [shape = 'u32[144,128]{1,0:T(1,128)}', space=vmem, size = 0x12000, scoped, tag = 'internal scratch']
  %s0 = inlined_call_operand.vmem [shape: f32[8,2,256], index: 0, kind: input, shape index: {}]
  %s1 = inlined_call_operand.vmem [shape: f32[8,2,1], index: 1, kind: input, shape index: {}]
  %s2 = inlined_call_operand.vmem [shape: f32[32,128], index: 2, kind: input, shape index: {}]
  %s3 = inlined_call_operand.vmem [shape: f32[1,128], index: 3, kind: input, shape index: {}]
  %s4 = inlined_call_operand.vmem [shape: f32[32,128], index: 4, kind: input, shape index: {}]
  %s5 = inlined_call_operand.vmem [shape: f32[1,128], index: 5, kind: input, shape index: {}]
  %s6 = inlined_call_operand.vmem [shape: f32[8,2,64], index: 6, kind: output, shape index: {}]
  %s7 = sld [smem:[#allocation0]]
  $region41: #{bidaf_forward.17} parent=0
    _
  %s9 = ssub.s32 1, %s7
  %s10 = scalar_select 0, %s9, %s7
  // Predicated region
  $region2: #{bidaf_forward.17} parent=0 // pred_check
    _
  $region3: #{bidaf_forward.17} parent=0 // pred_check_branch
    %12 = sbr.rel (0) target = $region5
  $region4: #{bidaf_forward.17} parent=0 // pred_region
    _
  $region5: #{bidaf_forward.17} parent=0 // pred_fallthru
    _
  // Predicated region
  $region6: #{bidaf_forward.17} parent=0 // pred_check
    _
  $region7: #{bidaf_forward.17} parent=0 // pred_check_branch
    %14 = sbr.rel (0) target = $region9
  $region8: #{bidaf_forward.17} parent=0 // pred_region
    _
  $region9: #{bidaf_forward.17} parent=0 // pred_fallthru
    _
  // Predicated region
  $region10: #{bidaf_forward.17} parent=0 // pred_check
    _
  $region11: #{bidaf_forward.17} parent=0 // pred_check_branch
    %16 = sbr.rel (0) target = $region13
  $region12: #{bidaf_forward.17} parent=0 // pred_region
    _
  $region13: #{bidaf_forward.17} parent=0 // pred_fallthru
    _
  // Predicated region
  $region14: #{bidaf_forward.17} parent=0 // pred_check
    _
  $region15: #{bidaf_forward.17} parent=0 // pred_check_branch
    %18 = sbr.rel (0) target = $region17
  $region16: #{bidaf_forward.17} parent=0 // pred_region
    _
  $region17: #{bidaf_forward.17} parent=0 // pred_fallthru
    _
  // Predicated region
  $region18: #{bidaf_forward.17} parent=0 // pred_check
    _
  $region19: #{bidaf_forward.17} parent=0 // pred_check_branch
    %20 = sbr.rel (0) target = $region21
  $region20: #{bidaf_forward.17} parent=0 // pred_region
    _
  $region21: #{bidaf_forward.17} parent=0 // pred_fallthru
    _
  // Predicated region
  $region22: #{bidaf_forward.17} parent=0 // pred_check
    _
  $region23: #{bidaf_forward.17} parent=0 // pred_check_branch
    %22 = sbr.rel (0) target = $region25
  $region24: #{bidaf_forward.17} parent=0 // pred_region
    _
  $region25: #{bidaf_forward.17} parent=0 // pred_fallthru
    _
  %v23 = vld [vmem:[%s2] sm:$0xff]
  %v24 = vld [vmem:[%s2 + $0x8] sm:$0xff]
  %v25 = vld [vmem:[%s2 + $0x10] sm:$0xff]
  %v26 = vld [vmem:[%s2 + $0x18] sm:$0xff]
  %v27 = vld [vmem:[%s3] sm:$0x1]
  %v28 = vld [vmem:[%s4] sm:$0xff]
  %v29 = vld [vmem:[%s4 + $0x8] sm:$0xff]
  %v30 = vld [vmem:[%s4 + $0x10] sm:$0xff]
  %v31 = vld [vmem:[%s4 + $0x18] sm:$0xff]
  %v32 = vld [vmem:[%s5] sm:$0x1]
  loop: start=0, step=1, limit=8
  $region26: #{bidaf_forward.17} parent=0 // loop_pre_header
    _
  $region27: #{bidaf_forward.17} parent=0 // loop_header
    %s34 = sphi 0, %s38
    %p35 = scmp.ge.s32.totalorder %s34, 8
    %v39 = vphi 0.0, %v188
    %v40 = vphi 0.0, %v200
    %v41 = vphi 0.0, %v340
    %v42 = vphi 0.0, %v352
  $region28: #{bidaf_forward.17} parent=0 // loop_header_branch
    %37 = sbr.rel (%p35) target = $region32
  $region29: #{bidaf_forward.17} parent=0 // loop_body
    %s43 = ssub.s32 7, %s34
    %s44 = smul.u32 %s34, 2
    %s45 = smul.addr %s44, 2
    %s46 = scalar_lea.vmem %s0, %s45
    %v47 = vld [vmem:[%s46] sm:$0xf]
    %s48 = smul.u32 %s43, 2
    %s49 = smul.addr %s48, 2
    %s50 = scalar_lea.vmem %s0, %s49
    %v51 = vld [vmem:[%s50] sm:$0xf]
    %s52 = scalar_lea.vmem %s1, %s44
    %v53 = vld [vmem:[%s52] sm:$0x3]
    %vm54 = vcmask 261120
    %v56 = vsel %vm54, %v39, 0
    %58 = vmatprep.subr.mxu0 0.0
    %59 = vmatpush1.msra.mxu0 %v23
    %60 = vmatprep.subr.mxu0 0.0
    %61 = vmatpush1.msra.mxu0 %v24
    %62 = vmatprep.subr.mxu0 0.0
    %63 = vmatpush1.msra.mxu0 %v25
    %64 = vmatprep.subr.mxu0 0.0
    %65 = vmatpush1.msra.mxu0 %v26
    %66 = vmatprep.subr.mxu0 0.0
    %67 = vmatpush1.msra.mxu0 0.0
    %68 = vmatprep.subr.mxu0 0.0
    %69 = vmatpush1.msra.mxu0 0.0
    %70 = vmatprep.subr.mxu0 0.0
    %71 = vmatpush1.msra.mxu0 0.0
    %72 = vmatprep.subr.mxu0 0.0
    %73 = vmatpush1.msra.mxu0 0.0
    %74 = vmatprep.subr.mxu0 0.0
    %75 = vmatpush1.msra.mxu0 0.0
    %76 = vmatprep.subr.mxu0 0.0
    %77 = vmatpush1.msra.mxu0 0.0
    %78 = vmatprep.subr.mxu0 0.0
    %79 = vmatpush1.msra.mxu0 0.0
    %80 = vmatprep.subr.mxu0 0.0
    %81 = vmatpush1.msra.mxu0 0.0
    %82 = vmatprep.subr.mxu0 0.0
    %83 = vmatpush1.msra.mxu0 0.0
    %84 = vmatprep.subr.mxu0 0.0
    %85 = vmatpush1.msra.mxu0 0.0
    %86 = vmatprep.subr.mxu0 0.0
    %87 = vmatpush1.msra.mxu0 0.0
    %88 = vmatprep.subr.mxu0 0.0
    %89 = vmatpush1.msra.mxu0 0.0
    %90 = vmatprep.subr.mxu0 0.0
    %91 = vmatpush1.msra.mxu0 0.0
    %92 = vmatprep.subr.mxu0 0.0
    %93 = vmatpush1.msra.mxu0 0.0
    %94 = vmatprep.subr.mxu0 0.0
    %95 = vmatpush1.msra.mxu0 0.0
    %96 = vmatprep.subr.mxu0 0.0
    %97 = vmatpush1.msra.mxu0 0.0
    %98 = vmatprep.subr.mxu0 0.0
    %99 = vmatpush1.msra.mxu0 0.0
    %100 = vmatprep.subr.mxu0 0.0
    %101 = vmatpush1.msra.mxu0 0.0
    %102 = vmatprep.subr.mxu0 0.0
    %103 = vmatpush1.msra.mxu0 0.0
    %104 = vmatprep.subr.mxu0 0.0
    %105 = vmatpush1.msra.mxu0 0.0
    %106 = vmatprep.subr.mxu0 0.0
    %107 = vmatpush1.msra.mxu0 0.0
    %108 = vmatprep.subr.mxu0 0.0
    %109 = vmatpush1.msra.mxu0 0.0
    %110 = vmatprep.subr.mxu0 0.0
    %111 = vmatpush1.msra.mxu0 0.0
    %112 = vmatprep.subr.mxu0 0.0
    %113 = vmatpush1.msra.mxu0 0.0
    %114 = vmatprep.subr.mxu0 0.0
    %115 = vmatpush1.msra.mxu0 0.0
    %116 = vmatprep.subr.mxu0 0.0
    %117 = vmatpush1.msra.mxu0 0.0
    %118 = vmatprep.subr.mxu0 0.0
    %119 = vmatpush1.msra.mxu0 0.0
    %120 = vmatprep.subr.mxu0 0.0
    %121 = vmatpush1.msra.mxu0 0.0
    %122 = vmatprep.mubr.f32.mxu0 0.0
    %123 = vmatmul.mubr.f32.gmra.mrb[0].mxu0 %v56
    %v124 = vpop.f32.mrb[0].mxu0
    %v125 = vadd.f32 0.0, %v124
    %v126 = vpop.f32.mrb[0].mxu0
    %127 = vdwg.mxu0
    %v128 = vadd.f32 %v47, %v125
    %v130 = vlaneseq
    %v131 = vshrl.u32 %v130, 7
    %v132 = vsub.s32 0, %v131
    %v133 = vrot.slane %v27, %v132
    %v135 = vadd.f32 %v128, %v133
    %v136 = vxor.u32 %v135, 2147483648
    %v137 = vmul.f32 %v136, 1.442695
    %v138 = vpow.pop %v137
    %v139 = vadd.f32 %v138, 1.0
    %v140 = vrcp.pop %v139
    %v141 = vmul.f32 1.0, %v140
    %v142 = vtanh.pop %v135
    %v145 = vunpack.c.l.s4 1983009808
    %v146 = vunpack.c.0.s8 %v145
    %v147 = vlaneseq
    %v148 = vshrl.u32 %v147, 7
    %v149 = vsub.s32 %v146, %v148
    %v150 = vrot.slane %v40, %v149
    %151 = vrot.lane.b32.xlu0 %v150, 32
    %v152 = vpop.permute.xlu0 %151
    %v154 = vmul.f32 %v141, %v152
    %156 = vrot.lane.b32.xlu0 %v142, 64
    %v157 = vpop.permute.xlu0 %156
    %v159 = vmul.f32 %v141, %v157
    %161 = vrot.lane.b32.xlu0 %v159, 32
    %v162 = vpop.permute.xlu0 %161
    %v164 = vadd.f32 %v154, %v162
    %v165 = vtanh.pop %v164
    %167 = vrot.lane.b32.xlu0 %v165, 64
    %v168 = vpop.permute.xlu0 %167
    %v170 = vmul.f32 %v141, %v168
    %vm171 = vcmp.ne.f32.partialorder %v53, 0.0
    %v172 = vsel %vm171, 1, 0
    %173 = vset.pattern.permute.xlu0 0
    %174 = vperm.xlu0 %173, %v172
    %v175 = vpop.permute.xlu0 %174
    %vm176 = vcmp.eq.s32.totalorder %v175, 1
    %v179 = vunpack.c.l.s4 1983009808
    %v180 = vunpack.c.0.s8 %v179
    %v181 = vlaneseq
    %v182 = vshrl.u32 %v181, 7
    %v183 = vsub.s32 %v180, %v182
    %v184 = vrot.slane %v170, %v183
    %185 = vrot.lane.b32.xlu0 %v184, 32
    %v186 = vpop.permute.xlu0 %185
    %v188 = vsel %vm176, %v186, %v39
    %v191 = vunpack.c.l.s4 1983009808
    %v192 = vunpack.c.0.s8 %v191
    %v193 = vlaneseq
    %v194 = vshrl.u32 %v193, 7
    %v195 = vsub.s32 %v192, %v194
    %v196 = vrot.slane %v164, %v195
    %197 = vrot.lane.b32.xlu0 %v196, 96
    %v198 = vpop.permute.xlu0 %197
    %v200 = vsel %vm176, %v198, %v40
    %v201 = vsel %vm176, %v186, 0.0
    %s202 = scalar_lea.vmem %s1, %s48
    %v203 = vld [vmem:[%s202] sm:$0x3]
    %v205 = vsel %vm54, %v41, 0
    %207 = vmatprep.subr.mxu0 0.0
    %208 = vmatpush1.msra.mxu0 %v28
    %209 = vmatprep.subr.mxu0 0.0
    %210 = vmatpush1.msra.mxu0 %v29
    %211 = vmatprep.subr.mxu0 0.0
    %212 = vmatpush1.msra.mxu0 %v30
    %213 = vmatprep.subr.mxu0 0.0
    %214 = vmatpush1.msra.mxu0 %v31
    %215 = vmatprep.subr.mxu0 0.0
    %216 = vmatpush1.msra.mxu0 0.0
    %217 = vmatprep.subr.mxu0 0.0
    %218 = vmatpush1.msra.mxu0 0.0
    %219 = vmatprep.subr.mxu0 0.0
    %220 = vmatpush1.msra.mxu0 0.0
    %221 = vmatprep.subr.mxu0 0.0
    %222 = vmatpush1.msra.mxu0 0.0
    %223 = vmatprep.subr.mxu0 0.0
    %224 = vmatpush1.msra.mxu0 0.0
    %225 = vmatprep.subr.mxu0 0.0
    %226 = vmatpush1.msra.mxu0 0.0
    %227 = vmatprep.subr.mxu0 0.0
    %228 = vmatpush1.msra.mxu0 0.0
    %229 = vmatprep.subr.mxu0 0.0
    %230 = vmatpush1.msra.mxu0 0.0
    %231 = vmatprep.subr.mxu0 0.0
    %232 = vmatpush1.msra.mxu0 0.0
    %233 = vmatprep.subr.mxu0 0.0
    %234 = vmatpush1.msra.mxu0 0.0
    %235 = vmatprep.subr.mxu0 0.0
    %236 = vmatpush1.msra.mxu0 0.0
    %237 = vmatprep.subr.mxu0 0.0
    %238 = vmatpush1.msra.mxu0 0.0
    %239 = vmatprep.subr.mxu0 0.0
    %240 = vmatpush1.msra.mxu0 0.0
    %241 = vmatprep.subr.mxu0 0.0
    %242 = vmatpush1.msra.mxu0 0.0
    %243 = vmatprep.subr.mxu0 0.0
    %244 = vmatpush1.msra.mxu0 0.0
    %245 = vmatprep.subr.mxu0 0.0
    %246 = vmatpush1.msra.mxu0 0.0
    %247 = vmatprep.subr.mxu0 0.0
    %248 = vmatpush1.msra.mxu0 0.0
    %249 = vmatprep.subr.mxu0 0.0
    %250 = vmatpush1.msra.mxu0 0.0
    %251 = vmatprep.subr.mxu0 0.0
    %252 = vmatpush1.msra.mxu0 0.0
    %253 = vmatprep.subr.mxu0 0.0
    %254 = vmatpush1.msra.mxu0 0.0
    %255 = vmatprep.subr.mxu0 0.0
    %256 = vmatpush1.msra.mxu0 0.0
    %257 = vmatprep.subr.mxu0 0.0
    %258 = vmatpush1.msra.mxu0 0.0
    %259 = vmatprep.subr.mxu0 0.0
    %260 = vmatpush1.msra.mxu0 0.0
    %261 = vmatprep.subr.mxu0 0.0
    %262 = vmatpush1.msra.mxu0 0.0
    %263 = vmatprep.subr.mxu0 0.0
    %264 = vmatpush1.msra.mxu0 0.0
    %265 = vmatprep.subr.mxu0 0.0
    %266 = vmatpush1.msra.mxu0 0.0
    %267 = vmatprep.subr.mxu0 0.0
    %268 = vmatpush1.msra.mxu0 0.0
    %269 = vmatprep.subr.mxu0 0.0
    %270 = vmatpush1.msra.mxu0 0.0
    %271 = vmatprep.mubr.f32.mxu0 0.0
    %272 = vmatmul.mubr.f32.gmra.mrb[0].mxu0 %v205
    %v273 = vpop.f32.mrb[0].mxu0
    %v274 = vadd.f32 0.0, %v273
    %v275 = vpop.f32.mrb[0].mxu0
    %276 = vdwg.mxu0
    %v278 = vrot.slane %v51, 2
    %v280 = vadd.f32 %v278, %v274
    %v282 = vlaneseq
    %v283 = vshrl.u32 %v282, 7
    %v284 = vsub.s32 0, %v283
    %v285 = vrot.slane %v32, %v284
    %v287 = vadd.f32 %v280, %v285
    %v288 = vxor.u32 %v287, 2147483648
    %v289 = vmul.f32 %v288, 1.442695
    %v290 = vpow.pop %v289
    %v291 = vadd.f32 %v290, 1.0
    %v292 = vrcp.pop %v291
    %v293 = vmul.f32 1.0, %v292
    %v294 = vtanh.pop %v287
    %v297 = vunpack.c.l.s4 1983009808
    %v298 = vunpack.c.0.s8 %v297
    %v299 = vlaneseq
    %v300 = vshrl.u32 %v299, 7
    %v301 = vsub.s32 %v298, %v300
    %v302 = vrot.slane %v42, %v301
    %303 = vrot.lane.b32.xlu0 %v302, 32
    %v304 = vpop.permute.xlu0 %303
    %v306 = vmul.f32 %v293, %v304
    %308 = vrot.lane.b32.xlu0 %v294, 64
    %v309 = vpop.permute.xlu0 %308
    %v311 = vmul.f32 %v293, %v309
    %313 = vrot.lane.b32.xlu0 %v311, 32
    %v314 = vpop.permute.xlu0 %313
    %v316 = vadd.f32 %v306, %v314
    %v317 = vtanh.pop %v316
    %319 = vrot.lane.b32.xlu0 %v317, 64
    %v320 = vpop.permute.xlu0 %319
    %v322 = vmul.f32 %v293, %v320
    %vm323 = vcmp.ne.f32.partialorder %v203, 0.0
    %v324 = vsel %vm323, 1, 0
    %325 = vset.pattern.permute.xlu0 0
    %326 = vperm.xlu0 %325, %v324
    %v327 = vpop.permute.xlu0 %326
    %vm328 = vcmp.eq.s32.totalorder %v327, 1
    %v331 = vunpack.c.l.s4 1983009808
    %v332 = vunpack.c.0.s8 %v331
    %v333 = vlaneseq
    %v334 = vshrl.u32 %v333, 7
    %v335 = vsub.s32 %v332, %v334
    %v336 = vrot.slane %v322, %v335
    %337 = vrot.lane.b32.xlu0 %v336, 32
    %v338 = vpop.permute.xlu0 %337
    %v340 = vsel %vm328, %v338, %v41
    %v343 = vunpack.c.l.s4 1983009808
    %v344 = vunpack.c.0.s8 %v343
    %v345 = vlaneseq
    %v346 = vshrl.u32 %v345, 7
    %v347 = vsub.s32 %v344, %v346
    %v348 = vrot.slane %v316, %v347
    %349 = vrot.lane.b32.xlu0 %v348, 96
    %v350 = vpop.permute.xlu0 %349
    %v352 = vsel %vm328, %v350, %v42
    %v353 = vsel %vm328, %v338, 0.0
    %s354 = scalar_lea.vmem %s6, %s44
    %vm355 = vcmask 254976
    %356 = vst.msk [vmem:[%s354] sm:$0x3] %vm355, %v201
    %358 = vrot.lane.b32.xlu0 %v353, 32
    %v359 = vpop.permute.xlu0 %358
    %s361 = scalar_lea.vmem %s6, %s48
    %vm362 = vcmask 517376
    %363 = vst.msk [vmem:[%s361] sm:$0x3] %vm362, %v359
  $region30: #{bidaf_forward.17} parent=0 // loop_footer
    %s38 = sadd.s32 1, %s34
  $region31: #{bidaf_forward.17} parent=0 // loop_footer_branch
    %33 = sbr.rel target = $region27
  $region32: #{bidaf_forward.17} parent=0 // loop_exit
    _
  // Predicated region
  $region33: #{bidaf_forward.17} parent=0 // pred_check
    _
  $region34: #{bidaf_forward.17} parent=0 // pred_check_branch
    %365 = sbr.rel (0) target = $region36
  $region35: #{bidaf_forward.17} parent=0 // pred_region
    _
  $region36: #{bidaf_forward.17} parent=0 // pred_fallthru
    _
  // Predicated region
  $region37: #{bidaf_forward.17} parent=0 // pred_check
    _
  $region38: #{bidaf_forward.17} parent=0 // pred_check_branch
    %367 = sbr.rel (0) target = $region40
  $region39: #{bidaf_forward.17} parent=0 // pred_region
    _
  $region40: #{bidaf_forward.17} parent=0 // pred_fallthru
    _

// kernel: bidaf_forward.21
$region0: #{bidaf_forward.21}
  #allocation0 [shape = 'u32[]', space=smem, size = 0x4, offset = 0x4, fixed_abs, tag = 'smem constant byte address 0x4 - core index']
  #allocation1 [shape = 'u32[144,128]{1,0:T(1,128)}', space=vmem, size = 0x12000, scoped, tag = 'internal scratch']
  %s0 = inlined_call_operand.vmem [shape: f32[32,64], index: 0, kind: input, shape index: {}]
  %s1 = inlined_call_operand.vmem [shape: f32[64,256], index: 1, kind: input, shape index: {}]
  %s2 = inlined_call_operand.vmem [shape: f32[32,256], index: 2, kind: output, shape index: {}]
  %s3 = sld [smem:[#allocation0]]
  $region18: #{bidaf_forward.21} parent=0
    _
  %s5 = ssub.s32 1, %s3
  %s6 = scalar_select 0, %s5, %s3
  // Predicated region
  $region2: #{bidaf_forward.21} parent=0 // pred_check
    _
  $region3: #{bidaf_forward.21} parent=0 // pred_check_branch
    %8 = sbr.rel (0) target = $region5
  $region4: #{bidaf_forward.21} parent=0 // pred_region
    _
  $region5: #{bidaf_forward.21} parent=0 // pred_fallthru
    _
  // Predicated region
  $region6: #{bidaf_forward.21} parent=0 // pred_check
    _
  $region7: #{bidaf_forward.21} parent=0 // pred_check_branch
    %10 = sbr.rel (0) target = $region9
  $region8: #{bidaf_forward.21} parent=0 // pred_region
    _
  $region9: #{bidaf_forward.21} parent=0 // pred_fallthru
    _
  %v11 = vld [vmem:[%s0] sm:$0xff]
  %v12 = vld [vmem:[%s0 + $0x8] sm:$0xff]
  %v13 = vld [vmem:[%s0 + $0x10] sm:$0xff]
  %v14 = vld [vmem:[%s0 + $0x18] sm:$0xff]
  %v15 = vld [vmem:[%s1] sm:$0xff]
  %v16 = vld [vmem:[%s1 + $0x8] sm:$0xff]
  %v17 = vld [vmem:[%s1 + $0x10] sm:$0xff]
  %v18 = vld [vmem:[%s1 + $0x18] sm:$0xff]
  %v19 = vld [vmem:[%s1 + $0x20] sm:$0xff]
  %v20 = vld [vmem:[%s1 + $0x28] sm:$0xff]
  %v21 = vld [vmem:[%s1 + $0x30] sm:$0xff]
  %v22 = vld [vmem:[%s1 + $0x38] sm:$0xff]
  %v23 = vld [vmem:[%s1 + $0x40] sm:$0xff]
  %v24 = vld [vmem:[%s1 + $0x48] sm:$0xff]
  %v25 = vld [vmem:[%s1 + $0x50] sm:$0xff]
  %v26 = vld [vmem:[%s1 + $0x58] sm:$0xff]
  %v27 = vld [vmem:[%s1 + $0x60] sm:$0xff]
  %v28 = vld [vmem:[%s1 + $0x68] sm:$0xff]
  %v29 = vld [vmem:[%s1 + $0x70] sm:$0xff]
  %v30 = vld [vmem:[%s1 + $0x78] sm:$0xff]
  %vm31 = vcmask 523264
  %v33 = vsel %vm31, %v11, 0
  %v36 = vsel %vm31, %v12, 0
  %v39 = vsel %vm31, %v13, 0
  %v42 = vsel %vm31, %v14, 0
  %44 = vmatprep.subr.mxu0 %v16
  %45 = vmatpush1.msra.mxu0 %v15
  %46 = vmatprep.subr.mxu0 %v18
  %47 = vmatpush1.msra.mxu0 %v17
  %48 = vmatprep.subr.mxu0 %v20
  %49 = vmatpush1.msra.mxu0 %v19
  %50 = vmatprep.subr.mxu0 %v22
  %51 = vmatpush1.msra.mxu0 %v21
  %52 = vmatprep.subr.mxu0 %v24
  %53 = vmatpush1.msra.mxu0 %v23
  %54 = vmatprep.subr.mxu0 %v26
  %55 = vmatpush1.msra.mxu0 %v25
  %56 = vmatprep.subr.mxu0 %v28
  %57 = vmatpush1.msra.mxu0 %v27
  %58 = vmatprep.subr.mxu0 %v30
  %59 = vmatpush1.msra.mxu0 %v29
  %60 = vmatprep.subr.mxu0 0.0
  %61 = vmatpush1.msra.mxu0 0.0
  %62 = vmatprep.subr.mxu0 0.0
  %63 = vmatpush1.msra.mxu0 0.0
  %64 = vmatprep.subr.mxu0 0.0
  %65 = vmatpush1.msra.mxu0 0.0
  %66 = vmatprep.subr.mxu0 0.0
  %67 = vmatpush1.msra.mxu0 0.0
  %68 = vmatprep.subr.mxu0 0.0
  %69 = vmatpush1.msra.mxu0 0.0
  %70 = vmatprep.subr.mxu0 0.0
  %71 = vmatpush1.msra.mxu0 0.0
  %72 = vmatprep.subr.mxu0 0.0
  %73 = vmatpush1.msra.mxu0 0.0
  %74 = vmatprep.subr.mxu0 0.0
  %75 = vmatpush1.msra.mxu0 0.0
  %76 = vmatprep.subr.mxu0 0.0
  %77 = vmatpush1.msra.mxu0 0.0
  %78 = vmatprep.subr.mxu0 0.0
  %79 = vmatpush1.msra.mxu0 0.0
  %80 = vmatprep.subr.mxu0 0.0
  %81 = vmatpush1.msra.mxu0 0.0
  %82 = vmatprep.subr.mxu0 0.0
  %83 = vmatpush1.msra.mxu0 0.0
  %84 = vmatprep.subr.mxu0 0.0
  %85 = vmatpush1.msra.mxu0 0.0
  %86 = vmatprep.subr.mxu0 0.0
  %87 = vmatpush1.msra.mxu0 0.0
  %88 = vmatprep.subr.mxu0 0.0
  %89 = vmatpush1.msra.mxu0 0.0
  %90 = vmatprep.subr.mxu0 0.0
  %91 = vmatpush1.msra.mxu0 0.0
  %92 = vmatprep.subr.mxu0 0.0
  %93 = vmatpush1.msra.mxu0 0.0
  %94 = vmatprep.subr.mxu0 0.0
  %95 = vmatpush1.msra.mxu0 0.0
  %96 = vmatprep.subr.mxu0 0.0
  %97 = vmatpush1.msra.mxu0 0.0
  %98 = vmatprep.subr.mxu0 0.0
  %99 = vmatpush1.msra.mxu0 0.0
  %100 = vmatprep.subr.mxu0 0.0
  %101 = vmatpush1.msra.mxu0 0.0
  %102 = vmatprep.subr.mxu0 0.0
  %103 = vmatpush1.msra.mxu0 0.0
  %104 = vmatprep.subr.mxu0 0.0
  %105 = vmatpush1.msra.mxu0 0.0
  %106 = vmatprep.subr.mxu0 0.0
  %107 = vmatpush1.msra.mxu0 0.0
  %108 = vmatprep.mubr.f32.mxu0 0.0
  %109 = vmatmul.mubr.f32.gmra.mrb[0].mxu0 %v33
  %v110 = vpop.f32.mrb[0].mxu0
  %v111 = vadd.f32 0.0, %v110
  %v112 = vpop.f32.mrb[0].mxu0
  %v113 = vadd.f32 0.0, %v112
  %114 = vmatprep.mubr.f32.mxu0 0.0
  %115 = vmatmul.mubr.f32.gmra.mrb[0].mxu0 %v36
  %v116 = vpop.f32.mrb[0].mxu0
  %v117 = vadd.f32 0.0, %v116
  %v118 = vpop.f32.mrb[0].mxu0
  %v119 = vadd.f32 0.0, %v118
  %120 = vmatprep.mubr.f32.mxu0 0.0
  %121 = vmatmul.mubr.f32.gmra.mrb[0].mxu0 %v39
  %v122 = vpop.f32.mrb[0].mxu0
  %v123 = vadd.f32 0.0, %v122
  %v124 = vpop.f32.mrb[0].mxu0
  %v125 = vadd.f32 0.0, %v124
  %126 = vmatprep.mubr.f32.mxu0 0.0
  %127 = vmatmul.mubr.f32.gmra.mrb[0].mxu0 %v42
  %v128 = vpop.f32.mrb[0].mxu0
  %v129 = vadd.f32 0.0, %v128
  %v130 = vpop.f32.mrb[0].mxu0
  %v131 = vadd.f32 0.0, %v130
  %132 = vdwg.mxu0
  %133 = vst [vmem:[%s2] sm:$0xff] %v111
  %134 = vst [vmem:[%s2 + $0x8] sm:$0xff] %v113
  %135 = vst [vmem:[%s2 + $0x10] sm:$0xff] %v117
  %136 = vst [vmem:[%s2 + $0x18] sm:$0xff] %v119
  %137 = vst [vmem:[%s2 + $0x20] sm:$0xff] %v123
  %138 = vst [vmem:[%s2 + $0x28] sm:$0xff] %v125
  %139 = vst [vmem:[%s2 + $0x30] sm:$0xff] %v129
  %140 = vst [vmem:[%s2 + $0x38] sm:$0xff] %v131
  // Predicated region
  $region10: #{bidaf_forward.21} parent=0 // pred_check
    _
  $region11: #{bidaf_forward.21} parent=0 // pred_check_branch
    %142 = sbr.rel (0) target = $region13
  $region12: #{bidaf_forward.21} parent=0 // pred_region
    _
  $region13: #{bidaf_forward.21} parent=0 // pred_fallthru
    _
  // Predicated region
  $region14: #{bidaf_forward.21} parent=0 // pred_check
    _
  $region15: #{bidaf_forward.21} parent=0 // pred_check_branch
    %144 = sbr.rel (0) target = $region17
  $region16: #{bidaf_forward.21} parent=0 // pred_region
    _
  $region17: #{bidaf_forward.21} parent=0 // pred_fallthru
    _

// kernel: bidaf_forward.19
$region0: #{bidaf_forward.19}
  #allocation0 [shape = 'u32[]', space=smem, size = 0x4, offset = 0x4, fixed_abs, tag = 'smem constant byte address 0x4 - core index']
  #allocation1 [shape = 'u32[144,128]{1,0:T(1,128)}', space=vmem, size = 0x12000, scoped, tag = 'internal scratch']
  %s0 = inlined_call_operand.vmem [shape: f32[32,256], index: 0, kind: input, shape index: {}]
  %s1 = inlined_call_operand.vmem [shape: f32[256,256], index: 1, kind: input, shape index: {}]
  %s2 = inlined_call_operand.vmem [shape: f32[32,256], index: 2, kind: output, shape index: {}]
  %s3 = sld [smem:[#allocation0]]
  $region18: #{bidaf_forward.19} parent=0
    _
  %s5 = ssub.s32 1, %s3
  %s6 = scalar_select 0, %s5, %s3
  // Predicated region
  $region2: #{bidaf_forward.19} parent=0 // pred_check
    _
  $region3: #{bidaf_forward.19} parent=0 // pred_check_branch
    %8 = sbr.rel (0) target = $region5
  $region4: #{bidaf_forward.19} parent=0 // pred_region
    _
  $region5: #{bidaf_forward.19} parent=0 // pred_fallthru
    _
  // Predicated region
  $region6: #{bidaf_forward.19} parent=0 // pred_check
    _
  $region7: #{bidaf_forward.19} parent=0 // pred_check_branch
    %10 = sbr.rel (0) target = $region9
  $region8: #{bidaf_forward.19} parent=0 // pred_region
    _
  $region9: #{bidaf_forward.19} parent=0 // pred_fallthru
    _
  %v11 = vld [vmem:[%s0] sm:$0xff]
  %v12 = vld [vmem:[%s0 + $0x8] sm:$0xff]
  %v13 = vld [vmem:[%s0 + $0x10] sm:$0xff]
  %v14 = vld [vmem:[%s0 + $0x18] sm:$0xff]
  %v15 = vld [vmem:[%s0 + $0x20] sm:$0xff]
  %v16 = vld [vmem:[%s0 + $0x28] sm:$0xff]
  %v17 = vld [vmem:[%s0 + $0x30] sm:$0xff]
  %v18 = vld [vmem:[%s0 + $0x38] sm:$0xff]
  %v19 = vld [vmem:[%s1] sm:$0xff]
  %v20 = vld [vmem:[%s1 + $0x8] sm:$0xff]
  %v21 = vld [vmem:[%s1 + $0x10] sm:$0xff]
  %v22 = vld [vmem:[%s1 + $0x18] sm:$0xff]
  %v23 = vld [vmem:[%s1 + $0x20] sm:$0xff]
  %v24 = vld [vmem:[%s1 + $0x28] sm:$0xff]
  %v25 = vld [vmem:[%s1 + $0x30] sm:$0xff]
  %v26 = vld [vmem:[%s1 + $0x38] sm:$0xff]
  %v27 = vld [vmem:[%s1 + $0x40] sm:$0xff]
  %v28 = vld [vmem:[%s1 + $0x48] sm:$0xff]
  %v29 = vld [vmem:[%s1 + $0x50] sm:$0xff]
  %v30 = vld [vmem:[%s1 + $0x58] sm:$0xff]
  %v31 = vld [vmem:[%s1 + $0x60] sm:$0xff]
  %v32 = vld [vmem:[%s1 + $0x68] sm:$0xff]
  %v33 = vld [vmem:[%s1 + $0x70] sm:$0xff]
  %v34 = vld [vmem:[%s1 + $0x78] sm:$0xff]
  %v35 = vld [vmem:[%s1 + $0x80] sm:$0xff]
  %v36 = vld [vmem:[%s1 + $0x88] sm:$0xff]
  %v37 = vld [vmem:[%s1 + $0x90] sm:$0xff]
  %v38 = vld [vmem:[%s1 + $0x98] sm:$0xff]
  %v39 = vld [vmem:[%s1 + $0xa0] sm:$0xff]
  %v40 = vld [vmem:[%s1 + $0xa8] sm:$0xff]
  %v41 = vld [vmem:[%s1 + $0xb0] sm:$0xff]
  %v42 = vld [vmem:[%s1 + $0xb8] sm:$0xff]
  %v43 = vld [vmem:[%s1 + $0xc0] sm:$0xff]
  %v44 = vld [vmem:[%s1 + $0xc8] sm:$0xff]
  %v45 = vld [vmem:[%s1 + $0xd0] sm:$0xff]
  %v46 = vld [vmem:[%s1 + $0xd8] sm:$0xff]
  %v47 = vld [vmem:[%s1 + $0xe0] sm:$0xff]
  %v48 = vld [vmem:[%s1 + $0xe8] sm:$0xff]
  %v49 = vld [vmem:[%s1 + $0xf0] sm:$0xff]
  %v50 = vld [vmem:[%s1 + $0xf8] sm:$0xff]
  %v51 = vld [vmem:[%s1 + $0x100] sm:$0xff]
  %v52 = vld [vmem:[%s1 + $0x108] sm:$0xff]
  %v53 = vld [vmem:[%s1 + $0x110] sm:$0xff]
  %v54 = vld [vmem:[%s1 + $0x118] sm:$0xff]
  %v55 = vld [vmem:[%s1 + $0x120] sm:$0xff]
  %v56 = vld [vmem:[%s1 + $0x128] sm:$0xff]
  %v57 = vld [vmem:[%s1 + $0x130] sm:$0xff]
  %v58 = vld [vmem:[%s1 + $0x138] sm:$0xff]
  %v59 = vld [vmem:[%s1 + $0x140] sm:$0xff]
  %v60 = vld [vmem:[%s1 + $0x148] sm:$0xff]
  %v61 = vld [vmem:[%s1 + $0x150] sm:$0xff]
  %v62 = vld [vmem:[%s1 + $0x158] sm:$0xff]
  %v63 = vld [vmem:[%s1 + $0x160] sm:$0xff]
  %v64 = vld [vmem:[%s1 + $0x168] sm:$0xff]
  %v65 = vld [vmem:[%s1 + $0x170] sm:$0xff]
  %v66 = vld [vmem:[%s1 + $0x178] sm:$0xff]
  %v67 = vld [vmem:[%s1 + $0x180] sm:$0xff]
  %v68 = vld [vmem:[%s1 + $0x188] sm:$0xff]
  %v69 = vld [vmem:[%s1 + $0x190] sm:$0xff]
  %v70 = vld [vmem:[%s1 + $0x198] sm:$0xff]
  %v71 = vld [vmem:[%s1 + $0x1a0] sm:$0xff]
  %v72 = vld [vmem:[%s1 + $0x1a8] sm:$0xff]
  %v73 = vld [vmem:[%s1 + $0x1b0] sm:$0xff]
  %v74 = vld [vmem:[%s1 + $0x1b8] sm:$0xff]
  %v75 = vld [vmem:[%s1 + $0x1c0] sm:$0xff]
  %v76 = vld [vmem:[%s1 + $0x1c8] sm:$0xff]
  %v77 = vld [vmem:[%s1 + $0x1d0] sm:$0xff]
  %v78 = vld [vmem:[%s1 + $0x1d8] sm:$0xff]
  %v79 = vld [vmem:[%s1 + $0x1e0] sm:$0xff]
  %v80 = vld [vmem:[%s1 + $0x1e8] sm:$0xff]
  %v81 = vld [vmem:[%s1 + $0x1f0] sm:$0xff]
  %v82 = vld [vmem:[%s1 + $0x1f8] sm:$0xff]
  %83 = vmatprep.subr.mxu0 %v20
  %84 = vmatpush1.msra.mxu0 %v19
  %85 = vmatprep.subr.mxu0 %v22
  %86 = vmatpush1.msra.mxu0 %v21
  %87 = vmatprep.subr.mxu0 %v24
  %88 = vmatpush1.msra.mxu0 %v23
  %89 = vmatprep.subr.mxu0 %v26
  %90 = vmatpush1.msra.mxu0 %v25
  %91 = vmatprep.subr.mxu0 %v28
  %92 = vmatpush1.msra.mxu0 %v27
  %93 = vmatprep.subr.mxu0 %v30
  %94 = vmatpush1.msra.mxu0 %v29
  %95 = vmatprep.subr.mxu0 %v32
  %96 = vmatpush1.msra.mxu0 %v31
  %97 = vmatprep.subr.mxu0 %v34
  %98 = vmatpush1.msra.mxu0 %v33
  %99 = vmatprep.subr.mxu0 %v36
  %100 = vmatpush1.msra.mxu0 %v35
  %101 = vmatprep.subr.mxu0 %v38
  %102 = vmatpush1.msra.mxu0 %v37
  %103 = vmatprep.subr.mxu0 %v40
  %104 = vmatpush1.msra.mxu0 %v39
  %105 = vmatprep.subr.mxu0 %v42
  %106 = vmatpush1.msra.mxu0 %v41
  %107 = vmatprep.subr.mxu0 %v44
  %108 = vmatpush1.msra.mxu0 %v43
  %109 = vmatprep.subr.mxu0 %v46
  %110 = vmatpush1.msra.mxu0 %v45
  %111 = vmatprep.subr.mxu0 %v48
  %112 = vmatpush1.msra.mxu0 %v47
  %113 = vmatprep.subr.mxu0 %v50
  %114 = vmatpush1.msra.mxu0 %v49
  %115 = vmatprep.subr.mxu0 %v52
  %116 = vmatpush1.msra.mxu0 %v51
  %117 = vmatprep.subr.mxu0 %v54
  %118 = vmatpush1.msra.mxu0 %v53
  %119 = vmatprep.subr.mxu0 %v56
  %120 = vmatpush1.msra.mxu0 %v55
  %121 = vmatprep.subr.mxu0 %v58
  %122 = vmatpush1.msra.mxu0 %v57
  %123 = vmatprep.subr.mxu0 %v60
  %124 = vmatpush1.msra.mxu0 %v59
  %125 = vmatprep.subr.mxu0 %v62
  %126 = vmatpush1.msra.mxu0 %v61
  %127 = vmatprep.subr.mxu0 %v64
  %128 = vmatpush1.msra.mxu0 %v63
  %129 = vmatprep.subr.mxu0 %v66
  %130 = vmatpush1.msra.mxu0 %v65
  %131 = vmatprep.subr.mxu0 %v68
  %132 = vmatpush1.msra.mxu0 %v67
  %133 = vmatprep.subr.mxu0 %v70
  %134 = vmatpush1.msra.mxu0 %v69
  %135 = vmatprep.subr.mxu0 %v72
  %136 = vmatpush1.msra.mxu0 %v71
  %137 = vmatprep.subr.mxu0 %v74
  %138 = vmatpush1.msra.mxu0 %v73
  %139 = vmatprep.subr.mxu0 %v76
  %140 = vmatpush1.msra.mxu0 %v75
  %141 = vmatprep.subr.mxu0 %v78
  %142 = vmatpush1.msra.mxu0 %v77
  %143 = vmatprep.subr.mxu0 %v80
  %144 = vmatpush1.msra.mxu0 %v79
  %145 = vmatprep.subr.mxu0 %v82
  %146 = vmatpush1.msra.mxu0 %v81
  %147 = vmatprep.mubr.f32.mxu0 %v12
  %148 = vmatmul.mubr.f32.gmra.mrb[0].mxu0 %v11
  %v149 = vpop.f32.mrb[0].mxu0
  %v150 = vadd.f32 0.0, %v149
  %v151 = vpop.f32.mrb[0].mxu0
  %v152 = vadd.f32 0.0, %v151
  %153 = vmatprep.mubr.f32.mxu0 %v14
  %154 = vmatmul.mubr.f32.gmra.mrb[0].mxu0 %v13
  %v155 = vpop.f32.mrb[0].mxu0
  %v156 = vadd.f32 0.0, %v155
  %v157 = vpop.f32.mrb[0].mxu0
  %v158 = vadd.f32 0.0, %v157
  %159 = vmatprep.mubr.f32.mxu0 %v16
  %160 = vmatmul.mubr.f32.gmra.mrb[0].mxu0 %v15
  %v161 = vpop.f32.mrb[0].mxu0
  %v162 = vadd.f32 0.0, %v161
  %v163 = vpop.f32.mrb[0].mxu0
  %v164 = vadd.f32 0.0, %v163
  %165 = vmatprep.mubr.f32.mxu0 %v18
  %166 = vmatmul.mubr.f32.gmra.mrb[0].mxu0 %v17
  %v167 = vpop.f32.mrb[0].mxu0
  %v168 = vadd.f32 0.0, %v167
  %v169 = vpop.f32.mrb[0].mxu0
  %v170 = vadd.f32 0.0, %v169
  %171 = vdwg.mxu0
  %172 = vst [vmem:[%s2] sm:$0xff] %v150
  %173 = vst [vmem:[%s2 + $0x8] sm:$0xff] %v152
  %174 = vst [vmem:[%s2 + $0x10] sm:$0xff] %v156
  %175 = vst [vmem:[%s2 + $0x18] sm:$0xff] %v158
  %176 = vst [vmem:[%s2 + $0x20] sm:$0xff] %v162
  %177 = vst [vmem:[%s2 + $0x28] sm:$0xff] %v164
  %178 = vst [vmem:[%s2 + $0x30] sm:$0xff] %v168
  %179 = vst [vmem:[%s2 + $0x38] sm:$0xff] %v170
  // Predicated region
  $region10: #{bidaf_forward.19} parent=0 // pred_check
    _
  $region11: #{bidaf_forward.19} parent=0 // pred_check_branch
    %181 = sbr.rel (0) target = $region13
  $region12: #{bidaf_forward.19} parent=0 // pred_region
    _
  $region13: #{bidaf_forward.19} parent=0 // pred_fallthru
    _
  // Predicated region
  $region14: #{bidaf_forward.19} parent=0 // pred_check
    _
  $region15: #{bidaf_forward.19} parent=0 // pred_check_branch
    %183 = sbr.rel (0) target = $region17
  $region16: #{bidaf_forward.19} parent=0 // pred_region
    _
  $region17: #{bidaf_forward.19} parent=0 // pred_fallthru
    _

// kernel: bidaf_forward.18
$region0: #{bidaf_forward.18}
  #allocation0 [shape = 'u32[]', space=smem, size = 0x4, offset = 0x4, fixed_abs, tag = 'smem constant byte address 0x4 - core index']
  #allocation1 [shape = 'u32[144,128]{1,0:T(1,128)}', space=vmem, size = 0x12000, scoped, tag = 'internal scratch']
  #allocation2 [shape = 'f32[1,1]{1,0:T(1,128)S(6)}', space=smem, size = 0x200, scoped, tag = 'scoped memory for bidaf_forward.18']
  %s0 = inlined_call_operand.vmem [shape: f32[2,16,64], index: 0, kind: input, shape index: {}]
  %s1 = inlined_call_operand.vmem [shape: f32[2,8,64], index: 1, kind: input, shape index: {}]
  %s2 = inlined_call_operand.vmem [shape: f32[2,16,1], index: 2, kind: input, shape index: {}]
  %s3 = inlined_call_operand.vmem [shape: f32[2,1,8], index: 3, kind: input, shape index: {}]
  %s4 = inlined_call_operand.vmem [shape: f32[1,64], index: 4, kind: input, shape index: {}]
  %s5 = inlined_call_operand.vmem [shape: f32[1,64], index: 5, kind: input, shape index: {}]
  %s6 = inlined_call_operand.vmem [shape: f32[1,64], index: 6, kind: input, shape index: {}]
  %s7 = inlined_call_operand.<no memory space> [shape: f32[1,1], index: 7, kind: input, shape index: {}]
  %s8 = inlined_call_operand.vmem [shape: f32[2,16,256], index: 8, kind: output, shape index: {}]
  %s9 = sld [smem:[#allocation0]]
  $region65: #{bidaf_forward.18} parent=0
    _
  %s11 = ssub.s32 1, %s9
  %s12 = scalar_select 0, %s11, %s9
  %13 = sst [smem:[#allocation2]] %s7
  loop: start=0, step=1, limit=4
  $region2: #{bidaf_forward.18} parent=0 // loop_pre_header
    _
  $region3: #{bidaf_forward.18} parent=0 // loop_header
    %s15 = sphi 0, %s19
    %p16 = scmp.ge.s32.totalorder %s15, 4
    %s25 = sphi 0, %s27
    %s28 = sphi 0, %s25
    %s29 = sphi 0, %s28
    %s45 = sphi 0, %s29
    %s51 = sphi 0, %s53
    %s54 = sphi 0, %s51
    %s55 = sphi 0, %s54
    %s71 = sphi 0, %s55
    %s77 = sphi 0, %s79
    %s80 = sphi 0, %s77
    %s81 = sphi 0, %s80
    %s97 = sphi 0, %s81
    %s103 = sphi 0, %s105
    %s106 = sphi 0, %s103
    %s107 = sphi 0, %s106
    %s123 = sphi 0, %s107
    %s127 = sphi 0, %s127
    %s129 = sphi 0, %s127
    %s130 = sphi 0, %s129
    %s144 = sphi 0, %s130
    %s148 = sphi 0, %s148
    %s150 = sphi 0, %s148
    %s151 = sphi 0, %s150
    %s165 = sphi 0, %s151
    %s169 = sphi 0, %s169
    %s171 = sphi 0, %s169
    %s172 = sphi 0, %s171
    %s186 = sphi 0, %s172
    %s190 = sphi 0, %s190
    %s192 = sphi 0, %s190
    %s193 = sphi 0, %s192
    %s207 = sphi 0, %s193
    %s213 = sphi 0, %s215
    %s216 = sphi 0, %s213
    %s217 = sphi 0, %s216
    %s233 = sphi 0, %s217
  $region4: #{bidaf_forward.18} parent=0 // loop_header_branch
    %18 = sbr.rel (%p16) target = $region8
  $region5: #{bidaf_forward.18} parent=0 // loop_body
    %s20 = ssub.s32 %s15, 1
    %s21 = ssub.s32 %s15, 2
    %s22 = sadd.s32 %s15, 1
    %s23 = ssub.s32 %s15, %s22
    %p24 = scmp.eq.s32.totalorder %s23, 0
    %s26 = sadd.s32 %s25, 1
    %s27 = scalar_select %p24, %s25, %s26
    %p30 = pneg %p24
    %p31 = scmp.eq.s32.totalorder %s15, 1
    %p32 = por %p30, %p31
    %p33 = scmp.ne.s32.totalorder %s25, %s28
    %p34 = scmp.eq.s32.totalorder %s15, 0
    %p35 = por %p33, %p34
    %p36 = scmp.ne.s32.totalorder %s25, %s28
    %p37 = scmp.eq.s32.totalorder %s20, 1
    %p38 = por %p36, %p37
    %p39 = scmp.ne.s32.totalorder %s28, %s29
    %p40 = scmp.eq.s32.totalorder %s20, 0
    %p41 = por %p39, %p40
    %p42 = scmp.ne.s32.totalorder %s28, %s29
    %p43 = scmp.eq.s32.totalorder %s21, 1
    %p44 = por %p42, %p43
    %p46 = scmp.ne.s32.totalorder %s29, %s45
    %p47 = scmp.eq.s32.totalorder %s21, 0
    %p48 = por %p46, %p47
    %s49 = ssub.s32 %s15, %s22
    %p50 = scmp.eq.s32.totalorder %s49, 0
    %s52 = sadd.s32 %s51, 1
    %s53 = scalar_select %p50, %s51, %s52
    %p56 = pneg %p50
    %p57 = scmp.eq.s32.totalorder %s15, 1
    %p58 = por %p56, %p57
    %p59 = scmp.ne.s32.totalorder %s51, %s54
    %p60 = scmp.eq.s32.totalorder %s15, 0
    %p61 = por %p59, %p60
    %p62 = scmp.ne.s32.totalorder %s51, %s54
    %p63 = scmp.eq.s32.totalorder %s20, 1
    %p64 = por %p62, %p63
    %p65 = scmp.ne.s32.totalorder %s54, %s55
    %p66 = scmp.eq.s32.totalorder %s20, 0
    %p67 = por %p65, %p66
    %p68 = scmp.ne.s32.totalorder %s54, %s55
    %p69 = scmp.eq.s32.totalorder %s21, 1
    %p70 = por %p68, %p69
    %p72 = scmp.ne.s32.totalorder %s55, %s71
    %p73 = scmp.eq.s32.totalorder %s21, 0
    %p74 = por %p72, %p73
    %s75 = ssub.s32 %s15, %s22
    %p76 = scmp.eq.s32.totalorder %s75, 0
    %s78 = sadd.s32 %s77, 1
    %s79 = scalar_select %p76, %s77, %s78
    %p82 = pneg %p76
    %p83 = scmp.eq.s32.totalorder %s15, 1
    %p84 = por %p82, %p83
    %p85 = scmp.ne.s32.totalorder %s77, %s80
    %p86 = scmp.eq.s32.totalorder %s15, 0
    %p87 = por %p85, %p86
    %p88 = scmp.ne.s32.totalorder %s77, %s80
    %p89 = scmp.eq.s32.totalorder %s20, 1
    %p90 = por %p88, %p89
    %p91 = scmp.ne.s32.totalorder %s80, %s81
    %p92 = scmp.eq.s32.totalorder %s20, 0
    %p93 = por %p91, %p92
    %p94 = scmp.ne.s32.totalorder %s80, %s81
    %p95 = scmp.eq.s32.totalorder %s21, 1
    %p96 = por %p94, %p95
    %p98 = scmp.ne.s32.totalorder %s81, %s97
    %p99 = scmp.eq.s32.totalorder %s21, 0
    %p100 = por %p98, %p99
    %s101 = ssub.s32 %s15, %s22
    %p102 = scmp.eq.s32.totalorder %s101, 0
    %s104 = sadd.s32 %s103, 1
    %s105 = scalar_select %p102, %s103, %s104
    %p108 = pneg %p102
    %p109 = scmp.eq.s32.totalorder %s15, 1
    %p110 = por %p108, %p109
    %p111 = scmp.ne.s32.totalorder %s103, %s106
    %p112 = scmp.eq.s32.totalorder %s15, 0
    %p113 = por %p111, %p112
    %p114 = scmp.ne.s32.totalorder %s103, %s106
    %p115 = scmp.eq.s32.totalorder %s20, 1
    %p116 = por %p114, %p115
    %p117 = scmp.ne.s32.totalorder %s106, %s107
    %p118 = scmp.eq.s32.totalorder %s20, 0
    %p119 = por %p117, %p118
    %p120 = scmp.ne.s32.totalorder %s106, %s107
    %p121 = scmp.eq.s32.totalorder %s21, 1
    %p122 = por %p120, %p121
    %p124 = scmp.ne.s32.totalorder %s107, %s123
    %p125 = scmp.eq.s32.totalorder %s21, 0
    %p126 = por %p124, %p125
    %s128 = sadd.s32 %s127, 1
    %p131 = scmp.eq.s32.totalorder %s15, 1
    %p132 = scmp.ne.s32.totalorder %s127, %s129
    %p133 = scmp.eq.s32.totalorder %s15, 0
    %p134 = por %p132, %p133
    %p135 = scmp.ne.s32.totalorder %s127, %s129
    %p136 = scmp.eq.s32.totalorder %s20, 1
    %p137 = por %p135, %p136
    %p138 = scmp.ne.s32.totalorder %s129, %s130
    %p139 = scmp.eq.s32.totalorder %s20, 0
    %p140 = por %p138, %p139
    %p141 = scmp.ne.s32.totalorder %s129, %s130
    %p142 = scmp.eq.s32.totalorder %s21, 1
    %p143 = por %p141, %p142
    %p145 = scmp.ne.s32.totalorder %s130, %s144
    %p146 = scmp.eq.s32.totalorder %s21, 0
    %p147 = por %p145, %p146
    %s149 = sadd.s32 %s148, 1
    %p152 = scmp.eq.s32.totalorder %s15, 1
    %p153 = scmp.ne.s32.totalorder %s148, %s150
    %p154 = scmp.eq.s32.totalorder %s15, 0
    %p155 = por %p153, %p154
    %p156 = scmp.ne.s32.totalorder %s148, %s150
    %p157 = scmp.eq.s32.totalorder %s20, 1
    %p158 = por %p156, %p157
    %p159 = scmp.ne.s32.totalorder %s150, %s151
    %p160 = scmp.eq.s32.totalorder %s20, 0
    %p161 = por %p159, %p160
    %p162 = scmp.ne.s32.totalorder %s150, %s151
    %p163 = scmp.eq.s32.totalorder %s21, 1
    %p164 = por %p162, %p163
    %p166 = scmp.ne.s32.totalorder %s151, %s165
    %p167 = scmp.eq.s32.totalorder %s21, 0
    %p168 = por %p166, %p167
    %s170 = sadd.s32 %s169, 1
    %p173 = scmp.eq.s32.totalorder %s15, 1
    %p174 = scmp.ne.s32.totalorder %s169, %s171
    %p175 = scmp.eq.s32.totalorder %s15, 0
    %p176 = por %p174, %p175
    %p177 = scmp.ne.s32.totalorder %s169, %s171
    %p178 = scmp.eq.s32.totalorder %s20, 1
    %p179 = por %p177, %p178
    %p180 = scmp.ne.s32.totalorder %s171, %s172
    %p181 = scmp.eq.s32.totalorder %s20, 0
    %p182 = por %p180, %p181
    %p183 = scmp.ne.s32.totalorder %s171, %s172
    %p184 = scmp.eq.s32.totalorder %s21, 1
    %p185 = por %p183, %p184
    %p187 = scmp.ne.s32.totalorder %s172, %s186
    %p188 = scmp.eq.s32.totalorder %s21, 0
    %p189 = por %p187, %p188
    %s191 = sadd.s32 %s190, 1
    %p194 = scmp.eq.s32.totalorder %s15, 1
    %p195 = scmp.ne.s32.totalorder %s190, %s192
    %p196 = scmp.eq.s32.totalorder %s15, 0
    %p197 = por %p195, %p196
    %p198 = scmp.ne.s32.totalorder %s190, %s192
    %p199 = scmp.eq.s32.totalorder %s20, 1
    %p200 = por %p198, %p199
    %p201 = scmp.ne.s32.totalorder %s192, %s193
    %p202 = scmp.eq.s32.totalorder %s20, 0
    %p203 = por %p201, %p202
    %p204 = scmp.ne.s32.totalorder %s192, %s193
    %p205 = scmp.eq.s32.totalorder %s21, 1
    %p206 = por %p204, %p205
    %p208 = scmp.ne.s32.totalorder %s193, %s207
    %p209 = scmp.eq.s32.totalorder %s21, 0
    %p210 = por %p208, %p209
    %s211 = ssub.s32 %s15, %s22
    %p212 = scmp.eq.s32.totalorder %s211, 0
    %s214 = sadd.s32 %s213, 1
    %s215 = scalar_select %p212, %s213, %s214
    %p218 = pneg %p212
    %p219 = scmp.eq.s32.totalorder %s15, 1
    %p220 = por %p218, %p219
    %p221 = scmp.ne.s32.totalorder %s213, %s216
    %p222 = scmp.eq.s32.totalorder %s15, 0
    %p223 = por %p221, %p222
    %p224 = scmp.ne.s32.totalorder %s213, %s216
    %p225 = scmp.eq.s32.totalorder %s20, 1
    %p226 = por %p224, %p225
    %p227 = scmp.ne.s32.totalorder %s216, %s217
    %p228 = scmp.eq.s32.totalorder %s20, 0
    %p229 = por %p227, %p228
    %p230 = scmp.ne.s32.totalorder %s216, %s217
    %p231 = scmp.eq.s32.totalorder %s21, 1
    %p232 = por %p230, %p231
    %p234 = scmp.ne.s32.totalorder %s217, %s233
    %p235 = scmp.eq.s32.totalorder %s21, 0
    %p236 = por %p234, %p235
    %p237 = scmp.le.s32.totalorder 1, %s15
    %p238 = scmp.lt.s32.totalorder %s15, 3
    %p239 = pnand %p237, %p238
    %p240 = pneg %p239
    // Predicated region
    $region9: #{bidaf_forward.18} parent=5 // pred_check
      _
    $region10: #{bidaf_forward.18} parent=5 // pred_check_branch
      %242 = sbr.rel (%p239) target = $region12
    $region11: #{bidaf_forward.18} parent=5 // pred_region
      %s243 = ssub.s32 %s15, 1
      // Predicated region
      $region13: #{bidaf_forward.18} parent=11 // pred_check
        %p244 = pneg %p140
      $region14: #{bidaf_forward.18} parent=11 // pred_check_branch
        %246 = sbr.rel (%p244) target = $region16
      $region15: #{bidaf_forward.18} parent=11 // pred_region
        _
      $region16: #{bidaf_forward.18} parent=11 // pred_fallthru
        _
      // Predicated region
      $region17: #{bidaf_forward.18} parent=11 // pred_check
        %p247 = pneg %p161
      $region18: #{bidaf_forward.18} parent=11 // pred_check_branch
        %249 = sbr.rel (%p247) target = $region20
      $region19: #{bidaf_forward.18} parent=11 // pred_region
        _
      $region20: #{bidaf_forward.18} parent=11 // pred_fallthru
        _
      // Predicated region
      $region21: #{bidaf_forward.18} parent=11 // pred_check
        %p250 = pneg %p182
      $region22: #{bidaf_forward.18} parent=11 // pred_check_branch
        %252 = sbr.rel (%p250) target = $region24
      $region23: #{bidaf_forward.18} parent=11 // pred_region
        _
      $region24: #{bidaf_forward.18} parent=11 // pred_fallthru
        _
      // Predicated region
      $region25: #{bidaf_forward.18} parent=11 // pred_check
        %p253 = pneg %p203
      $region26: #{bidaf_forward.18} parent=11 // pred_check_branch
        %255 = sbr.rel (%p253) target = $region28
      $region27: #{bidaf_forward.18} parent=11 // pred_region
        _
      $region28: #{bidaf_forward.18} parent=11 // pred_fallthru
        _
    $region12: #{bidaf_forward.18} parent=5 // pred_fallthru
      _
    %p256 = scmp.lt.s32.totalorder %s15, 2
    // Predicated region
    $region29: #{bidaf_forward.18} parent=5 // pred_check
      %p257 = pneg %p256
    $region30: #{bidaf_forward.18} parent=5 // pred_check_branch
      %259 = sbr.rel (%p257) target = $region32
    $region31: #{bidaf_forward.18} parent=5 // pred_region
      // Predicated region
      $region33: #{bidaf_forward.18} parent=31 // pred_check
        %p260 = pneg %p35
      $region34: #{bidaf_forward.18} parent=31 // pred_check_branch
        %262 = sbr.rel (%p260) target = $region36
      $region35: #{bidaf_forward.18} parent=31 // pred_region
        %p263 = scmp.lt.s32.totalorder %s15, 1
        %s264 = scalar_select %p263, %s15, 1
        %s265 = smul.addr %s264, 2
        %s266 = smul.addr %s265, 8
        %s267 = scalar_lea.vmem %s0, %s266
      $region36: #{bidaf_forward.18} parent=31 // pred_fallthru
        _
      // Predicated region
      $region37: #{bidaf_forward.18} parent=31 // pred_check
        %p268 = pneg %p61
      $region38: #{bidaf_forward.18} parent=31 // pred_check_branch
        %270 = sbr.rel (%p268) target = $region40
      $region39: #{bidaf_forward.18} parent=31 // pred_region
        %p271 = scmp.lt.s32.totalorder %s15, 1
        %s272 = scalar_select %p271, %s15, 1
        %s273 = smul.addr %s272, 8
        %s274 = scalar_lea.vmem %s1, %s273
      $region40: #{bidaf_forward.18} parent=31 // pred_fallthru
        _
      // Predicated region
      $region41: #{bidaf_forward.18} parent=31 // pred_check
        %p275 = pneg %p87
      $region42: #{bidaf_forward.18} parent=31 // pred_check_branch
        %277 = sbr.rel (%p275) target = $region44
      $region43: #{bidaf_forward.18} parent=31 // pred_region
        %p278 = scmp.lt.s32.totalorder %s15, 1
        %s279 = scalar_select %p278, %s15, 1
        %s280 = smul.addr %s279, 2
        %s281 = smul.addr %s280, 8
        %s282 = scalar_lea.vmem %s2, %s281
      $region44: #{bidaf_forward.18} parent=31 // pred_fallthru
        _
      // Predicated region
      $region45: #{bidaf_forward.18} parent=31 // pred_check
        %p283 = pneg %p113
      $region46: #{bidaf_forward.18} parent=31 // pred_check_branch
        %285 = sbr.rel (%p283) target = $region48
      $region47: #{bidaf_forward.18} parent=31 // pred_region
        %p286 = scmp.lt.s32.totalorder %s15, 1
        %s287 = scalar_select %p286, %s15, 1
        %s288 = scalar_lea.vmem %s3, %s287
      $region48: #{bidaf_forward.18} parent=31 // pred_fallthru
        _
    $region32: #{bidaf_forward.18} parent=5 // pred_fallthru
      _
    %p289 = scmp.le.s32.totalorder 1, %s15
    %p290 = scmp.lt.s32.totalorder %s15, 3
    %p291 = pnand %p289, %p290
    %p292 = pneg %p291
    // Predicated region
    $region49: #{bidaf_forward.18} parent=5 // pred_check
      _
    $region50: #{bidaf_forward.18} parent=5 // pred_check_branch
      %294 = sbr.rel (%p291) target = $region52
    $region51: #{bidaf_forward.18} parent=5 // pred_region
      %s295 = ssub.s32 %s15, 1
      %p296 = scmp.lt.s32.totalorder %s20, 1
      %s297 = scalar_select %p296, %s20, 1
      %s298 = smul.addr %s297, 2
      %s299 = smul.addr %s298, 8
      %s300 = scalar_lea.vmem %s0, %s299
      %p301 = pneg %p41
      %p302 = pneg %p38
      %p303 = scmp.lt.s32.totalorder %s20, 1
      %s304 = scalar_select %p303, %s20, 1
      %s305 = smul.addr %s304, 8
      %s306 = scalar_lea.vmem %s1, %s305
      %p307 = pneg %p67
      %p308 = pneg %p64
      %p309 = scmp.lt.s32.totalorder %s20, 1
      %s310 = scalar_select %p309, %s20, 1
      %s311 = smul.addr %s310, 2
      %s312 = smul.addr %s311, 8
      %s313 = scalar_lea.vmem %s2, %s312
      %p314 = pneg %p93
      %p315 = pneg %p90
      %p316 = scmp.lt.s32.totalorder %s20, 1
      %s317 = scalar_select %p316, %s20, 1
      %s318 = scalar_lea.vmem %s3, %s317
      %p319 = pneg %p119
      %p320 = pneg %p116
      %p321 = pneg %p140
      %p322 = pneg %p137
      %p323 = pneg %p161
      %p324 = pneg %p158
      %p325 = pneg %p182
      %p326 = pneg %p179
      %p327 = pneg %p203
      %p328 = pneg %p200
      %p329 = pneg %p229
      %p330 = pneg %p226
      %p331 = scmp.lt.s32.totalorder %s20, 1
      %s332 = scalar_select %p331, %s20, 1
      %s333 = smul.addr %s332, 4
      %s334 = smul.addr %s333, 8
      %s335 = scalar_lea.vmem %s8, %s334
      %p336 = scmp.lt.s32.totalorder %s20, 1
      %s337 = scalar_select %p336, %s20, 1
      %s338 = smul.addr %s337, 2
      %s339 = smul.addr %s338, 8
      %s340 = scalar_lea.vmem %s0, %s339
      %p341 = scmp.lt.s32.totalorder %s20, 1
      %s342 = scalar_select %p341, %s20, 1
      %s343 = smul.addr %s342, 8
      %s344 = scalar_lea.vmem %s1, %s343
      %p345 = scmp.lt.s32.totalorder %s20, 1
      %s346 = scalar_select %p345, %s20, 1
      %s347 = smul.addr %s346, 2
      %s348 = smul.addr %s347, 8
      %s349 = scalar_lea.vmem %s2, %s348
      %p350 = scmp.lt.s32.totalorder %s20, 1
      %s351 = scalar_select %p350, %s20, 1
      %s352 = scalar_lea.vmem %s3, %s351
      %p353 = scmp.lt.s32.totalorder %s20, 1
      %s354 = scalar_select %p353, %s20, 1
      %s355 = smul.addr %s354, 4
      %s356 = smul.addr %s355, 8
      %s357 = scalar_lea.vmem %s8, %s356
      %v358 = vld [vmem:[%s340] sm:$0xff]
      %v359 = vld [vmem:[%s340 + $0x8] sm:$0xff]
      %v360 = vld [vmem:[%s344] sm:$0xff]
      %v361 = vld [vmem:[%s349] sm:$0xff]
      %v362 = vld [vmem:[%s349 + $0x8] sm:$0xff]
      %v363 = vld [vmem:[%s352] sm:$0x1]
      %s364 = sld [smem:[#allocation2]]
      %v365 = vld [vmem:[%s4] sm:$0x1]
      %v366 = vld [vmem:[%s5] sm:$0x1]
      %v367 = vld [vmem:[%s6] sm:$0x1]
      %v369 = vlaneseq
      %v370 = vshrl.u32 %v369, 7
      %v371 = vsub.s32 0, %v370
      %v372 = vrot.slane %v365, %v371
      %v374 = vmul.f32 %v358, %v372
      %v375 = vmul.f32 %v359, %v372
      %vm376 = vcmask 523264
      %v377 = vsel %vm376, %v374, 0.0
      %378 = vadd.xlane.f32.xlu0 %v377
      %v379 = vpop.xlane.xlu0 %378
      %v380 = vsel %vm376, %v375, 0.0
      %381 = vadd.xlane.f32.xlu0 %v380
      %v382 = vpop.xlane.xlu0 %381
      %v384 = vsel %vm376, %v366, 0
      %v387 = vsel %vm376, %v360, 0
      %389 = vmatprep.subr.mxu0 0.0
      %390 = vmatpush1.xpose.msra.mxu0 %v387
      %391 = vmatprep.subr.mxu0 0.0
      %392 = vmatpush1.xpose.msra.mxu0 0.0
      %393 = vmatprep.subr.mxu0 0.0
      %394 = vmatpush1.xpose.msra.mxu0 0.0
      %395 = vmatprep.subr.mxu0 0.0
      %396 = vmatpush1.xpose.msra.mxu0 0.0
      %397 = vmatprep.subr.mxu0 0.0
      %398 = vmatpush1.xpose.msra.mxu0 0.0
      %399 = vmatprep.subr.mxu0 0.0
      %400 = vmatpush1.xpose.msra.mxu0 0.0
      %401 = vmatprep.subr.mxu0 0.0
      %402 = vmatpush1.xpose.msra.mxu0 0.0
      %403 = vmatprep.subr.mxu0 0.0
      %404 = vmatpush1.xpose.msra.mxu0 0.0
      %405 = vmatprep.subr.mxu0 0.0
      %406 = vmatpush1.xpose.msra.mxu0 0.0
      %407 = vmatprep.subr.mxu0 0.0
      %408 = vmatpush1.xpose.msra.mxu0 0.0
      %409 = vmatprep.subr.mxu0 0.0
      %410 = vmatpush1.xpose.msra.mxu0 0.0
      %411 = vmatprep.subr.mxu0 0.0
      %412 = vmatpush1.xpose.msra.mxu0 0.0
      %413 = vmatprep.subr.mxu0 0.0
      %414 = vmatpush1.xpose.msra.mxu0 0.0
      %415 = vmatprep.subr.mxu0 0.0
      %416 = vmatpush1.xpose.msra.mxu0 0.0
      %417 = vmatprep.subr.mxu0 0.0
      %418 = vmatpush1.xpose.msra.mxu0 0.0
      %419 = vmatprep.subr.mxu0 0.0
      %420 = vmatpush1.xpose.msra.mxu0 0.0
      %421 = vmatprep.subr.mxu0 0.0
      %422 = vmatpush1.xpose.msra.mxu0 0.0
      %423 = vmatprep.subr.mxu0 0.0
      %424 = vmatpush1.xpose.msra.mxu0 0.0
      %425 = vmatprep.subr.mxu0 0.0
      %426 = vmatpush1.xpose.msra.mxu0 0.0
      %427 = vmatprep.subr.mxu0 0.0
      %428 = vmatpush1.xpose.msra.mxu0 0.0
      %429 = vmatprep.subr.mxu0 0.0
      %430 = vmatpush1.xpose.msra.mxu0 0.0
      %431 = vmatprep.subr.mxu0 0.0
      %432 = vmatpush1.xpose.msra.mxu0 0.0
      %433 = vmatprep.subr.mxu0 0.0
      %434 = vmatpush1.xpose.msra.mxu0 0.0
      %435 = vmatprep.subr.mxu0 0.0
      %436 = vmatpush1.xpose.msra.mxu0 0.0
      %437 = vmatprep.subr.mxu0 0.0
      %438 = vmatpush1.xpose.msra.mxu0 0.0
      %439 = vmatprep.subr.mxu0 0.0
      %440 = vmatpush1.xpose.msra.mxu0 0.0
      %441 = vmatprep.subr.mxu0 0.0
      %442 = vmatpush1.xpose.msra.mxu0 0.0
      %443 = vmatprep.subr.mxu0 0.0
      %444 = vmatpush1.xpose.msra.mxu0 0.0
      %445 = vmatprep.subr.mxu0 0.0
      %446 = vmatpush1.xpose.msra.mxu0 0.0
      %447 = vmatprep.subr.mxu0 0.0
      %448 = vmatpush1.xpose.msra.mxu0 0.0
      %449 = vmatprep.subr.mxu0 0.0
      %450 = vmatpush1.xpose.msra.mxu0 0.0
      %451 = vmatprep.subr.mxu0 0.0
      %452 = vmatpush1.xpose.msra.mxu0 0.0
      %453 = vmatprep.mubr.f32.mxu0 0.0
      %454 = vmatmul.mubr.f32.gmra.mrb[0].mxu0 %v384
      %v455 = vpop.f32.mrb[0].mxu0
      %v456 = vadd.f32 0.0, %v455
      %v457 = vpop.f32.mrb[0].mxu0
      %458 = vdwg.mxu0
      %v460 = vlaneseq
      %v461 = vshrl.u32 %v460, 7
      %v462 = vsub.s32 0, %v461
      %v463 = vrot.slane %v367, %v462
      %v465 = vmul.f32 %v358, %v463
      %v466 = vmul.f32 %v359, %v463
      %v468 = vsel %vm376, %v465, 0
      %v471 = vsel %vm376, %v466, 0
      %473 = vmatprep.subr.mxu0 0.0
      %474 = vmatpush1.xpose.msra.mxu0 %v387
      %475 = vmatprep.subr.mxu0 0.0
      %476 = vmatpush1.xpose.msra.mxu0 0.0
      %477 = vmatprep.subr.mxu0 0.0
      %478 = vmatpush1.xpose.msra.mxu0 0.0
      %479 = vmatprep.subr.mxu0 0.0
      %480 = vmatpush1.xpose.msra.mxu0 0.0
      %481 = vmatprep.subr.mxu0 0.0
      %482 = vmatpush1.xpose.msra.mxu0 0.0
      %483 = vmatprep.subr.mxu0 0.0
      %484 = vmatpush1.xpose.msra.mxu0 0.0
      %485 = vmatprep.subr.mxu0 0.0
      %486 = vmatpush1.xpose.msra.mxu0 0.0
      %487 = vmatprep.subr.mxu0 0.0
      %488 = vmatpush1.xpose.msra.mxu0 0.0
      %489 = vmatprep.subr.mxu0 0.0
      %490 = vmatpush1.xpose.msra.mxu0 0.0
      %491 = vmatprep.subr.mxu0 0.0
      %492 = vmatpush1.xpose.msra.mxu0 0.0
      %493 = vmatprep.subr.mxu0 0.0
      %494 = vmatpush1.xpose.msra.mxu0 0.0
      %495 = vmatprep.subr.mxu0 0.0
      %496 = vmatpush1.xpose.msra.mxu0 0.0
      %497 = vmatprep.subr.mxu0 0.0
      %498 = vmatpush1.xpose.msra.mxu0 0.0
      %499 = vmatprep.subr.mxu0 0.0
      %500 = vmatpush1.xpose.msra.mxu0 0.0
      %501 = vmatprep.subr.mxu0 0.0
      %502 = vmatpush1.xpose.msra.mxu0 0.0
      %503 = vmatprep.subr.mxu0 0.0
      %504 = vmatpush1.xpose.msra.mxu0 0.0
      %505 = vmatprep.subr.mxu0 0.0
      %506 = vmatpush1.xpose.msra.mxu0 0.0
      %507 = vmatprep.subr.mxu0 0.0
      %508 = vmatpush1.xpose.msra.mxu0 0.0
      %509 = vmatprep.subr.mxu0 0.0
      %510 = vmatpush1.xpose.msra.mxu0 0.0
      %511 = vmatprep.subr.mxu0 0.0
      %512 = vmatpush1.xpose.msra.mxu0 0.0
      %513 = vmatprep.subr.mxu0 0.0
      %514 = vmatpush1.xpose.msra.mxu0 0.0
      %515 = vmatprep.subr.mxu0 0.0
      %516 = vmatpush1.xpose.msra.mxu0 0.0
      %517 = vmatprep.subr.mxu0 0.0
      %518 = vmatpush1.xpose.msra.mxu0 0.0
      %519 = vmatprep.subr.mxu0 0.0
      %520 = vmatpush1.xpose.msra.mxu0 0.0
      %521 = vmatprep.subr.mxu0 0.0
      %522 = vmatpush1.xpose.msra.mxu0 0.0
      %523 = vmatprep.subr.mxu0 0.0
      %524 = vmatpush1.xpose.msra.mxu0 0.0
      %525 = vmatprep.subr.mxu0 0.0
      %526 = vmatpush1.xpose.msra.mxu0 0.0
      %527 = vmatprep.subr.mxu0 0.0
      %528 = vmatpush1.xpose.msra.mxu0 0.0
      %529 = vmatprep.subr.mxu0 0.0
      %530 = vmatpush1.xpose.msra.mxu0 0.0
      %531 = vmatprep.subr.mxu0 0.0
      %532 = vmatpush1.xpose.msra.mxu0 0.0
      %533 = vmatprep.subr.mxu0 0.0
      %534 = vmatpush1.xpose.msra.mxu0 0.0
      %535 = vmatprep.subr.mxu0 0.0
      %536 = vmatpush1.xpose.msra.mxu0 0.0
      %537 = vmatprep.mubr.f32.mxu0 0.0
      %538 = vmatmul.mubr.f32.gmra.mrb[0].mxu0 %v468
      %v539 = vpop.f32.mrb[0].mxu0
      %v540 = vadd.f32 0.0, %v539
      %v541 = vpop.f32.mrb[0].mxu0
      %542 = vmatprep.mubr.f32.mxu0 0.0
      %543 = vmatmul.mubr.f32.gmra.mrb[0].mxu0 %v471
      %v544 = vpop.f32.mrb[0].mxu0
      %v545 = vadd.f32 0.0, %v544
      %v546 = vpop.f32.mrb[0].mxu0
      %547 = vdwg.mxu0
      %v548 = vlaneseq
      %v549 = vshrl.u32 %v548, 7
      %v550 = vsub.s32 0, %v549
      %v551 = vrot.slane %v456, %v550
      %v552 = vadd.f32 %v379, %v551
      %v553 = vadd.f32 %v382, %v551
      %v554 = vadd.f32 %v552, %v540
      %v555 = vadd.f32 %v553, %v545
      %v556 = vstv %s364
      %v557 = vadd.f32 %v554, %v556
      %v558 = vadd.f32 %v555, %v556
      %vm559 = vcmp.ne.f32.partialorder %v363, 0.0
      %v560 = vsel %vm559, 1, 0
      %v561 = vlaneseq
      %v562 = vshrl.u32 %v561, 7
      %v563 = vsub.s32 0, %v562
      %v564 = vrot.slane %v560, %v563
      %vm565 = vcmp.eq.s32.totalorder %v564, 1
      %v566 = vsel %vm565, %v557, -1e+30
      %v567 = vsel %vm565, %v558, -1e+30
      %vm568 = vcmask 64512
      %v569 = vsel %vm568, %v566, -inf
      %570 = vmax.xlane.f32.xlu0 %v569
      %v571 = vpop.xlane.xlu0 %570
      %v572 = vsel %vm568, %v567, -inf
      %573 = vmax.xlane.f32.xlu0 %v572
      %v574 = vpop.xlane.xlu0 %573
      %v575 = vsub.f32 %v566, %v571
      %v576 = vsub.f32 %v567, %v574
      %v577 = vmul.f32 %v575, 1.442695
      %v578 = vpow.pop %v577
      %v579 = vmul.f32 %v576, 1.442695
      %v580 = vpow.pop %v579
      %v581 = vsel %vm568, %v578, 0.0
      %582 = vadd.xlane.f32.xlu0 %v581
      %v583 = vpop.xlane.xlu0 %582
      %v584 = vsel %vm568, %v580, 0.0
      %585 = vadd.xlane.f32.xlu0 %v584
      %v586 = vpop.xlane.xlu0 %585
      %v587 = vrcp.pop %v583
      %v588 = vrcp.pop %v586
      %v589 = vmul.f32 %v578, %v587
      %v590 = vmul.f32 %v580, %v588
      %vm591 = vcmp.ne.f32.partialorder %v361, 0.0
      %vm592 = vcmp.ne.f32.partialorder %v362, 0.0
      %v593 = vsel %vm591, 1, 0
      %v594 = vsel %vm592, 1, 0
      %595 = vset.pattern.permute.xlu0 0
      %596 = vperm.xlu0 %595, %v593
      %v597 = vpop.permute.xlu0 %596
      %598 = vset.pattern.permute.xlu0 0
      %599 = vperm.xlu0 %598, %v594
      %v600 = vpop.permute.xlu0 %599
      %vm601 = vcmp.eq.s32.totalorder %v597, 1
      %vm602 = vcmp.eq.s32.totalorder %v600, 1
      %v603 = vsel %vm601, %v557, -1e+30
      %v604 = vsel %vm602, %v558, -1e+30
      %v605 = vsel %vm568, %v603, -inf
      %v606 = vsel %vm568, %v604, -inf
      %v607 = vmax.f32 %v605, %v606
      %v608 = vrot.slane %v607, 4
      %v609 = vmax.f32 %v607, %v608
      %v610 = vrot.slane %v609, 2
      %v611 = vmax.f32 %v609, %v610
      %v612 = vrot.slane %v611, 1
      %v613 = vmax.f32 %v611, %v612
      %v614 = vsub.f32 %v603, %v613
      %v615 = vsub.f32 %v604, %v613
      %v616 = vmul.f32 %v614, 1.442695
      %v617 = vpow.pop %v616
      %v618 = vmul.f32 %v615, 1.442695
      %v619 = vpow.pop %v618
      %v620 = vsel %vm568, %v617, 0.0
      %v621 = vsel %vm568, %v619, 0.0
      %v622 = vadd.f32 %v620, %v621
      %v623 = vrot.slane %v622, 4
      %v624 = vadd.f32 %v622, %v623
      %v625 = vrot.slane %v624, 2
      %v626 = vadd.f32 %v624, %v625
      %v627 = vrot.slane %v626, 1
      %v628 = vadd.f32 %v626, %v627
      %v629 = vrcp.pop %v628
      %v630 = vmul.f32 %v617, %v629
      %v631 = vmul.f32 %v619, %v629
      %v633 = vsel %vm568, %v589, 0
      %v636 = vsel %vm568, %v590, 0
      %638 = vmatprep.subr.mxu0 0.0
      %639 = vmatpush1.msra.mxu0 %v360
      %640 = vmatprep.subr.mxu0 0.0
      %641 = vmatpush1.msra.mxu0 0.0
      %642 = vmatprep.subr.mxu0 0.0
      %643 = vmatpush1.msra.mxu0 0.0
      %644 = vmatprep.subr.mxu0 0.0
      %645 = vmatpush1.msra.mxu0 0.0
      %646 = vmatprep.subr.mxu0 0.0
      %647 = vmatpush1.msra.mxu0 0.0
      %648 = vmatprep.subr.mxu0 0.0
      %649 = vmatpush1.msra.mxu0 0.0
      %650 = vmatprep.subr.mxu0 0.0
      %651 = vmatpush1.msra.mxu0 0.0
      %652 = vmatprep.subr.mxu0 0.0
      %653 = vmatpush1.msra.mxu0 0.0
      %654 = vmatprep.subr.mxu0 0.0
      %655 = vmatpush1.msra.mxu0 0.0
      %656 = vmatprep.subr.mxu0 0.0
      %657 = vmatpush1.msra.mxu0 0.0
      %658 = vmatprep.subr.mxu0 0.0
      %659 = vmatpush1.msra.mxu0 0.0
      %660 = vmatprep.subr.mxu0 0.0
      %661 = vmatpush1.msra.mxu0 0.0
      %662 = vmatprep.subr.mxu0 0.0
      %663 = vmatpush1.msra.mxu0 0.0
      %664 = vmatprep.subr.mxu0 0.0
      %665 = vmatpush1.msra.mxu0 0.0
      %666 = vmatprep.subr.mxu0 0.0
      %667 = vmatpush1.msra.mxu0 0.0
      %668 = vmatprep.subr.mxu0 0.0
      %669 = vmatpush1.msra.mxu0 0.0
      %670 = vmatprep.subr.mxu0 0.0
      %671 = vmatpush1.msra.mxu0 0.0
      %672 = vmatprep.subr.mxu0 0.0
      %673 = vmatpush1.msra.mxu0 0.0
      %674 = vmatprep.subr.mxu0 0.0
      %675 = vmatpush1.msra.mxu0 0.0
      %676 = vmatprep.subr.mxu0 0.0
      %677 = vmatpush1.msra.mxu0 0.0
      %678 = vmatprep.subr.mxu0 0.0
      %679 = vmatpush1.msra.mxu0 0.0
      %680 = vmatprep.subr.mxu0 0.0
      %681 = vmatpush1.msra.mxu0 0.0
      %682 = vmatprep.subr.mxu0 0.0
      %683 = vmatpush1.msra.mxu0 0.0
      %684 = vmatprep.subr.mxu0 0.0
      %685 = vmatpush1.msra.mxu0 0.0
      %686 = vmatprep.subr.mxu0 0.0
      %687 = vmatpush1.msra.mxu0 0.0
      %688 = vmatprep.subr.mxu0 0.0
      %689 = vmatpush1.msra.mxu0 0.0
      %690 = vmatprep.subr.mxu0 0.0
      %691 = vmatpush1.msra.mxu0 0.0
      %692 = vmatprep.subr.mxu0 0.0
      %693 = vmatpush1.msra.mxu0 0.0
      %694 = vmatprep.subr.mxu0 0.0
      %695 = vmatpush1.msra.mxu0 0.0
      %696 = vmatprep.subr.mxu0 0.0
      %697 = vmatpush1.msra.mxu0 0.0
      %698 = vmatprep.subr.mxu0 0.0
      %699 = vmatpush1.msra.mxu0 0.0
      %700 = vmatprep.subr.mxu0 0.0
      %701 = vmatpush1.msra.mxu0 0.0
      %702 = vmatprep.mubr.f32.mxu0 0.0
      %703 = vmatmul.mubr.f32.gmra.mrb[0].mxu0 %v633
      %v704 = vpop.f32.mrb[0].mxu0
      %v705 = vadd.f32 0.0, %v704
      %v706 = vpop.f32.mrb[0].mxu0
      %707 = vmatprep.mubr.f32.mxu0 0.0
      %708 = vmatmul.mubr.f32.gmra.mrb[0].mxu0 %v636
      %v709 = vpop.f32.mrb[0].mxu0
      %v710 = vadd.f32 0.0, %v709
      %v711 = vpop.f32.mrb[0].mxu0
      %712 = vdwg.mxu0
      %713 = vxpose.xlu0.b32.start [1/16] %v630, 128
      %714 = vxpose.xlu0.b32.cont [2/16] %v631, 128
      %715 = vxpose.xlu0.b32.cont [3/16] 0.0, 128
      %716 = vxpose.xlu0.b32.cont [4/16] 0.0, 128
      %717 = vxpose.xlu0.b32.cont [5/16] 0.0, 128
      %718 = vxpose.xlu0.b32.cont [6/16] 0.0, 128
      %719 = vxpose.xlu0.b32.cont [7/16] 0.0, 128
      %720 = vxpose.xlu0.b32.cont [8/16] 0.0, 128
      %721 = vxpose.xlu0.b32.cont [9/16] 0.0, 128
      %722 = vxpose.xlu0.b32.cont [10/16] 0.0, 128
      %723 = vxpose.xlu0.b32.cont [11/16] 0.0, 128
      %724 = vxpose.xlu0.b32.cont [12/16] 0.0, 128
      %725 = vxpose.xlu0.b32.cont [13/16] 0.0, 128
      %726 = vxpose.xlu0.b32.cont [14/16] 0.0, 128
      %727 = vxpose.xlu0.b32.cont [15/16] 0.0, 128
      %728 = vxpose.xlu0.b32.end [16/16] 0.0, 128
      %v729 = vpop.trf.xlu0
      %v730 = vpop.trf.xlu0
      %v731 = vpop.trf.xlu0
      %v732 = vpop.trf.xlu0
      %v733 = vpop.trf.xlu0
      %v734 = vpop.trf.xlu0
      %v735 = vpop.trf.xlu0
      %v736 = vpop.trf.xlu0
      %v737 = vpop.trf.xlu0
      %v738 = vpop.trf.xlu0
      %v739 = vpop.trf.xlu0
      %v740 = vpop.trf.xlu0
      %v741 = vpop.trf.xlu0
      %v742 = vpop.trf.xlu0
      %v743 = vpop.trf.xlu0
      %v744 = vpop.trf.xlu0
      %vm745 = vcmask 130048
      %v747 = vsel %vm745, %v729, 0
      %749 = vmatprep.subr.mxu0 0.0
      %750 = vmatpush1.msra.mxu0 %v358
      %751 = vmatprep.subr.mxu0 0.0
      %752 = vmatpush1.msra.mxu0 %v359
      %753 = vmatprep.subr.mxu0 0.0
      %754 = vmatpush1.msra.mxu0 0.0
      %755 = vmatprep.subr.mxu0 0.0
      %756 = vmatpush1.msra.mxu0 0.0
      %757 = vmatprep.subr.mxu0 0.0
      %758 = vmatpush1.msra.mxu0 0.0
      %759 = vmatprep.subr.mxu0 0.0
      %760 = vmatpush1.msra.mxu0 0.0
      %761 = vmatprep.subr.mxu0 0.0
      %762 = vmatpush1.msra.mxu0 0.0
      %763 = vmatprep.subr.mxu0 0.0
      %764 = vmatpush1.msra.mxu0 0.0
      %765 = vmatprep.subr.mxu0 0.0
      %766 = vmatpush1.msra.mxu0 0.0
      %767 = vmatprep.subr.mxu0 0.0
      %768 = vmatpush1.msra.mxu0 0.0
      %769 = vmatprep.subr.mxu0 0.0
      %770 = vmatpush1.msra.mxu0 0.0
      %771 = vmatprep.subr.mxu0 0.0
      %772 = vmatpush1.msra.mxu0 0.0
      %773 = vmatprep.subr.mxu0 0.0
      %774 = vmatpush1.msra.mxu0 0.0
      %775 = vmatprep.subr.mxu0 0.0
      %776 = vmatpush1.msra.mxu0 0.0
      %777 = vmatprep.subr.mxu0 0.0
      %778 = vmatpush1.msra.mxu0 0.0
      %779 = vmatprep.subr.mxu0 0.0
      %780 = vmatpush1.msra.mxu0 0.0
      %781 = vmatprep.subr.mxu0 0.0
      %782 = vmatpush1.msra.mxu0 0.0
      %783 = vmatprep.subr.mxu0 0.0
      %784 = vmatpush1.msra.mxu0 0.0
      %785 = vmatprep.subr.mxu0 0.0
      %786 = vmatpush1.msra.mxu0 0.0
      %787 = vmatprep.subr.mxu0 0.0
      %788 = vmatpush1.msra.mxu0 0.0
      %789 = vmatprep.subr.mxu0 0.0
      %790 = vmatpush1.msra.mxu0 0.0
      %791 = vmatprep.subr.mxu0 0.0
      %792 = vmatpush1.msra.mxu0 0.0
      %793 = vmatprep.subr.mxu0 0.0
      %794 = vmatpush1.msra.mxu0 0.0
      %795 = vmatprep.subr.mxu0 0.0
      %796 = vmatpush1.msra.mxu0 0.0
      %797 = vmatprep.subr.mxu0 0.0
      %798 = vmatpush1.msra.mxu0 0.0
      %799 = vmatprep.subr.mxu0 0.0
      %800 = vmatpush1.msra.mxu0 0.0
      %801 = vmatprep.subr.mxu0 0.0
      %802 = vmatpush1.msra.mxu0 0.0
      %803 = vmatprep.subr.mxu0 0.0
      %804 = vmatpush1.msra.mxu0 0.0
      %805 = vmatprep.subr.mxu0 0.0
      %806 = vmatpush1.msra.mxu0 0.0
      %807 = vmatprep.subr.mxu0 0.0
      %808 = vmatpush1.msra.mxu0 0.0
      %809 = vmatprep.subr.mxu0 0.0
      %810 = vmatpush1.msra.mxu0 0.0
      %811 = vmatprep.subr.mxu0 0.0
      %812 = vmatpush1.msra.mxu0 0.0
      %813 = vmatprep.mubr.f32.mxu0 0.0
      %814 = vmatmul.mubr.f32.gmra.mrb[0].mxu0 %v747
      %v815 = vpop.f32.mrb[0].mxu0
      %v816 = vadd.f32 0.0, %v815
      %v817 = vpop.f32.mrb[0].mxu0
      %818 = vdwg.mxu0
      %819 = vmatprep.subr.mxu0 0.0
      %820 = vmatpush1.msra.mxu0 %v816
      %821 = vmatprep.subr.mxu0 0.0
      %822 = vmatpush1.msra.mxu0 0.0
      %823 = vmatprep.subr.mxu0 0.0
      %824 = vmatpush1.msra.mxu0 0.0
      %825 = vmatprep.subr.mxu0 0.0
      %826 = vmatpush1.msra.mxu0 0.0
      %827 = vmatprep.subr.mxu0 0.0
      %828 = vmatpush1.msra.mxu0 0.0
      %829 = vmatprep.subr.mxu0 0.0
      %830 = vmatpush1.msra.mxu0 0.0
      %831 = vmatprep.subr.mxu0 0.0
      %832 = vmatpush1.msra.mxu0 0.0
      %833 = vmatprep.subr.mxu0 0.0
      %834 = vmatpush1.msra.mxu0 0.0
      %835 = vmatprep.subr.mxu0 0.0
      %836 = vmatpush1.msra.mxu0 0.0
      %837 = vmatprep.subr.mxu0 0.0
      %838 = vmatpush1.msra.mxu0 0.0
      %839 = vmatprep.subr.mxu0 0.0
      %840 = vmatpush1.msra.mxu0 0.0
      %841 = vmatprep.subr.mxu0 0.0
      %842 = vmatpush1.msra.mxu0 0.0
      %843 = vmatprep.subr.mxu0 0.0
      %844 = vmatpush1.msra.mxu0 0.0
      %845 = vmatprep.subr.mxu0 0.0
      %846 = vmatpush1.msra.mxu0 0.0
      %847 = vmatprep.subr.mxu0 0.0
      %848 = vmatpush1.msra.mxu0 0.0
      %849 = vmatprep.subr.mxu0 0.0
      %850 = vmatpush1.msra.mxu0 0.0
      %851 = vmatprep.subr.mxu0 0.0
      %852 = vmatpush1.msra.mxu0 0.0
      %853 = vmatprep.subr.mxu0 0.0
      %854 = vmatpush1.msra.mxu0 0.0
      %855 = vmatprep.subr.mxu0 0.0
      %856 = vmatpush1.msra.mxu0 0.0
      %857 = vmatprep.subr.mxu0 0.0
      %858 = vmatpush1.msra.mxu0 0.0
      %859 = vmatprep.subr.mxu0 0.0
      %860 = vmatpush1.msra.mxu0 0.0
      %861 = vmatprep.subr.mxu0 0.0
      %862 = vmatpush1.msra.mxu0 0.0
      %863 = vmatprep.subr.mxu0 0.0
      %864 = vmatpush1.msra.mxu0 0.0
      %865 = vmatprep.subr.mxu0 0.0
      %866 = vmatpush1.msra.mxu0 0.0
      %867 = vmatprep.subr.mxu0 0.0
      %868 = vmatpush1.msra.mxu0 0.0
      %869 = vmatprep.subr.mxu0 0.0
      %870 = vmatpush1.msra.mxu0 0.0
      %871 = vmatprep.subr.mxu0 0.0
      %872 = vmatpush1.msra.mxu0 0.0
      %873 = vmatprep.subr.mxu0 0.0
      %874 = vmatpush1.msra.mxu0 0.0
      %875 = vmatprep.subr.mxu0 0.0
      %876 = vmatpush1.msra.mxu0 0.0
      %877 = vmatprep.subr.mxu0 0.0
      %878 = vmatpush1.msra.mxu0 0.0
      %879 = vmatprep.subr.mxu0 0.0
      %880 = vmatpush1.msra.mxu0 0.0
      %881 = vmatprep.subr.mxu0 0.0
      %882 = vmatpush1.msra.mxu0 0.0
      %883 = vmatprep.mubr.f32.mxu0 0.0
      %884 = vmatmul.mubr.f32.gmra.mrb[0].mxu0 %v633
      %v885 = vpop.f32.mrb[0].mxu0
      %v886 = vadd.f32 0.0, %v885
      %v887 = vpop.f32.mrb[0].mxu0
      %888 = vmatprep.mubr.f32.mxu0 0.0
      %889 = vmatmul.mubr.f32.gmra.mrb[0].mxu0 %v636
      %v890 = vpop.f32.mrb[0].mxu0
      %v891 = vadd.f32 0.0, %v890
      %v892 = vpop.f32.mrb[0].mxu0
      %893 = vdwg.mxu0
      %v894 = vmul.f32 %v358, %v705
      %v895 = vmul.f32 %v359, %v710
      %v896 = vmul.f32 %v358, %v886
      %v897 = vmul.f32 %v359, %v891
      %900 = vrot.lane.b32.xlu0 %v705, 64
      %v901 = vpop.permute.xlu0 %900
      %902 = vrot.lane.b32.xlu0 %v710, 64
      %v903 = vpop.permute.xlu0 %902
      %908 = vrot.lane.b32.xlu0 %v896, 64
      %v909 = vpop.permute.xlu0 %908
      %910 = vrot.lane.b32.xlu0 %v897, 64
      %v911 = vpop.permute.xlu0 %910
      %v914 = vsel %vm376, %v358, %v901
      %v915 = vsel %vm376, %v359, %v903
      %v916 = vsel %vm376, %v894, %v909
      %v917 = vsel %vm376, %v895, %v911
      %918 = vst [vmem:[%s357] sm:$0xff] %v914
      %919 = vst [vmem:[%s357 + $0x8] sm:$0xff] %v916
      %920 = vst [vmem:[%s357 + $0x10] sm:$0xff] %v915
      %921 = vst [vmem:[%s357 + $0x18] sm:$0xff] %v917
      %p922 = scmp.lt.s32.totalorder %s20, 1
      %s923 = scalar_select %p922, %s20, 1
      %s924 = smul.addr %s923, 4
      %s925 = smul.addr %s924, 8
      %s926 = scalar_lea.vmem %s8, %s925
      // Predicated region
      $region53: #{bidaf_forward.18} parent=51 // pred_check
        %p927 = pneg %p226
      $region54: #{bidaf_forward.18} parent=51 // pred_check_branch
        %929 = sbr.rel (%p927) target = $region56
      $region55: #{bidaf_forward.18} parent=51 // pred_region
        _
      $region56: #{bidaf_forward.18} parent=51 // pred_fallthru
        _
    $region52: #{bidaf_forward.18} parent=5 // pred_fallthru
      _
    %p930 = scmp.le.s32.totalorder 2, %s15
    // Predicated region
    $region57: #{bidaf_forward.18} parent=5 // pred_check
      %p931 = pneg %p930
    $region58: #{bidaf_forward.18} parent=5 // pred_check_branch
      %933 = sbr.rel (%p931) target = $region60
    $region59: #{bidaf_forward.18} parent=5 // pred_region
      %s934 = ssub.s32 %s15, 2
      // Predicated region
      $region61: #{bidaf_forward.18} parent=59 // pred_check
        %p935 = pneg %p232
      $region62: #{bidaf_forward.18} parent=59 // pred_check_branch
        %937 = sbr.rel (%p935) target = $region64
      $region63: #{bidaf_forward.18} parent=59 // pred_region
        %p938 = scmp.lt.s32.totalorder %s21, 1
        %s939 = scalar_select %p938, %s21, 1
        %s940 = smul.addr %s939, 4
        %s941 = smul.addr %s940, 8
        %s942 = scalar_lea.vmem %s8, %s941
      $region64: #{bidaf_forward.18} parent=59 // pred_fallthru
        _
    $region60: #{bidaf_forward.18} parent=5 // pred_fallthru
      _
  $region6: #{bidaf_forward.18} parent=0 // loop_footer
    %s19 = sadd.s32 1, %s15
  $region7: #{bidaf_forward.18} parent=0 // loop_footer_branch
    %14 = sbr.rel target = $region3
  $region8: #{bidaf_forward.18} parent=0 // loop_exit
    _

// kernel: bidaf_forward.25
$region0: #{bidaf_forward.25}
  #allocation0 [shape = 'u32[]', space=smem, size = 0x4, offset = 0x4, fixed_abs, tag = 'smem constant byte address 0x4 - core index']
  #allocation1 [shape = 'u32[144,128]{1,0:T(1,128)}', space=vmem, size = 0x12000, scoped, tag = 'internal scratch']
  %s0 = inlined_call_operand.vmem [shape: f32[2,16,256], index: 0, kind: input, shape index: {}]
  %s1 = inlined_call_operand.vmem [shape: f32[2,16,64], index: 1, kind: input, shape index: {}]
  %s2 = inlined_call_operand.vmem [shape: f32[2,16,64], index: 2, kind: input, shape index: {}]
  %s3 = inlined_call_operand.vmem [shape: f32[2,1,16], index: 3, kind: input, shape index: {}]
  %s4 = inlined_call_operand.vmem [shape: f32[1,256], index: 4, kind: input, shape index: {}]
  %s5 = inlined_call_operand.vmem [shape: f32[1,64], index: 5, kind: input, shape index: {}]
  %s6 = inlined_call_operand.vmem [shape: f32[1,256], index: 6, kind: input, shape index: {}]
  %s7 = inlined_call_operand.vmem [shape: f32[1,64], index: 7, kind: input, shape index: {}]
  %s8 = inlined_call_operand.vmem [shape: f32[4], index: 8, kind: input, shape index: {}]
  %s9 = inlined_call_operand.hbm [shape: f32[2,1,16], index: 9, kind: output, shape index: {0}]
  %s10 = inlined_call_operand.hbm [shape: f32[2,1,16], index: 10, kind: output, shape index: {1}]
  %11 = xla_tuple %s9, %s10
  %s12 = sld [smem:[#allocation0]]
  $region81: #{bidaf_forward.25} parent=0
    _
  %s14 = ssub.s32 1, %s12
  %s15 = scalar_select 0, %s14, %s12
  $region1: #{bidaf_forward.25} parent=0
    #allocation2 [shape = 'u8[512]{0}', space=smem, size = 0x200, scoped, tag = 'input window, operand 8, single buffered']
    #allocation3 [shape = 's32[2]{0}', space=sflag, size = 0x8, scoped, tag = 'scoped memory for bidaf_forward.25']
    #allocation4 [shape = 's32[2]{0}', space=sflag, size = 0x8, scoped, tag = 'scoped memory for bidaf_forward.25']
    #allocation5 [shape = 'u8[1024]{0}', space=vmem, size = 0x400, scoped, tag = 'output window, operand 0']
    #allocation6 [shape = 'u8[1024]{0}', space=vmem, size = 0x400, scoped, tag = 'output window, operand 1']
    #allocation7 [shape = 's32[2]{0}', space=sflag, size = 0x8, scoped, tag = 'scoped memory for bidaf_forward.25']
    %16 = vsyncpa [#allocation4], 0
    %17 = vsyncpa [#allocation3], 0
    %s18 = scalar_lea.sflag [#allocation3], 1
    %19 = vsyncpa %s18, 0
    %20 = vsyncpa [#allocation7], 0
    %s21 = scalar_lea.sflag [#allocation7], 1
    %22 = vsyncpa %s21, 0
    loop: start=0, step=1, limit=4
    $region2: #{bidaf_forward.25} parent=1 // loop_pre_header
      _
    $region3: #{bidaf_forward.25} parent=1 // loop_header
      %s24 = sphi 0, %s28
      %p25 = scmp.ge.s32.totalorder %s24, 4
      %s34 = sphi 0, %s36
      %s37 = sphi 0, %s34
      %s38 = sphi 0, %s37
      %s54 = sphi 0, %s38
      %s60 = sphi 0, %s62
      %s63 = sphi 0, %s60
      %s64 = sphi 0, %s63
      %s80 = sphi 0, %s64
      %s86 = sphi 0, %s88
      %s89 = sphi 0, %s86
      %s90 = sphi 0, %s89
      %s106 = sphi 0, %s90
      %s112 = sphi 0, %s114
      %s115 = sphi 0, %s112
      %s116 = sphi 0, %s115
      %s132 = sphi 0, %s116
      %s136 = sphi 0, %s136
      %s138 = sphi 0, %s136
      %s139 = sphi 0, %s138
      %s153 = sphi 0, %s139
      %s157 = sphi 0, %s157
      %s159 = sphi 0, %s157
      %s160 = sphi 0, %s159
      %s174 = sphi 0, %s160
      %s178 = sphi 0, %s178
      %s180 = sphi 0, %s178
      %s181 = sphi 0, %s180
      %s195 = sphi 0, %s181
      %s199 = sphi 0, %s199
      %s201 = sphi 0, %s199
      %s202 = sphi 0, %s201
      %s216 = sphi 0, %s202
      %s220 = sphi 0, %s220
      %s222 = sphi 0, %s220
      %s223 = sphi 0, %s222
      %s237 = sphi 0, %s223
      %s243 = sphi 0, %s245
      %s246 = sphi 0, %s243
      %s247 = sphi 0, %s246
      %s263 = sphi 0, %s247
      %s269 = sphi 0, %s271
      %s272 = sphi 0, %s269
      %s273 = sphi 0, %s272
      %s289 = sphi 0, %s273
    $region4: #{bidaf_forward.25} parent=1 // loop_header_branch
      %27 = sbr.rel (%p25) target = $region8
    $region5: #{bidaf_forward.25} parent=1 // loop_body
      %s29 = ssub.s32 %s24, 1
      %s30 = ssub.s32 %s24, 2
      %s31 = sadd.s32 %s24, 1
      %s32 = ssub.s32 %s24, %s31
      %p33 = scmp.eq.s32.totalorder %s32, 0
      %s35 = sadd.s32 %s34, 1
      %s36 = scalar_select %p33, %s34, %s35
      %p39 = pneg %p33
      %p40 = scmp.eq.s32.totalorder %s24, 1
      %p41 = por %p39, %p40
      %p42 = scmp.ne.s32.totalorder %s34, %s37
      %p43 = scmp.eq.s32.totalorder %s24, 0
      %p44 = por %p42, %p43
      %p45 = scmp.ne.s32.totalorder %s34, %s37
      %p46 = scmp.eq.s32.totalorder %s29, 1
      %p47 = por %p45, %p46
      %p48 = scmp.ne.s32.totalorder %s37, %s38
      %p49 = scmp.eq.s32.totalorder %s29, 0
      %p50 = por %p48, %p49
      %p51 = scmp.ne.s32.totalorder %s37, %s38
      %p52 = scmp.eq.s32.totalorder %s30, 1
      %p53 = por %p51, %p52
      %p55 = scmp.ne.s32.totalorder %s38, %s54
      %p56 = scmp.eq.s32.totalorder %s30, 0
      %p57 = por %p55, %p56
      %s58 = ssub.s32 %s24, %s31
      %p59 = scmp.eq.s32.totalorder %s58, 0
      %s61 = sadd.s32 %s60, 1
      %s62 = scalar_select %p59, %s60, %s61
      %p65 = pneg %p59
      %p66 = scmp.eq.s32.totalorder %s24, 1
      %p67 = por %p65, %p66
      %p68 = scmp.ne.s32.totalorder %s60, %s63
      %p69 = scmp.eq.s32.totalorder %s24, 0
      %p70 = por %p68, %p69
      %p71 = scmp.ne.s32.totalorder %s60, %s63
      %p72 = scmp.eq.s32.totalorder %s29, 1
      %p73 = por %p71, %p72
      %p74 = scmp.ne.s32.totalorder %s63, %s64
      %p75 = scmp.eq.s32.totalorder %s29, 0
      %p76 = por %p74, %p75
      %p77 = scmp.ne.s32.totalorder %s63, %s64
      %p78 = scmp.eq.s32.totalorder %s30, 1
      %p79 = por %p77, %p78
      %p81 = scmp.ne.s32.totalorder %s64, %s80
      %p82 = scmp.eq.s32.totalorder %s30, 0
      %p83 = por %p81, %p82
      %s84 = ssub.s32 %s24, %s31
      %p85 = scmp.eq.s32.totalorder %s84, 0
      %s87 = sadd.s32 %s86, 1
      %s88 = scalar_select %p85, %s86, %s87
      %p91 = pneg %p85
      %p92 = scmp.eq.s32.totalorder %s24, 1
      %p93 = por %p91, %p92
      %p94 = scmp.ne.s32.totalorder %s86, %s89
      %p95 = scmp.eq.s32.totalorder %s24, 0
      %p96 = por %p94, %p95
      %p97 = scmp.ne.s32.totalorder %s86, %s89
      %p98 = scmp.eq.s32.totalorder %s29, 1
      %p99 = por %p97, %p98
      %p100 = scmp.ne.s32.totalorder %s89, %s90
      %p101 = scmp.eq.s32.totalorder %s29, 0
      %p102 = por %p100, %p101
      %p103 = scmp.ne.s32.totalorder %s89, %s90
      %p104 = scmp.eq.s32.totalorder %s30, 1
      %p105 = por %p103, %p104
      %p107 = scmp.ne.s32.totalorder %s90, %s106
      %p108 = scmp.eq.s32.totalorder %s30, 0
      %p109 = por %p107, %p108
      %s110 = ssub.s32 %s24, %s31
      %p111 = scmp.eq.s32.totalorder %s110, 0
      %s113 = sadd.s32 %s112, 1
      %s114 = scalar_select %p111, %s112, %s113
      %p117 = pneg %p111
      %p118 = scmp.eq.s32.totalorder %s24, 1
      %p119 = por %p117, %p118
      %p120 = scmp.ne.s32.totalorder %s112, %s115
      %p121 = scmp.eq.s32.totalorder %s24, 0
      %p122 = por %p120, %p121
      %p123 = scmp.ne.s32.totalorder %s112, %s115
      %p124 = scmp.eq.s32.totalorder %s29, 1
      %p125 = por %p123, %p124
      %p126 = scmp.ne.s32.totalorder %s115, %s116
      %p127 = scmp.eq.s32.totalorder %s29, 0
      %p128 = por %p126, %p127
      %p129 = scmp.ne.s32.totalorder %s115, %s116
      %p130 = scmp.eq.s32.totalorder %s30, 1
      %p131 = por %p129, %p130
      %p133 = scmp.ne.s32.totalorder %s116, %s132
      %p134 = scmp.eq.s32.totalorder %s30, 0
      %p135 = por %p133, %p134
      %s137 = sadd.s32 %s136, 1
      %p140 = scmp.eq.s32.totalorder %s24, 1
      %p141 = scmp.ne.s32.totalorder %s136, %s138
      %p142 = scmp.eq.s32.totalorder %s24, 0
      %p143 = por %p141, %p142
      %p144 = scmp.ne.s32.totalorder %s136, %s138
      %p145 = scmp.eq.s32.totalorder %s29, 1
      %p146 = por %p144, %p145
      %p147 = scmp.ne.s32.totalorder %s138, %s139
      %p148 = scmp.eq.s32.totalorder %s29, 0
      %p149 = por %p147, %p148
      %p150 = scmp.ne.s32.totalorder %s138, %s139
      %p151 = scmp.eq.s32.totalorder %s30, 1
      %p152 = por %p150, %p151
      %p154 = scmp.ne.s32.totalorder %s139, %s153
      %p155 = scmp.eq.s32.totalorder %s30, 0
      %p156 = por %p154, %p155
      %s158 = sadd.s32 %s157, 1
      %p161 = scmp.eq.s32.totalorder %s24, 1
      %p162 = scmp.ne.s32.totalorder %s157, %s159
      %p163 = scmp.eq.s32.totalorder %s24, 0
      %p164 = por %p162, %p163
      %p165 = scmp.ne.s32.totalorder %s157, %s159
      %p166 = scmp.eq.s32.totalorder %s29, 1
      %p167 = por %p165, %p166
      %p168 = scmp.ne.s32.totalorder %s159, %s160
      %p169 = scmp.eq.s32.totalorder %s29, 0
      %p170 = por %p168, %p169
      %p171 = scmp.ne.s32.totalorder %s159, %s160
      %p172 = scmp.eq.s32.totalorder %s30, 1
      %p173 = por %p171, %p172
      %p175 = scmp.ne.s32.totalorder %s160, %s174
      %p176 = scmp.eq.s32.totalorder %s30, 0
      %p177 = por %p175, %p176
      %s179 = sadd.s32 %s178, 1
      %p182 = scmp.eq.s32.totalorder %s24, 1
      %p183 = scmp.ne.s32.totalorder %s178, %s180
      %p184 = scmp.eq.s32.totalorder %s24, 0
      %p185 = por %p183, %p184
      %p186 = scmp.ne.s32.totalorder %s178, %s180
      %p187 = scmp.eq.s32.totalorder %s29, 1
      %p188 = por %p186, %p187
      %p189 = scmp.ne.s32.totalorder %s180, %s181
      %p190 = scmp.eq.s32.totalorder %s29, 0
      %p191 = por %p189, %p190
      %p192 = scmp.ne.s32.totalorder %s180, %s181
      %p193 = scmp.eq.s32.totalorder %s30, 1
      %p194 = por %p192, %p193
      %p196 = scmp.ne.s32.totalorder %s181, %s195
      %p197 = scmp.eq.s32.totalorder %s30, 0
      %p198 = por %p196, %p197
      %s200 = sadd.s32 %s199, 1
      %p203 = scmp.eq.s32.totalorder %s24, 1
      %p204 = scmp.ne.s32.totalorder %s199, %s201
      %p205 = scmp.eq.s32.totalorder %s24, 0
      %p206 = por %p204, %p205
      %p207 = scmp.ne.s32.totalorder %s199, %s201
      %p208 = scmp.eq.s32.totalorder %s29, 1
      %p209 = por %p207, %p208
      %p210 = scmp.ne.s32.totalorder %s201, %s202
      %p211 = scmp.eq.s32.totalorder %s29, 0
      %p212 = por %p210, %p211
      %p213 = scmp.ne.s32.totalorder %s201, %s202
      %p214 = scmp.eq.s32.totalorder %s30, 1
      %p215 = por %p213, %p214
      %p217 = scmp.ne.s32.totalorder %s202, %s216
      %p218 = scmp.eq.s32.totalorder %s30, 0
      %p219 = por %p217, %p218
      %s221 = sadd.s32 %s220, 1
      %p224 = scmp.eq.s32.totalorder %s24, 1
      %p225 = scmp.ne.s32.totalorder %s220, %s222
      %p226 = scmp.eq.s32.totalorder %s24, 0
      %p227 = por %p225, %p226
      %p228 = scmp.ne.s32.totalorder %s220, %s222
      %p229 = scmp.eq.s32.totalorder %s29, 1
      %p230 = por %p228, %p229
      %p231 = scmp.ne.s32.totalorder %s222, %s223
      %p232 = scmp.eq.s32.totalorder %s29, 0
      %p233 = por %p231, %p232
      %p234 = scmp.ne.s32.totalorder %s222, %s223
      %p235 = scmp.eq.s32.totalorder %s30, 1
      %p236 = por %p234, %p235
      %p238 = scmp.ne.s32.totalorder %s223, %s237
      %p239 = scmp.eq.s32.totalorder %s30, 0
      %p240 = por %p238, %p239
      %s241 = ssub.s32 %s24, %s31
      %p242 = scmp.eq.s32.totalorder %s241, 0
      %s244 = sadd.s32 %s243, 1
      %s245 = scalar_select %p242, %s243, %s244
      %p248 = pneg %p242
      %p249 = scmp.eq.s32.totalorder %s24, 1
      %p250 = por %p248, %p249
      %p251 = scmp.ne.s32.totalorder %s243, %s246
      %p252 = scmp.eq.s32.totalorder %s24, 0
      %p253 = por %p251, %p252
      %p254 = scmp.ne.s32.totalorder %s243, %s246
      %p255 = scmp.eq.s32.totalorder %s29, 1
      %p256 = por %p254, %p255
      %p257 = scmp.ne.s32.totalorder %s246, %s247
      %p258 = scmp.eq.s32.totalorder %s29, 0
      %p259 = por %p257, %p258
      %p260 = scmp.ne.s32.totalorder %s246, %s247
      %p261 = scmp.eq.s32.totalorder %s30, 1
      %p262 = por %p260, %p261
      %p264 = scmp.ne.s32.totalorder %s247, %s263
      %p265 = scmp.eq.s32.totalorder %s30, 0
      %p266 = por %p264, %p265
      %s267 = ssub.s32 %s24, %s31
      %p268 = scmp.eq.s32.totalorder %s267, 0
      %s270 = sadd.s32 %s269, 1
      %s271 = scalar_select %p268, %s269, %s270
      %p274 = pneg %p268
      %p275 = scmp.eq.s32.totalorder %s24, 1
      %p276 = por %p274, %p275
      %p277 = scmp.ne.s32.totalorder %s269, %s272
      %p278 = scmp.eq.s32.totalorder %s24, 0
      %p279 = por %p277, %p278
      %p280 = scmp.ne.s32.totalorder %s269, %s272
      %p281 = scmp.eq.s32.totalorder %s29, 1
      %p282 = por %p280, %p281
      %p283 = scmp.ne.s32.totalorder %s272, %s273
      %p284 = scmp.eq.s32.totalorder %s29, 0
      %p285 = por %p283, %p284
      %p286 = scmp.ne.s32.totalorder %s272, %s273
      %p287 = scmp.eq.s32.totalorder %s30, 1
      %p288 = por %p286, %p287
      %p290 = scmp.ne.s32.totalorder %s273, %s289
      %p291 = scmp.eq.s32.totalorder %s30, 0
      %p292 = por %p290, %p291
      %p293 = scmp.le.s32.totalorder 1, %s24
      %p294 = scmp.lt.s32.totalorder %s24, 3
      %p295 = pnand %p293, %p294
      %p296 = pneg %p295
      // Predicated region
      $region9: #{bidaf_forward.25} parent=5 // pred_check
        _
      $region10: #{bidaf_forward.25} parent=5 // pred_check_branch
        %298 = sbr.rel (%p295) target = $region12
      $region11: #{bidaf_forward.25} parent=5 // pred_region
        %s299 = ssub.s32 %s24, 1
        // Predicated region
        $region13: #{bidaf_forward.25} parent=11 // pred_check
          %p300 = pneg %p149
        $region14: #{bidaf_forward.25} parent=11 // pred_check_branch
          %302 = sbr.rel (%p300) target = $region16
        $region15: #{bidaf_forward.25} parent=11 // pred_region
          _
        $region16: #{bidaf_forward.25} parent=11 // pred_fallthru
          _
        // Predicated region
        $region17: #{bidaf_forward.25} parent=11 // pred_check
          %p303 = pneg %p170
        $region18: #{bidaf_forward.25} parent=11 // pred_check_branch
          %305 = sbr.rel (%p303) target = $region20
        $region19: #{bidaf_forward.25} parent=11 // pred_region
          _
        $region20: #{bidaf_forward.25} parent=11 // pred_fallthru
          _
        // Predicated region
        $region21: #{bidaf_forward.25} parent=11 // pred_check
          %p306 = pneg %p191
        $region22: #{bidaf_forward.25} parent=11 // pred_check_branch
          %308 = sbr.rel (%p306) target = $region24
        $region23: #{bidaf_forward.25} parent=11 // pred_region
          _
        $region24: #{bidaf_forward.25} parent=11 // pred_fallthru
          _
        // Predicated region
        $region25: #{bidaf_forward.25} parent=11 // pred_check
          %p309 = pneg %p212
        $region26: #{bidaf_forward.25} parent=11 // pred_check_branch
          %311 = sbr.rel (%p309) target = $region28
        $region27: #{bidaf_forward.25} parent=11 // pred_region
          _
        $region28: #{bidaf_forward.25} parent=11 // pred_fallthru
          _
        // Predicated region
        $region29: #{bidaf_forward.25} parent=11 // pred_check
          %p312 = pneg %p233
        $region30: #{bidaf_forward.25} parent=11 // pred_check_branch
          %314 = sbr.rel (%p312) target = $region32
        $region31: #{bidaf_forward.25} parent=11 // pred_region
          %s316 = ssub.s32 16, 16
          %317 = vsyncadd [#allocation4], %s316
          %s319 = sshll.u32 %s8, 4
          %s320 = int_to_ptr.vmem [resolvable:$true] %s319
          %322 = dma.vmem_to_smem %s320, 16, [#allocation2], [#allocation4]
        $region32: #{bidaf_forward.25} parent=11 // pred_fallthru
          _
      $region12: #{bidaf_forward.25} parent=5 // pred_fallthru
        _
      %p323 = scmp.lt.s32.totalorder %s24, 2
      // Predicated region
      $region33: #{bidaf_forward.25} parent=5 // pred_check
        %p324 = pneg %p323
      $region34: #{bidaf_forward.25} parent=5 // pred_check_branch
        %326 = sbr.rel (%p324) target = $region36
      $region35: #{bidaf_forward.25} parent=5 // pred_region
        // Predicated region
        $region37: #{bidaf_forward.25} parent=35 // pred_check
          %p327 = pneg %p44
        $region38: #{bidaf_forward.25} parent=35 // pred_check_branch
          %329 = sbr.rel (%p327) target = $region40
        $region39: #{bidaf_forward.25} parent=35 // pred_region
          %p330 = scmp.lt.s32.totalorder %s24, 1
          %s331 = scalar_select %p330, %s24, 1
          %s332 = smul.addr %s331, 4
          %s333 = smul.addr %s332, 8
          %s334 = scalar_lea.vmem %s0, %s333
        $region40: #{bidaf_forward.25} parent=35 // pred_fallthru
          _
        // Predicated region
        $region41: #{bidaf_forward.25} parent=35 // pred_check
          %p335 = pneg %p70
        $region42: #{bidaf_forward.25} parent=35 // pred_check_branch
          %337 = sbr.rel (%p335) target = $region44
        $region43: #{bidaf_forward.25} parent=35 // pred_region
          %p338 = scmp.lt.s32.totalorder %s24, 1
          %s339 = scalar_select %p338, %s24, 1
          %s340 = smul.addr %s339, 2
          %s341 = smul.addr %s340, 8
          %s342 = scalar_lea.vmem %s1, %s341
        $region44: #{bidaf_forward.25} parent=35 // pred_fallthru
          _
        // Predicated region
        $region45: #{bidaf_forward.25} parent=35 // pred_check
          %p343 = pneg %p96
        $region46: #{bidaf_forward.25} parent=35 // pred_check_branch
          %345 = sbr.rel (%p343) target = $region48
        $region47: #{bidaf_forward.25} parent=35 // pred_region
          %p346 = scmp.lt.s32.totalorder %s24, 1
          %s347 = scalar_select %p346, %s24, 1
          %s348 = smul.addr %s347, 2
          %s349 = smul.addr %s348, 8
          %s350 = scalar_lea.vmem %s2, %s349
        $region48: #{bidaf_forward.25} parent=35 // pred_fallthru
          _
        // Predicated region
        $region49: #{bidaf_forward.25} parent=35 // pred_check
          %p351 = pneg %p122
        $region50: #{bidaf_forward.25} parent=35 // pred_check_branch
          %353 = sbr.rel (%p351) target = $region52
        $region51: #{bidaf_forward.25} parent=35 // pred_region
          %p354 = scmp.lt.s32.totalorder %s24, 1
          %s355 = scalar_select %p354, %s24, 1
          %s356 = scalar_lea.vmem %s3, %s355
        $region52: #{bidaf_forward.25} parent=35 // pred_fallthru
          _
      $region36: #{bidaf_forward.25} parent=5 // pred_fallthru
        _
      %p357 = scmp.le.s32.totalorder 1, %s24
      %p358 = scmp.lt.s32.totalorder %s24, 3
      %p359 = pnand %p357, %p358
      %p360 = pneg %p359
      // Predicated region
      $region53: #{bidaf_forward.25} parent=5 // pred_check
        _
      $region54: #{bidaf_forward.25} parent=5 // pred_check_branch
        %362 = sbr.rel (%p359) target = $region56
      $region55: #{bidaf_forward.25} parent=5 // pred_region
        %s363 = ssub.s32 %s24, 1
        // Predicated region
        $region57: #{bidaf_forward.25} parent=55 // pred_check
          %p364 = pneg %p233
        $region58: #{bidaf_forward.25} parent=55 // pred_check_branch
          %366 = sbr.rel (%p364) target = $region60
        $region59: #{bidaf_forward.25} parent=55 // pred_region
          %367 = dma.done [#allocation4], 16
        $region60: #{bidaf_forward.25} parent=55 // pred_fallthru
          _
        %368 = sfence
        %p369 = scmp.lt.s32.totalorder %s29, 1
        %s370 = scalar_select %p369, %s29, 1
        %s371 = smul.addr %s370, 4
        %s372 = smul.addr %s371, 8
        %s373 = scalar_lea.vmem %s0, %s372
        %p374 = pneg %p50
        %p375 = pneg %p47
        %p376 = scmp.lt.s32.totalorder %s29, 1
        %s377 = scalar_select %p376, %s29, 1
        %s378 = smul.addr %s377, 2
        %s379 = smul.addr %s378, 8
        %s380 = scalar_lea.vmem %s1, %s379
        %p381 = pneg %p76
        %p382 = pneg %p73
        %p383 = scmp.lt.s32.totalorder %s29, 1
        %s384 = scalar_select %p383, %s29, 1
        %s385 = smul.addr %s384, 2
        %s386 = smul.addr %s385, 8
        %s387 = scalar_lea.vmem %s2, %s386
        %p388 = pneg %p102
        %p389 = pneg %p99
        %p390 = scmp.lt.s32.totalorder %s29, 1
        %s391 = scalar_select %p390, %s29, 1
        %s392 = scalar_lea.vmem %s3, %s391
        %p393 = pneg %p128
        %p394 = pneg %p125
        %p395 = pneg %p149
        %p396 = pneg %p146
        %p397 = pneg %p170
        %p398 = pneg %p167
        %p399 = pneg %p191
        %p400 = pneg %p188
        %p401 = pneg %p212
        %p402 = pneg %p209
        %p403 = pneg %p233
        %p404 = pneg %p230
        %p405 = pneg %p259
        %p406 = pneg %p256
        %s407 = sand.u32 %s246, 1
        %s408 = scalar_lea.sflag [#allocation3], %s407
        %s409 = sand.u32 %s246, 1
        %s410 = scalar_lea.vmem [#allocation5], %s409
        %p411 = pneg %p285
        %p412 = pneg %p282
        %s413 = sand.u32 %s272, 1
        %s414 = scalar_lea.sflag [#allocation7], %s413
        %s415 = sand.u32 %s272, 1
        %s416 = scalar_lea.vmem [#allocation6], %s415
        %p417 = scmp.lt.s32.totalorder %s29, 1
        %s418 = scalar_select %p417, %s29, 1
        %s419 = smul.addr %s418, 4
        %s420 = smul.addr %s419, 8
        %s421 = scalar_lea.vmem %s0, %s420
        %p422 = scmp.lt.s32.totalorder %s29, 1
        %s423 = scalar_select %p422, %s29, 1
        %s424 = smul.addr %s423, 2
        %s425 = smul.addr %s424, 8
        %s426 = scalar_lea.vmem %s1, %s425
        %p427 = scmp.lt.s32.totalorder %s29, 1
        %s428 = scalar_select %p427, %s29, 1
        %s429 = smul.addr %s428, 2
        %s430 = smul.addr %s429, 8
        %s431 = scalar_lea.vmem %s2, %s430
        %p432 = scmp.lt.s32.totalorder %s29, 1
        %s433 = scalar_select %p432, %s29, 1
        %s434 = scalar_lea.vmem %s3, %s433
        %v435 = vld [vmem:[%s421] sm:$0xff]
        %v436 = vld [vmem:[%s421 + $0x8] sm:$0xff]
        %v437 = vld [vmem:[%s421 + $0x10] sm:$0xff]
        %v438 = vld [vmem:[%s421 + $0x18] sm:$0xff]
        %v439 = vld [vmem:[%s426] sm:$0xff]
        %v440 = vld [vmem:[%s426 + $0x8] sm:$0xff]
        %v441 = vld [vmem:[%s431] sm:$0xff]
        %v442 = vld [vmem:[%s431 + $0x8] sm:$0xff]
        %v443 = vld [vmem:[%s434] sm:$0x1]
        %v444 = vld [vmem:[%s4] sm:$0x3]
        %v445 = vld [vmem:[%s5] sm:$0x1]
        %vm446 = vcmask 523264
        %v448 = vsel %vm446, %v445, 0
        %v451 = vsel %vm446, %v439, 0
        %v454 = vsel %vm446, %v440, 0
        %456 = vmatprep.subr.mxu0 0.0
        %457 = vmatpush1.xpose.msra.mxu0 %v451
        %458 = vmatprep.subr.mxu0 0.0
        %459 = vmatpush1.xpose.msra.mxu0 %v454
        %460 = vmatprep.subr.mxu0 0.0
        %461 = vmatpush1.xpose.msra.mxu0 0.0
        %462 = vmatprep.subr.mxu0 0.0
        %463 = vmatpush1.xpose.msra.mxu0 0.0
        %464 = vmatprep.subr.mxu0 0.0
        %465 = vmatpush1.xpose.msra.mxu0 0.0
        %466 = vmatprep.subr.mxu0 0.0
        %467 = vmatpush1.xpose.msra.mxu0 0.0
        %468 = vmatprep.subr.mxu0 0.0
        %469 = vmatpush1.xpose.msra.mxu0 0.0
        %470 = vmatprep.subr.mxu0 0.0
        %471 = vmatpush1.xpose.msra.mxu0 0.0
        %472 = vmatprep.subr.mxu0 0.0
        %473 = vmatpush1.xpose.msra.mxu0 0.0
        %474 = vmatprep.subr.mxu0 0.0
        %475 = vmatpush1.xpose.msra.mxu0 0.0
        %476 = vmatprep.subr.mxu0 0.0
        %477 = vmatpush1.xpose.msra.mxu0 0.0
        %478 = vmatprep.subr.mxu0 0.0
        %479 = vmatpush1.xpose.msra.mxu0 0.0
        %480 = vmatprep.subr.mxu0 0.0
        %481 = vmatpush1.xpose.msra.mxu0 0.0
        %482 = vmatprep.subr.mxu0 0.0
        %483 = vmatpush1.xpose.msra.mxu0 0.0
        %484 = vmatprep.subr.mxu0 0.0
        %485 = vmatpush1.xpose.msra.mxu0 0.0
        %486 = vmatprep.subr.mxu0 0.0
        %487 = vmatpush1.xpose.msra.mxu0 0.0
        %488 = vmatprep.subr.mxu0 0.0
        %489 = vmatpush1.xpose.msra.mxu0 0.0
        %490 = vmatprep.subr.mxu0 0.0
        %491 = vmatpush1.xpose.msra.mxu0 0.0
        %492 = vmatprep.subr.mxu0 0.0
        %493 = vmatpush1.xpose.msra.mxu0 0.0
        %494 = vmatprep.subr.mxu0 0.0
        %495 = vmatpush1.xpose.msra.mxu0 0.0
        %496 = vmatprep.subr.mxu0 0.0
        %497 = vmatpush1.xpose.msra.mxu0 0.0
        %498 = vmatprep.subr.mxu0 0.0
        %499 = vmatpush1.xpose.msra.mxu0 0.0
        %500 = vmatprep.subr.mxu0 0.0
        %501 = vmatpush1.xpose.msra.mxu0 0.0
        %502 = vmatprep.subr.mxu0 0.0
        %503 = vmatpush1.xpose.msra.mxu0 0.0
        %504 = vmatprep.subr.mxu0 0.0
        %505 = vmatpush1.xpose.msra.mxu0 0.0
        %506 = vmatprep.subr.mxu0 0.0
        %507 = vmatpush1.xpose.msra.mxu0 0.0
        %508 = vmatprep.subr.mxu0 0.0
        %509 = vmatpush1.xpose.msra.mxu0 0.0
        %510 = vmatprep.subr.mxu0 0.0
        %511 = vmatpush1.xpose.msra.mxu0 0.0
        %512 = vmatprep.subr.mxu0 0.0
        %513 = vmatpush1.xpose.msra.mxu0 0.0
        %514 = vmatprep.subr.mxu0 0.0
        %515 = vmatpush1.xpose.msra.mxu0 0.0
        %516 = vmatprep.subr.mxu0 0.0
        %517 = vmatpush1.xpose.msra.mxu0 0.0
        %518 = vmatprep.subr.mxu0 0.0
        %519 = vmatpush1.xpose.msra.mxu0 0.0
        %520 = vmatprep.mubr.f32.mxu0 0.0
        %521 = vmatmul.mubr.f32.gmra.mrb[0].mxu0 %v448
        %v522 = vpop.f32.mrb[0].mxu0
        %v523 = vadd.f32 0.0, %v522
        %v524 = vpop.f32.mrb[0].mxu0
        %525 = vdwg.mxu0
        %v527 = vlaneseq
        %v528 = vshrl.u32 %v527, 7
        %v529 = vsub.s32 0, %v528
        %v530 = vrot.slane %v444, %v529
        %v531 = vlaneseq
        %v532 = vshrl.u32 %v531, 7
        %v533 = vsub.s32 1, %v532
        %v534 = vrot.slane %v444, %v533
        %537 = vmatprep.subr.mxu0 %v436
        %538 = vmatpush1.xpose.msra.mxu0 %v435
        %539 = vmatprep.subr.mxu0 %v438
        %540 = vmatpush1.xpose.msra.mxu0 %v437
        %541 = vmatprep.subr.mxu0 0.0
        %542 = vmatpush1.xpose.msra.mxu0 0.0
        %543 = vmatprep.subr.mxu0 0.0
        %544 = vmatpush1.xpose.msra.mxu0 0.0
        %545 = vmatprep.subr.mxu0 0.0
        %546 = vmatpush1.xpose.msra.mxu0 0.0
        %547 = vmatprep.subr.mxu0 0.0
        %548 = vmatpush1.xpose.msra.mxu0 0.0
        %549 = vmatprep.subr.mxu0 0.0
        %550 = vmatpush1.xpose.msra.mxu0 0.0
        %551 = vmatprep.subr.mxu0 0.0
        %552 = vmatpush1.xpose.msra.mxu0 0.0
        %553 = vmatprep.subr.mxu0 0.0
        %554 = vmatpush1.xpose.msra.mxu0 0.0
        %555 = vmatprep.subr.mxu0 0.0
        %556 = vmatpush1.xpose.msra.mxu0 0.0
        %557 = vmatprep.subr.mxu0 0.0
        %558 = vmatpush1.xpose.msra.mxu0 0.0
        %559 = vmatprep.subr.mxu0 0.0
        %560 = vmatpush1.xpose.msra.mxu0 0.0
        %561 = vmatprep.subr.mxu0 0.0
        %562 = vmatpush1.xpose.msra.mxu0 0.0
        %563 = vmatprep.subr.mxu0 0.0
        %564 = vmatpush1.xpose.msra.mxu0 0.0
        %565 = vmatprep.subr.mxu0 0.0
        %566 = vmatpush1.xpose.msra.mxu0 0.0
        %567 = vmatprep.subr.mxu0 0.0
        %568 = vmatpush1.xpose.msra.mxu0 0.0
        %569 = vmatprep.subr.mxu0 0.0
        %570 = vmatpush1.xpose.msra.mxu0 0.0
        %571 = vmatprep.subr.mxu0 0.0
        %572 = vmatpush1.xpose.msra.mxu0 0.0
        %573 = vmatprep.subr.mxu0 0.0
        %574 = vmatpush1.xpose.msra.mxu0 0.0
        %575 = vmatprep.subr.mxu0 0.0
        %576 = vmatpush1.xpose.msra.mxu0 0.0
        %577 = vmatprep.subr.mxu0 0.0
        %578 = vmatpush1.xpose.msra.mxu0 0.0
        %579 = vmatprep.subr.mxu0 0.0
        %580 = vmatpush1.xpose.msra.mxu0 0.0
        %581 = vmatprep.subr.mxu0 0.0
        %582 = vmatpush1.xpose.msra.mxu0 0.0
        %583 = vmatprep.subr.mxu0 0.0
        %584 = vmatpush1.xpose.msra.mxu0 0.0
        %585 = vmatprep.subr.mxu0 0.0
        %586 = vmatpush1.xpose.msra.mxu0 0.0
        %587 = vmatprep.subr.mxu0 0.0
        %588 = vmatpush1.xpose.msra.mxu0 0.0
        %589 = vmatprep.subr.mxu0 0.0
        %590 = vmatpush1.xpose.msra.mxu0 0.0
        %591 = vmatprep.subr.mxu0 0.0
        %592 = vmatpush1.xpose.msra.mxu0 0.0
        %593 = vmatprep.subr.mxu0 0.0
        %594 = vmatpush1.xpose.msra.mxu0 0.0
        %595 = vmatprep.subr.mxu0 0.0
        %596 = vmatpush1.xpose.msra.mxu0 0.0
        %597 = vmatprep.subr.mxu0 0.0
        %598 = vmatpush1.xpose.msra.mxu0 0.0
        %599 = vmatprep.subr.mxu0 0.0
        %600 = vmatpush1.xpose.msra.mxu0 0.0
        %601 = vmatprep.mubr.f32.mxu0 %v534
        %602 = vmatmul.mubr.f32.gmra.mrb[0].mxu0 %v530
        %v603 = vpop.f32.mrb[0].mxu0
        %v604 = vadd.f32 %v523, %v603
        %v605 = vpop.f32.mrb[0].mxu0
        %606 = vdwg.mxu0
        %s607 = sld [smem:[#allocation2]]
        %s608 = sld [smem:[#allocation2 + $0x1]]
        %s609 = sadd.f32 %s607, %s608
        %v610 = vstv %s609
        %v611 = vadd.f32 %v604, %v610
        %v612 = vld [vmem:[%s6] sm:$0x3]
        %v613 = vld [vmem:[%s7] sm:$0x1]
        %v615 = vsel %vm446, %v613, 0
        %v618 = vsel %vm446, %v441, 0
        %v621 = vsel %vm446, %v442, 0
        %623 = vmatprep.subr.mxu0 0.0
        %624 = vmatpush1.xpose.msra.mxu0 %v618
        %625 = vmatprep.subr.mxu0 0.0
        %626 = vmatpush1.xpose.msra.mxu0 %v621
        %627 = vmatprep.subr.mxu0 0.0
        %628 = vmatpush1.xpose.msra.mxu0 0.0
        %629 = vmatprep.subr.mxu0 0.0
        %630 = vmatpush1.xpose.msra.mxu0 0.0
        %631 = vmatprep.subr.mxu0 0.0
        %632 = vmatpush1.xpose.msra.mxu0 0.0
        %633 = vmatprep.subr.mxu0 0.0
        %634 = vmatpush1.xpose.msra.mxu0 0.0
        %635 = vmatprep.subr.mxu0 0.0
        %636 = vmatpush1.xpose.msra.mxu0 0.0
        %637 = vmatprep.subr.mxu0 0.0
        %638 = vmatpush1.xpose.msra.mxu0 0.0
        %639 = vmatprep.subr.mxu0 0.0
        %640 = vmatpush1.xpose.msra.mxu0 0.0
        %641 = vmatprep.subr.mxu0 0.0
        %642 = vmatpush1.xpose.msra.mxu0 0.0
        %643 = vmatprep.subr.mxu0 0.0
        %644 = vmatpush1.xpose.msra.mxu0 0.0
        %645 = vmatprep.subr.mxu0 0.0
        %646 = vmatpush1.xpose.msra.mxu0 0.0
        %647 = vmatprep.subr.mxu0 0.0
        %648 = vmatpush1.xpose.msra.mxu0 0.0
        %649 = vmatprep.subr.mxu0 0.0
        %650 = vmatpush1.xpose.msra.mxu0 0.0
        %651 = vmatprep.subr.mxu0 0.0
        %652 = vmatpush1.xpose.msra.mxu0 0.0
        %653 = vmatprep.subr.mxu0 0.0
        %654 = vmatpush1.xpose.msra.mxu0 0.0
        %655 = vmatprep.subr.mxu0 0.0
        %656 = vmatpush1.xpose.msra.mxu0 0.0
        %657 = vmatprep.subr.mxu0 0.0
        %658 = vmatpush1.xpose.msra.mxu0 0.0
        %659 = vmatprep.subr.mxu0 0.0
        %660 = vmatpush1.xpose.msra.mxu0 0.0
        %661 = vmatprep.subr.mxu0 0.0
        %662 = vmatpush1.xpose.msra.mxu0 0.0
        %663 = vmatprep.subr.mxu0 0.0
        %664 = vmatpush1.xpose.msra.mxu0 0.0
        %665 = vmatprep.subr.mxu0 0.0
        %666 = vmatpush1.xpose.msra.mxu0 0.0
        %667 = vmatprep.subr.mxu0 0.0
        %668 = vmatpush1.xpose.msra.mxu0 0.0
        %669 = vmatprep.subr.mxu0 0.0
        %670 = vmatpush1.xpose.msra.mxu0 0.0
        %671 = vmatprep.subr.mxu0 0.0
        %672 = vmatpush1.xpose.msra.mxu0 0.0
        %673 = vmatprep.subr.mxu0 0.0
        %674 = vmatpush1.xpose.msra.mxu0 0.0
        %675 = vmatprep.subr.mxu0 0.0
        %676 = vmatpush1.xpose.msra.mxu0 0.0
        %677 = vmatprep.subr.mxu0 0.0
        %678 = vmatpush1.xpose.msra.mxu0 0.0
        %679 = vmatprep.subr.mxu0 0.0
        %680 = vmatpush1.xpose.msra.mxu0 0.0
        %681 = vmatprep.subr.mxu0 0.0
        %682 = vmatpush1.xpose.msra.mxu0 0.0
        %683 = vmatprep.subr.mxu0 0.0
        %684 = vmatpush1.xpose.msra.mxu0 0.0
        %685 = vmatprep.subr.mxu0 0.0
        %686 = vmatpush1.xpose.msra.mxu0 0.0
        %687 = vmatprep.mubr.f32.mxu0 0.0
        %688 = vmatmul.mubr.f32.gmra.mrb[0].mxu0 %v615
        %v689 = vpop.f32.mrb[0].mxu0
        %v690 = vadd.f32 0.0, %v689
        %v691 = vpop.f32.mrb[0].mxu0
        %692 = vdwg.mxu0
        %v694 = vlaneseq
        %v695 = vshrl.u32 %v694, 7
        %v696 = vsub.s32 0, %v695
        %v697 = vrot.slane %v612, %v696
        %v698 = vlaneseq
        %v699 = vshrl.u32 %v698, 7
        %v700 = vsub.s32 1, %v699
        %v701 = vrot.slane %v612, %v700
        %704 = vmatprep.subr.mxu0 %v436
        %705 = vmatpush1.xpose.msra.mxu0 %v435
        %706 = vmatprep.subr.mxu0 %v438
        %707 = vmatpush1.xpose.msra.mxu0 %v437
        %708 = vmatprep.subr.mxu0 0.0
        %709 = vmatpush1.xpose.msra.mxu0 0.0
        %710 = vmatprep.subr.mxu0 0.0
        %711 = vmatpush1.xpose.msra.mxu0 0.0
        %712 = vmatprep.subr.mxu0 0.0
        %713 = vmatpush1.xpose.msra.mxu0 0.0
        %714 = vmatprep.subr.mxu0 0.0
        %715 = vmatpush1.xpose.msra.mxu0 0.0
        %716 = vmatprep.subr.mxu0 0.0
        %717 = vmatpush1.xpose.msra.mxu0 0.0
        %718 = vmatprep.subr.mxu0 0.0
        %719 = vmatpush1.xpose.msra.mxu0 0.0
        %720 = vmatprep.subr.mxu0 0.0
        %721 = vmatpush1.xpose.msra.mxu0 0.0
        %722 = vmatprep.subr.mxu0 0.0
        %723 = vmatpush1.xpose.msra.mxu0 0.0
        %724 = vmatprep.subr.mxu0 0.0
        %725 = vmatpush1.xpose.msra.mxu0 0.0
        %726 = vmatprep.subr.mxu0 0.0
        %727 = vmatpush1.xpose.msra.mxu0 0.0
        %728 = vmatprep.subr.mxu0 0.0
        %729 = vmatpush1.xpose.msra.mxu0 0.0
        %730 = vmatprep.subr.mxu0 0.0
        %731 = vmatpush1.xpose.msra.mxu0 0.0
        %732 = vmatprep.subr.mxu0 0.0
        %733 = vmatpush1.xpose.msra.mxu0 0.0
        %734 = vmatprep.subr.mxu0 0.0
        %735 = vmatpush1.xpose.msra.mxu0 0.0
        %736 = vmatprep.subr.mxu0 0.0
        %737 = vmatpush1.xpose.msra.mxu0 0.0
        %738 = vmatprep.subr.mxu0 0.0
        %739 = vmatpush1.xpose.msra.mxu0 0.0
        %740 = vmatprep.subr.mxu0 0.0
        %741 = vmatpush1.xpose.msra.mxu0 0.0
        %742 = vmatprep.subr.mxu0 0.0
        %743 = vmatpush1.xpose.msra.mxu0 0.0
        %744 = vmatprep.subr.mxu0 0.0
        %745 = vmatpush1.xpose.msra.mxu0 0.0
        %746 = vmatprep.subr.mxu0 0.0
        %747 = vmatpush1.xpose.msra.mxu0 0.0
        %748 = vmatprep.subr.mxu0 0.0
        %749 = vmatpush1.xpose.msra.mxu0 0.0
        %750 = vmatprep.subr.mxu0 0.0
        %751 = vmatpush1.xpose.msra.mxu0 0.0
        %752 = vmatprep.subr.mxu0 0.0
        %753 = vmatpush1.xpose.msra.mxu0 0.0
        %754 = vmatprep.subr.mxu0 0.0
        %755 = vmatpush1.xpose.msra.mxu0 0.0
        %756 = vmatprep.subr.mxu0 0.0
        %757 = vmatpush1.xpose.msra.mxu0 0.0
        %758 = vmatprep.subr.mxu0 0.0
        %759 = vmatpush1.xpose.msra.mxu0 0.0
        %760 = vmatprep.subr.mxu0 0.0
        %761 = vmatpush1.xpose.msra.mxu0 0.0
        %762 = vmatprep.subr.mxu0 0.0
        %763 = vmatpush1.xpose.msra.mxu0 0.0
        %764 = vmatprep.subr.mxu0 0.0
        %765 = vmatpush1.xpose.msra.mxu0 0.0
        %766 = vmatprep.subr.mxu0 0.0
        %767 = vmatpush1.xpose.msra.mxu0 0.0
        %768 = vmatprep.mubr.f32.mxu0 %v701
        %769 = vmatmul.mubr.f32.gmra.mrb[0].mxu0 %v697
        %v770 = vpop.f32.mrb[0].mxu0
        %v771 = vadd.f32 %v690, %v770
        %v772 = vpop.f32.mrb[0].mxu0
        %773 = vdwg.mxu0
        %s774 = sld [smem:[#allocation2 + $0x2]]
        %s775 = sld [smem:[#allocation2 + $0x3]]
        %s776 = sadd.f32 %s774, %s775
        %v777 = vstv %s776
        %v778 = vadd.f32 %v771, %v777
        %vm779 = vcmp.ne.f32.partialorder %v443, 0.0
        %v780 = vsel %vm779, %v611, -1e+30
        %vm781 = vcmask 122880
        %v782 = vsel %vm781, %v780, -inf
        %783 = vmax.xlane.f32.xlu0 %v782
        %v784 = vpop.xlane.xlu0 %783
        %v785 = vsub.f32 %v780, %v784
        %v786 = vmul.f32 %v785, 1.442695
        %v787 = vpow.pop %v786
        %v788 = vsel %vm781, %v787, 0.0
        %789 = vadd.xlane.f32.xlu0 %v788
        %v790 = vpop.xlane.xlu0 %789
        %v791 = vlog2.pop %v790
        %v792 = vmul.f32 %v791, 0.6931472
        %v793 = vsub.f32 %v785, %v792
        %794 = vst.msk [vmem:[%s410] sm:$0x1] %vm781, %v793
        %v795 = vsel %vm779, %v778, -1e+30
        %v796 = vsel %vm781, %v795, -inf
        %797 = vmax.xlane.f32.xlu0 %v796
        %v798 = vpop.xlane.xlu0 %797
        %v799 = vsub.f32 %v795, %v798
        %v800 = vmul.f32 %v799, 1.442695
        %v801 = vpow.pop %v800
        %v802 = vsel %vm781, %v801, 0.0
        %803 = vadd.xlane.f32.xlu0 %v802
        %v804 = vpop.xlane.xlu0 %803
        %v805 = vlog2.pop %v804
        %v806 = vmul.f32 %v805, 0.6931472
        %v807 = vsub.f32 %v799, %v806
        %808 = vst.msk [vmem:[%s416] sm:$0x1] %vm781, %v807
        %s809 = sand.u32 %s246, 1
        %s810 = scalar_lea.sflag [#allocation3], %s809
        %s811 = sand.u32 %s246, 1
        %s812 = scalar_lea.vmem [#allocation5], %s811
        %s813 = sand.u32 %s272, 1
        %s814 = scalar_lea.sflag [#allocation7], %s813
        %s815 = sand.u32 %s272, 1
        %s816 = scalar_lea.vmem [#allocation6], %s815
        // Predicated region
        $region61: #{bidaf_forward.25} parent=55 // pred_check
          %p817 = pneg %p256
        $region62: #{bidaf_forward.25} parent=55 // pred_check_branch
          %819 = sbr.rel (%p817) target = $region64
        $region63: #{bidaf_forward.25} parent=55 // pred_region
          %s821 = ssub.s32 16, 16
          %822 = vsyncadd %s810, %s821
          %s823 = smul.addr %s29, 16
          %s824 = scalar_lea.hbm %s9, %s823
          %s826 = sshll.u32 %s812, 4
          %s827 = int_to_ptr.vmem [resolvable:$true] %s826
          %829 = dma.vmem_to_hbm [thread:$0]  %s827, 16, %s824, %s810
        $region64: #{bidaf_forward.25} parent=55 // pred_fallthru
          _
        // Predicated region
        $region65: #{bidaf_forward.25} parent=55 // pred_check
          %p830 = pneg %p282
        $region66: #{bidaf_forward.25} parent=55 // pred_check_branch
          %832 = sbr.rel (%p830) target = $region68
        $region67: #{bidaf_forward.25} parent=55 // pred_region
          %s834 = ssub.s32 16, 16
          %835 = vsyncadd %s814, %s834
          %s836 = smul.addr %s29, 16
          %s837 = scalar_lea.hbm %s10, %s836
          %s839 = sshll.u32 %s816, 4
          %s840 = int_to_ptr.vmem [resolvable:$true] %s839
          %842 = dma.vmem_to_hbm [thread:$0]  %s840, 16, %s837, %s814
        $region68: #{bidaf_forward.25} parent=55 // pred_fallthru
          _
      $region56: #{bidaf_forward.25} parent=5 // pred_fallthru
        _
      %p843 = scmp.le.s32.totalorder 2, %s24
      // Predicated region
      $region69: #{bidaf_forward.25} parent=5 // pred_check
        %p844 = pneg %p843
      $region70: #{bidaf_forward.25} parent=5 // pred_check_branch
        %846 = sbr.rel (%p844) target = $region72
      $region71: #{bidaf_forward.25} parent=5 // pred_region
        %s847 = ssub.s32 %s24, 2
        // Predicated region
        $region73: #{bidaf_forward.25} parent=71 // pred_check
          %p848 = pneg %p262
        $region74: #{bidaf_forward.25} parent=71 // pred_check_branch
          %850 = sbr.rel (%p848) target = $region76
        $region75: #{bidaf_forward.25} parent=71 // pred_region
          %s851 = sand.u32 %s247, 1
          %s852 = scalar_lea.sflag [#allocation3], %s851
          %s853 = sand.u32 %s247, 1
          %s854 = scalar_lea.vmem [#allocation5], %s853
          %855 = dma.done %s852, 16
        $region76: #{bidaf_forward.25} parent=71 // pred_fallthru
          _
        // Predicated region
        $region77: #{bidaf_forward.25} parent=71 // pred_check
          %p856 = pneg %p288
        $region78: #{bidaf_forward.25} parent=71 // pred_check_branch
          %858 = sbr.rel (%p856) target = $region80
        $region79: #{bidaf_forward.25} parent=71 // pred_region
          %s859 = sand.u32 %s273, 1
          %s860 = scalar_lea.sflag [#allocation7], %s859
          %s861 = sand.u32 %s273, 1
          %s862 = scalar_lea.vmem [#allocation6], %s861
          %863 = dma.done %s860, 16
        $region80: #{bidaf_forward.25} parent=71 // pred_fallthru
          _
      $region72: #{bidaf_forward.25} parent=5 // pred_fallthru
        _
    $region6: #{bidaf_forward.25} parent=1 // loop_footer
      %s28 = sadd.s32 1, %s24
    $region7: #{bidaf_forward.25} parent=1 // loop_footer_branch
      %23 = sbr.rel target = $region3
    $region8: #{bidaf_forward.25} parent=1 // loop_exit
      _
    %864 = vsyncpa [#allocation3], 1
    %s865 = scalar_lea.sflag [#allocation3], 1
    %866 = vsyncpa %s865, 1
    %867 = vsyncpa [#allocation7], 1
    %s868 = scalar_lea.sflag [#allocation7], 1
    %869 = vsyncpa %s868, 1
    %870 = vsyncpa [#allocation4], 1
    %s871 = scalar_lea.sflag [#allocation4], 1
    %872 = vsyncpa %s871, 1

</llo_original>
